<compile_context>
chip_gen: v7x
topology: tpu7x:2x2x1
jax: 0.10.0
libtpu: 0.0.40
codegen_flags: <defaults>
</compile_context>

<pallas_src>
import jax
import jax.numpy as jnp
from jax.experimental import pallas as pl
from jax.experimental.pallas import tpu as pltpu

IN_FEATURES = 28 * 28        # 784
IN_PAD = 896                 # 7 * 128  (lane-aligned K for first matmul)
HIDDEN = 512
OUT_FEATURES = 10
OUT_PAD = 128                # lane-dense output tile


def mlp_kernel(x_ref, w1_ref, b1_ref, w2_ref, b2_ref, w3_ref, b3_ref, out_ref):
    """Fused 3-layer MLP on one batch tile.

    x_ref:  (TB, 896)  bf16
    w*_ref: bf16 weights (resident in VMEM across the whole grid)
    b*_ref: f32 biases
    out_ref:(TB, 128)  f32 (padded logits; caller slices [:, :10])
    """
    x = x_ref[...]                                                   # (TB, 896) bf16
    h1 = jnp.dot(x, w1_ref[...], preferred_element_type=jnp.float32)
    h1 = jnp.maximum(h1 + b1_ref[...], 0.0).astype(jnp.bfloat16)     # (TB, 512)
    h2 = jnp.dot(h1, w2_ref[...], preferred_element_type=jnp.float32)
    h2 = jnp.maximum(h2 + b2_ref[...], 0.0).astype(jnp.bfloat16)     # (TB, 512)
    logits = jnp.dot(h2, w3_ref[...], preferred_element_type=jnp.float32)
    out_ref[...] = logits + b3_ref[...]                              # (TB, 128) f32


def mlp_forward(x_nchw, params, *, tb=256):
    """Wrapper: flatten NCHW input (nn.Flatten), pad to lane-aligned shapes,
    run the batch-tiled Pallas kernel, and slice back to (B, 10)."""
    w1, b1, w2, b2, w3, b3 = params
    B = x_nchw.shape[0]
    x_flat = x_nchw.reshape(B, -1).astype(jnp.float32)               # (B, 784)

    # --- pad to TPU-friendly shapes -------------------------------------
    B_pad = pl.cdiv(B, tb) * tb
    x_p = jnp.pad(x_flat, ((0, B_pad - B), (0, IN_PAD - IN_FEATURES))
                  ).astype(jnp.bfloat16)                             # (B_pad, 896)
    w1_p = jnp.pad(w1, ((0, IN_PAD - IN_FEATURES), (0, 0))).astype(jnp.bfloat16)
    w2_p = w2.astype(jnp.bfloat16)
    w3_p = jnp.pad(w3, ((0, 0), (0, OUT_PAD - OUT_FEATURES))).astype(jnp.bfloat16)
    b1_p = b1.astype(jnp.float32)
    b2_p = b2.astype(jnp.float32)
    b3_p = jnp.pad(b3, ((0, 0), (0, OUT_PAD - OUT_FEATURES))).astype(jnp.float32)

    grid = (B_pad // tb,)

    # Activations/outputs tiled over the batch; weights/biases resident
    # (constant index_map -> fetched once, reused every grid step).
    x_spec = pl.BlockSpec((tb, IN_PAD), lambda i: (i, 0))
    w1_spec = pl.BlockSpec((IN_PAD, HIDDEN), lambda i: (0, 0))
    b1_spec = pl.BlockSpec((1, HIDDEN), lambda i: (0, 0))
    w2_spec = pl.BlockSpec((HIDDEN, HIDDEN), lambda i: (0, 0))
    b2_spec = pl.BlockSpec((1, HIDDEN), lambda i: (0, 0))
    w3_spec = pl.BlockSpec((HIDDEN, OUT_PAD), lambda i: (0, 0))
    b3_spec = pl.BlockSpec((1, OUT_PAD), lambda i: (0, 0))
    out_spec = pl.BlockSpec((tb, OUT_PAD), lambda i: (i, 0))

    flops = 2 * B_pad * (IN_PAD * HIDDEN + HIDDEN * HIDDEN + HIDDEN * OUT_PAD)
    bytes_accessed = (
        x_p.size * 2
        + (w1_p.size + w2_p.size + w3_p.size) * 2
        + (b1_p.size + b2_p.size + b3_p.size) * 4
        + B_pad * OUT_PAD * 4
    )

    out_padded = pl.pallas_call(
        mlp_kernel,
        out_shape=jax.ShapeDtypeStruct((B_pad, OUT_PAD), jnp.float32),
        grid=grid,
        in_specs=[x_spec, w1_spec, b1_spec, w2_spec, b2_spec, w3_spec, b3_spec],
        out_specs=out_spec,
        compiler_params=pltpu.CompilerParams(
            dimension_semantics=("parallel",),
        ),
        cost_estimate=pl.CostEstimate(
            flops=flops, transcendentals=0, bytes_accessed=bytes_accessed),
    )(x_p, w1_p, b1_p, w2_p, b2_p, w3_p, b3_p)

    return out_padded[:B, :OUT_FEATURES]


def init_params(key):
    """Deterministic parameter init (Kaiming-uniform-ish, like torch defaults).
    Weights stored as (in_features, out_features): y = x @ W + b == x @ W_pt.T + b."""
    k1, k2, k3, k4, k5, k6 = jax.random.split(key, 6)

    def lin(kw, kb, fan_in, fan_out):
        bound = 1.0 / jnp.sqrt(fan_in)
        w = jax.random.uniform(kw, (fan_in, fan_out), jnp.float32, -bound, bound)
        b = jax.random.uniform(kb, (1, fan_out), jnp.float32, -bound, bound)
        return w, b

    w1, b1 = lin(k1, k2, IN_FEATURES, HIDDEN)
    w2, b2 = lin(k3, k4, HIDDEN, HIDDEN)
    w3, b3 = lin(k5, k6, HIDDEN, OUT_FEATURES)
    return (w1, b1, w2, b2, w3, b3)


def reference_forward(x_nchw, params):
    """Pure-JAX f32 reference for correctness check."""
    w1, b1, w2, b2, w3, b3 = params
    x = x_nchw.reshape(x_nchw.shape[0], -1).astype(jnp.float32)
    h1 = jnp.maximum(x @ w1 + b1, 0.0)
    h2 = jnp.maximum(h1 @ w2 + b2, 0.0)
    return h2 @ w3 + b3


if __name__ == "__main__":
    key = jax.random.PRNGKey(0)
    k_params, k_x = jax.random.split(key)

    params = init_params(k_params)
    # Small MNIST-like batch: (B, C, H, W) = (8, 1, 28, 28)
    x = jax.random.normal(k_x, (8, 1, 28, 28), dtype=jnp.float32)

    logits = mlp_forward(x, params)
    jax.block_until_ready(logits)

    ref = reference_forward(x, params)
    assert logits.shape == (8, OUT_FEATURES)
    # bf16 weights/activations with f32 accumulation -> looser tolerance vs f32 ref.
    assert jnp.allclose(logits, ref, atol=5e-2, rtol=5e-2), (
        float(jnp.max(jnp.abs(logits - ref))))

    print("KERNEL_OK")
</pallas_src>

<mosaic_0001>
module attributes {stable_mosaic.version = 11 : i64} {
  func.func @mlp_kernel(%arg0: i32, %arg1: memref<256x896xbf16, #tpu.memory_space<vmem>>, %arg2: memref<896x512xbf16, #tpu.memory_space<vmem>>, %arg3: memref<1x512xf32, #tpu.memory_space<vmem>>, %arg4: memref<512x512xbf16, #tpu.memory_space<vmem>>, %arg5: memref<1x512xf32, #tpu.memory_space<vmem>>, %arg6: memref<512x128xbf16, #tpu.memory_space<vmem>>, %arg7: memref<1x128xf32, #tpu.memory_space<vmem>>, %arg8: memref<256x128xf32, #tpu.memory_space<vmem>>) attributes {dimension_semantics = [#tpu.dimension_semantics<parallel>], iteration_bounds = array<i64: 1>, scalar_prefetch = 0 : i64, scratch_operands = 0 : i64, tpu.core_type = #tpu.core_type<tc>, window_params = [{transform_indices = @transform_0, window_bounds = array<i64: 256, 896>}, {pipeline_mode = #tpu.pipeline_mode<synchronous>, transform_indices = @transform_1, window_bounds = array<i64: 896, 512>}, {pipeline_mode = #tpu.pipeline_mode<synchronous>, transform_indices = @transform_2, window_bounds = array<i64: 1, 512>}, {pipeline_mode = #tpu.pipeline_mode<synchronous>, transform_indices = @transform_3, window_bounds = array<i64: 512, 512>}, {pipeline_mode = #tpu.pipeline_mode<synchronous>, transform_indices = @transform_4, window_bounds = array<i64: 1, 512>}, {pipeline_mode = #tpu.pipeline_mode<synchronous>, transform_indices = @transform_5, window_bounds = array<i64: 512, 128>}, {pipeline_mode = #tpu.pipeline_mode<synchronous>, transform_indices = @transform_6, window_bounds = array<i64: 1, 128>}, {transform_indices = @transform_7, window_bounds = array<i64: 256, 128>}]} {
    %c0 = arith.constant 0 : index
    %c0_0 = arith.constant 0 : index
    %0 = vector.load %arg1[%c0, %c0_0] : memref<256x896xbf16, #tpu.memory_space<vmem>>, vector<256x896xbf16>
    %c0_1 = arith.constant 0 : index
    %c0_2 = arith.constant 0 : index
    %1 = vector.load %arg2[%c0_1, %c0_2] : memref<896x512xbf16, #tpu.memory_space<vmem>>, vector<896x512xbf16>
    %cst = arith.constant dense<0.000000e+00> : vector<256x512xf32>
    %2 = tpu.matmul %0, %1, %cst {dimension_numbers = #tpu.dot_dimension_numbers<[1], [0], [0], [1], [0, 0, 1, 1], [], []>} : vector<256x896xbf16>, vector<896x512xbf16>, vector<256x512xf32> -> vector<256x512xf32>
    %c0_3 = arith.constant 0 : index
    %c0_4 = arith.constant 0 : index
    %3 = vector.load %arg3[%c0_3, %c0_4] : memref<1x512xf32, #tpu.memory_space<vmem>>, vector<1x512xf32>
    %4 = vector.broadcast %3 : vector<1x512xf32> to vector<256x512xf32>
    %5 = arith.addf %2, %4 : vector<256x512xf32>
    %cst_5 = arith.constant 0.000000e+00 : f32
    %6 = vector.broadcast %cst_5 : f32 to vector<256x512xf32>
    %7 = arith.maximumf %5, %6 : vector<256x512xf32>
    %8 = arith.truncf %7 : vector<256x512xf32> to vector<256x512xbf16>
    %c0_6 = arith.constant 0 : index
    %c0_7 = arith.constant 0 : index
    %9 = vector.load %arg4[%c0_6, %c0_7] : memref<512x512xbf16, #tpu.memory_space<vmem>>, vector<512x512xbf16>
    %cst_8 = arith.constant dense<0.000000e+00> : vector<256x512xf32>
    %10 = tpu.matmul %8, %9, %cst_8 {dimension_numbers = #tpu.dot_dimension_numbers<[1], [0], [0], [1], [0, 0, 1, 1], [], []>} : vector<256x512xbf16>, vector<512x512xbf16>, vector<256x512xf32> -> vector<256x512xf32>
    %c0_9 = arith.constant 0 : index
    %c0_10 = arith.constant 0 : index
    %11 = vector.load %arg5[%c0_9, %c0_10] : memref<1x512xf32, #tpu.memory_space<vmem>>, vector<1x512xf32>
    %12 = vector.broadcast %11 : vector<1x512xf32> to vector<256x512xf32>
    %13 = arith.addf %10, %12 : vector<256x512xf32>
    %cst_11 = arith.constant 0.000000e+00 : f32
    %14 = vector.broadcast %cst_11 : f32 to vector<256x512xf32>
    %15 = arith.maximumf %13, %14 : vector<256x512xf32>
    %16 = arith.truncf %15 : vector<256x512xf32> to vector<256x512xbf16>
    %c0_12 = arith.constant 0 : index
    %c0_13 = arith.constant 0 : index
    %17 = vector.load %arg6[%c0_12, %c0_13] : memref<512x128xbf16, #tpu.memory_space<vmem>>, vector<512x128xbf16>
    %cst_14 = arith.constant dense<0.000000e+00> : vector<256x128xf32>
    %18 = tpu.matmul %16, %17, %cst_14 {dimension_numbers = #tpu.dot_dimension_numbers<[1], [0], [0], [1], [0, 0, 1, 1], [], []>} : vector<256x512xbf16>, vector<512x128xbf16>, vector<256x128xf32> -> vector<256x128xf32>
    %c0_15 = arith.constant 0 : index
    %c0_16 = arith.constant 0 : index
    %19 = vector.load %arg7[%c0_15, %c0_16] : memref<1x128xf32, #tpu.memory_space<vmem>>, vector<1x128xf32>
    %20 = vector.broadcast %19 : vector<1x128xf32> to vector<256x128xf32>
    %21 = arith.addf %18, %20 : vector<256x128xf32>
    %c0_17 = arith.constant 0 : index
    %c0_18 = arith.constant 0 : index
    %22 = vector.load %arg8[%c0_17, %c0_18] : memref<256x128xf32, #tpu.memory_space<vmem>>, vector<256x128xf32>
    tpu.vector_store %arg8[%c0_17, %c0_18], %21 {strides = array<i32>} : memref<256x128xf32, #tpu.memory_space<vmem>>, vector<256x128xf32>,
    return
  }
  func.func @transform_0(%arg0: i32) -> (i32, i32) {
    %c0_i32 = arith.constant 0 : i32
    %c0_i32_0 = arith.constant 0 : i32
    return %arg0, %c0_i32 : i32, i32
  }
  func.func @transform_1(%arg0: i32) -> (i32, i32) {
    %c0_i32 = arith.constant 0 : i32
    %c0_i32_0 = arith.constant 0 : i32
    %c0_i32_1 = arith.constant 0 : i32
    return %c0_i32, %c0_i32_0 : i32, i32
  }
  func.func @transform_2(%arg0: i32) -> (i32, i32) {
    %c0_i32 = arith.constant 0 : i32
    %c0_i32_0 = arith.constant 0 : i32
    %c0_i32_1 = arith.constant 0 : i32
    return %c0_i32, %c0_i32_0 : i32, i32
  }
  func.func @transform_3(%arg0: i32) -> (i32, i32) {
    %c0_i32 = arith.constant 0 : i32
    %c0_i32_0 = arith.constant 0 : i32
    %c0_i32_1 = arith.constant 0 : i32
    return %c0_i32, %c0_i32_0 : i32, i32
  }
  func.func @transform_4(%arg0: i32) -> (i32, i32) {
    %c0_i32 = arith.constant 0 : i32
    %c0_i32_0 = arith.constant 0 : i32
    %c0_i32_1 = arith.constant 0 : i32
    return %c0_i32, %c0_i32_0 : i32, i32
  }
  func.func @transform_5(%arg0: i32) -> (i32, i32) {
    %c0_i32 = arith.constant 0 : i32
    %c0_i32_0 = arith.constant 0 : i32
    %c0_i32_1 = arith.constant 0 : i32
    return %c0_i32, %c0_i32_0 : i32, i32
  }
  func.func @transform_6(%arg0: i32) -> (i32, i32) {
    %c0_i32 = arith.constant 0 : i32
    %c0_i32_0 = arith.constant 0 : i32
    %c0_i32_1 = arith.constant 0 : i32
    return %c0_i32, %c0_i32_0 : i32, i32
  }
  func.func @transform_7(%arg0: i32) -> (i32, i32) {
    %c0_i32 = arith.constant 0 : i32
    %c0_i32_0 = arith.constant 0 : i32
    return %arg0, %c0_i32 : i32, i32
  }
}

</mosaic_0001>

<llo_original>
// kernel: tpu_custom_call.1
$region0: #{tpu_custom_call.1}
  #allocation0 [shape = 'u32[]', space=smem, size = 0x4, offset = 0x4, fixed_abs, tag = 'smem constant byte address 0x4 - core index']
  #allocation1 [shape = 'u32[144,128]{1,0:T(1,128)}', space=vmem, size = 0x12000, scoped, tag = 'internal scratch']
  %s0 = inlined_call_operand.hbm [shape: bf16[256,896], index: 0, kind: input, shape index: {}]
  %s1 = inlined_call_operand.hbm [shape: bf16[896,512], index: 1, kind: input, shape index: {}]
  %s2 = inlined_call_operand.vmem [shape: f32[1,512], index: 2, kind: input, shape index: {}]
  %s3 = inlined_call_operand.hbm [shape: bf16[512,512], index: 3, kind: input, shape index: {}]
  %s4 = inlined_call_operand.vmem [shape: f32[1,512], index: 4, kind: input, shape index: {}]
  %s5 = inlined_call_operand.hbm [shape: bf16[512,128], index: 5, kind: input, shape index: {}]
  %s6 = inlined_call_operand.vmem [shape: f32[1,128], index: 6, kind: input, shape index: {}]
  %s7 = inlined_call_operand.hbm [shape: f32[256,128], index: 7, kind: output, shape index: {}]
  %s8 = sld [smem:[#allocation0]]
  $region54: #{tpu_custom_call.1} parent=0
    _
  %s10 = ssub.s32 1, %s8
  %s11 = scalar_select 0, %s10, %s8
  $region1: #{tpu_custom_call.1} parent=0
    #allocation2 [shape = 'u8[458752]{0}', space=vmem, size = 0x70000, scoped, tag = 'input window, operand 0, single buffered']
    #allocation3 [shape = 's32[1]{0}', space=sflag, size = 0x4, scoped, tag = 'scoped memory for tpu_custom_call.1']
    #allocation4 [shape = 's32[1]{0}', space=sflag, size = 0x4, scoped, tag = 'scoped memory for tpu_custom_call.1']
    #allocation5 [shape = 'u8[917504]{0}', space=vmem, size = 0xe0000, scoped, tag = 'input window, operand 1, single buffered']
    #allocation6 [shape = 's32[1]{0}', space=sflag, size = 0x4, scoped, tag = 'scoped memory for tpu_custom_call.1']
    #allocation7 [shape = 'u8[524288]{0}', space=vmem, size = 0x80000, scoped, tag = 'input window, operand 3, single buffered']
    #allocation8 [shape = 'u8[131072]{0}', space=vmem, size = 0x20000, scoped, tag = 'input window, operand 5, single buffered']
    #allocation9 [shape = 's32[1]{0}', space=sflag, size = 0x4, scoped, tag = 'scoped memory for tpu_custom_call.1']
    #allocation10 [shape = 'u8[131072]{0}', space=vmem, size = 0x20000, scoped, tag = 'output window, operand 0, single buffered']
    %12 = vsyncpa [#allocation3], 0
    %13 = vsyncpa [#allocation6], 0
    %14 = vsyncpa [#allocation9], 0
    %15 = vsyncpa [#allocation4], 0
    // Predicated region
    $region2: #{tpu_custom_call.1} parent=1 // pred_check
      _
    $region3: #{tpu_custom_call.1} parent=1 // pred_check_branch
      %17 = sbr.rel (0) target = $region5
    $region4: #{tpu_custom_call.1} parent=1 // pred_region
      %s19 = ssub.s32 14336, 14336
      %20 = vsyncadd [#allocation3], %s19
      %s21 = sshll.u32 [#allocation2], 4
      %s22 = int_to_ptr.vmem [resolvable:$true] %s21
      %27 = dma.hbm_to_vmem [thread:$0]  %s0, 14336, %s22, [#allocation3], 448, 448, 28
    $region5: #{tpu_custom_call.1} parent=1 // pred_fallthru
      _
    // Predicated region
    $region6: #{tpu_custom_call.1} parent=1 // pred_check
      _
    $region7: #{tpu_custom_call.1} parent=1 // pred_check_branch
      %29 = sbr.rel (0) target = $region9
    $region8: #{tpu_custom_call.1} parent=1 // pred_region
      %s31 = ssub.s32 28672, 28672
      %32 = vsyncadd [#allocation6], %s31
      %s33 = sshll.u32 [#allocation5], 4
      %s34 = int_to_ptr.vmem [resolvable:$true] %s33
      %39 = dma.hbm_to_vmem [thread:$0]  %s1, 28672, %s34, [#allocation6], 256, 256, 16
    $region9: #{tpu_custom_call.1} parent=1 // pred_fallthru
      _
    // Predicated region
    $region10: #{tpu_custom_call.1} parent=1 // pred_check
      _
    $region11: #{tpu_custom_call.1} parent=1 // pred_check_branch
      %41 = sbr.rel (0) target = $region13
    $region12: #{tpu_custom_call.1} parent=1 // pred_region
      _
    $region13: #{tpu_custom_call.1} parent=1 // pred_fallthru
      _
    // Predicated region
    $region14: #{tpu_custom_call.1} parent=1 // pred_check
      _
    $region15: #{tpu_custom_call.1} parent=1 // pred_check_branch
      %43 = sbr.rel (0) target = $region17
    $region16: #{tpu_custom_call.1} parent=1 // pred_region
      %s45 = ssub.s32 16384, 16384
      %46 = vsyncadd [#allocation6], %s45
      %s47 = sshll.u32 [#allocation7], 4
      %s48 = int_to_ptr.vmem [resolvable:$true] %s47
      %53 = dma.hbm_to_vmem [thread:$0]  %s3, 16384, %s48, [#allocation6], 256, 256, 16
    $region17: #{tpu_custom_call.1} parent=1 // pred_fallthru
      _
    // Predicated region
    $region18: #{tpu_custom_call.1} parent=1 // pred_check
      _
    $region19: #{tpu_custom_call.1} parent=1 // pred_check_branch
      %55 = sbr.rel (0) target = $region21
    $region20: #{tpu_custom_call.1} parent=1 // pred_region
      _
    $region21: #{tpu_custom_call.1} parent=1 // pred_fallthru
      _
    // Predicated region
    $region22: #{tpu_custom_call.1} parent=1 // pred_check
      _
    $region23: #{tpu_custom_call.1} parent=1 // pred_check_branch
      %57 = sbr.rel (0) target = $region25
    $region24: #{tpu_custom_call.1} parent=1 // pred_region
      %s59 = ssub.s32 4096, 4096
      %60 = vsyncadd [#allocation9], %s59
      %s61 = sshll.u32 [#allocation8], 4
      %s62 = int_to_ptr.vmem [resolvable:$true] %s61
      %67 = dma.hbm_to_vmem [thread:$0]  %s5, 4096, %s62, [#allocation9], 64, 64, 4
    $region25: #{tpu_custom_call.1} parent=1 // pred_fallthru
      _
    // Predicated region
    $region26: #{tpu_custom_call.1} parent=1 // pred_check
      _
    $region27: #{tpu_custom_call.1} parent=1 // pred_check_branch
      %69 = sbr.rel (0) target = $region29
    $region28: #{tpu_custom_call.1} parent=1 // pred_region
      _
    $region29: #{tpu_custom_call.1} parent=1 // pred_fallthru
      _
    // Predicated region
    $region30: #{tpu_custom_call.1} parent=1 // pred_check
      _
    $region31: #{tpu_custom_call.1} parent=1 // pred_check_branch
      %71 = sbr.rel (0) target = $region33
    $region32: #{tpu_custom_call.1} parent=1 // pred_region
      %72 = dma.done [#allocation3], 14336
    $region33: #{tpu_custom_call.1} parent=1 // pred_fallthru
      _
    // Predicated region
    $region34: #{tpu_custom_call.1} parent=1 // pred_check
      _
    $region35: #{tpu_custom_call.1} parent=1 // pred_check_branch
      %74 = sbr.rel (0) target = $region37
    $region36: #{tpu_custom_call.1} parent=1 // pred_region
      %75 = dma.done [#allocation6], 28672
    $region37: #{tpu_custom_call.1} parent=1 // pred_fallthru
      _
    // Predicated region
    $region38: #{tpu_custom_call.1} parent=1 // pred_check
      _
    $region39: #{tpu_custom_call.1} parent=1 // pred_check_branch
      %77 = sbr.rel (0) target = $region41
    $region40: #{tpu_custom_call.1} parent=1 // pred_region
      %78 = dma.done [#allocation6], 16384
    $region41: #{tpu_custom_call.1} parent=1 // pred_fallthru
      _
    // Predicated region
    $region42: #{tpu_custom_call.1} parent=1 // pred_check
      _
    $region43: #{tpu_custom_call.1} parent=1 // pred_check_branch
      %80 = sbr.rel (0) target = $region45
    $region44: #{tpu_custom_call.1} parent=1 // pred_region
      %81 = dma.done [#allocation9], 4096
    $region45: #{tpu_custom_call.1} parent=1 // pred_fallthru
      _
    %v83 = vld [vmem:[#allocation2] sm:$0xff]
    %v84 = vld [vmem:[#allocation2 + $0x8] sm:$0xff]
    %v85 = vld [vmem:[#allocation2 + $0x10] sm:$0xff]
    %v86 = vld [vmem:[#allocation2 + $0x18] sm:$0xf]
    %v87 = vld [vmem:[#allocation2 + $0x1c] sm:$0xff]
    %v88 = vld [vmem:[#allocation2 + $0x24] sm:$0xff]
    %v89 = vld [vmem:[#allocation2 + $0x2c] sm:$0xff]
    %v90 = vld [vmem:[#allocation2 + $0x34] sm:$0xf]
    %v91 = vld [vmem:[#allocation2 + $0x38] sm:$0xff]
    %v92 = vld [vmem:[#allocation2 + $0x40] sm:$0xff]
    %v93 = vld [vmem:[#allocation2 + $0x48] sm:$0xff]
    %v94 = vld [vmem:[#allocation2 + $0x50] sm:$0xf]
    %v95 = vld [vmem:[#allocation2 + $0x54] sm:$0xff]
    %v96 = vld [vmem:[#allocation2 + $0x5c] sm:$0xff]
    %v97 = vld [vmem:[#allocation2 + $0x64] sm:$0xff]
    %v98 = vld [vmem:[#allocation2 + $0x6c] sm:$0xf]
    %v99 = vld [vmem:[#allocation2 + $0x70] sm:$0xff]
    %v100 = vld [vmem:[#allocation2 + $0x78] sm:$0xff]
    %v101 = vld [vmem:[#allocation2 + $0x80] sm:$0xff]
    %v102 = vld [vmem:[#allocation2 + $0x88] sm:$0xf]
    %v103 = vld [vmem:[#allocation2 + $0x8c] sm:$0xff]
    %v104 = vld [vmem:[#allocation2 + $0x94] sm:$0xff]
    %v105 = vld [vmem:[#allocation2 + $0x9c] sm:$0xff]
    %v106 = vld [vmem:[#allocation2 + $0xa4] sm:$0xf]
    %v107 = vld [vmem:[#allocation2 + $0xa8] sm:$0xff]
    %v108 = vld [vmem:[#allocation2 + $0xb0] sm:$0xff]
    %v109 = vld [vmem:[#allocation2 + $0xb8] sm:$0xff]
    %v110 = vld [vmem:[#allocation2 + $0xc0] sm:$0xf]
    %v111 = vld [vmem:[#allocation2 + $0xc4] sm:$0xff]
    %v112 = vld [vmem:[#allocation2 + $0xcc] sm:$0xff]
    %v113 = vld [vmem:[#allocation2 + $0xd4] sm:$0xff]
    %v114 = vld [vmem:[#allocation2 + $0xdc] sm:$0xf]
    %v115 = vld [vmem:[#allocation2 + $0xe0] sm:$0xff]
    %v116 = vld [vmem:[#allocation2 + $0xe8] sm:$0xff]
    %v117 = vld [vmem:[#allocation2 + $0xf0] sm:$0xff]
    %v118 = vld [vmem:[#allocation2 + $0xf8] sm:$0xf]
    %v119 = vld [vmem:[#allocation2 + $0xfc] sm:$0xff]
    %v120 = vld [vmem:[#allocation2 + $0x104] sm:$0xff]
    %v121 = vld [vmem:[#allocation2 + $0x10c] sm:$0xff]
    %v122 = vld [vmem:[#allocation2 + $0x114] sm:$0xf]
    %v123 = vld [vmem:[#allocation2 + $0x118] sm:$0xff]
    %v124 = vld [vmem:[#allocation2 + $0x120] sm:$0xff]
    %v125 = vld [vmem:[#allocation2 + $0x128] sm:$0xff]
    %v126 = vld [vmem:[#allocation2 + $0x130] sm:$0xf]
    %v127 = vld [vmem:[#allocation2 + $0x134] sm:$0xff]
    %v128 = vld [vmem:[#allocation2 + $0x13c] sm:$0xff]
    %v129 = vld [vmem:[#allocation2 + $0x144] sm:$0xff]
    %v130 = vld [vmem:[#allocation2 + $0x14c] sm:$0xf]
    %v131 = vld [vmem:[#allocation2 + $0x150] sm:$0xff]
    %v132 = vld [vmem:[#allocation2 + $0x158] sm:$0xff]
    %v133 = vld [vmem:[#allocation2 + $0x160] sm:$0xff]
    %v134 = vld [vmem:[#allocation2 + $0x168] sm:$0xf]
    %v135 = vld [vmem:[#allocation2 + $0x16c] sm:$0xff]
    %v136 = vld [vmem:[#allocation2 + $0x174] sm:$0xff]
    %v137 = vld [vmem:[#allocation2 + $0x17c] sm:$0xff]
    %v138 = vld [vmem:[#allocation2 + $0x184] sm:$0xf]
    %v139 = vld [vmem:[#allocation2 + $0x188] sm:$0xff]
    %v140 = vld [vmem:[#allocation2 + $0x190] sm:$0xff]
    %v141 = vld [vmem:[#allocation2 + $0x198] sm:$0xff]
    %v142 = vld [vmem:[#allocation2 + $0x1a0] sm:$0xf]
    %v143 = vld [vmem:[#allocation2 + $0x1a4] sm:$0xff]
    %v144 = vld [vmem:[#allocation2 + $0x1ac] sm:$0xff]
    %v145 = vld [vmem:[#allocation2 + $0x1b4] sm:$0xff]
    %v146 = vld [vmem:[#allocation2 + $0x1bc] sm:$0xf]
    %v147 = vld [vmem:[#allocation2 + $0x1c0] sm:$0xff]
    %v148 = vld [vmem:[#allocation2 + $0x1c8] sm:$0xff]
    %v149 = vld [vmem:[#allocation2 + $0x1d0] sm:$0xff]
    %v150 = vld [vmem:[#allocation2 + $0x1d8] sm:$0xf]
    %v151 = vld [vmem:[#allocation2 + $0x1dc] sm:$0xff]
    %v152 = vld [vmem:[#allocation2 + $0x1e4] sm:$0xff]
    %v153 = vld [vmem:[#allocation2 + $0x1ec] sm:$0xff]
    %v154 = vld [vmem:[#allocation2 + $0x1f4] sm:$0xf]
    %v155 = vld [vmem:[#allocation2 + $0x1f8] sm:$0xff]
    %v156 = vld [vmem:[#allocation2 + $0x200] sm:$0xff]
    %v157 = vld [vmem:[#allocation2 + $0x208] sm:$0xff]
    %v158 = vld [vmem:[#allocation2 + $0x210] sm:$0xf]
    %v159 = vld [vmem:[#allocation2 + $0x214] sm:$0xff]
    %v160 = vld [vmem:[#allocation2 + $0x21c] sm:$0xff]
    %v161 = vld [vmem:[#allocation2 + $0x224] sm:$0xff]
    %v162 = vld [vmem:[#allocation2 + $0x22c] sm:$0xf]
    %v163 = vld [vmem:[#allocation2 + $0x230] sm:$0xff]
    %v164 = vld [vmem:[#allocation2 + $0x238] sm:$0xff]
    %v165 = vld [vmem:[#allocation2 + $0x240] sm:$0xff]
    %v166 = vld [vmem:[#allocation2 + $0x248] sm:$0xf]
    %v167 = vld [vmem:[#allocation2 + $0x24c] sm:$0xff]
    %v168 = vld [vmem:[#allocation2 + $0x254] sm:$0xff]
    %v169 = vld [vmem:[#allocation2 + $0x25c] sm:$0xff]
    %v170 = vld [vmem:[#allocation2 + $0x264] sm:$0xf]
    %v171 = vld [vmem:[#allocation2 + $0x268] sm:$0xff]
    %v172 = vld [vmem:[#allocation2 + $0x270] sm:$0xff]
    %v173 = vld [vmem:[#allocation2 + $0x278] sm:$0xff]
    %v174 = vld [vmem:[#allocation2 + $0x280] sm:$0xf]
    %v175 = vld [vmem:[#allocation2 + $0x284] sm:$0xff]
    %v176 = vld [vmem:[#allocation2 + $0x28c] sm:$0xff]
    %v177 = vld [vmem:[#allocation2 + $0x294] sm:$0xff]
    %v178 = vld [vmem:[#allocation2 + $0x29c] sm:$0xf]
    %v179 = vld [vmem:[#allocation2 + $0x2a0] sm:$0xff]
    %v180 = vld [vmem:[#allocation2 + $0x2a8] sm:$0xff]
    %v181 = vld [vmem:[#allocation2 + $0x2b0] sm:$0xff]
    %v182 = vld [vmem:[#allocation2 + $0x2b8] sm:$0xf]
    %v183 = vld [vmem:[#allocation2 + $0x2bc] sm:$0xff]
    %v184 = vld [vmem:[#allocation2 + $0x2c4] sm:$0xff]
    %v185 = vld [vmem:[#allocation2 + $0x2cc] sm:$0xff]
    %v186 = vld [vmem:[#allocation2 + $0x2d4] sm:$0xf]
    %v187 = vld [vmem:[#allocation2 + $0x2d8] sm:$0xff]
    %v188 = vld [vmem:[#allocation2 + $0x2e0] sm:$0xff]
    %v189 = vld [vmem:[#allocation2 + $0x2e8] sm:$0xff]
    %v190 = vld [vmem:[#allocation2 + $0x2f0] sm:$0xf]
    %v191 = vld [vmem:[#allocation2 + $0x2f4] sm:$0xff]
    %v192 = vld [vmem:[#allocation2 + $0x2fc] sm:$0xff]
    %v193 = vld [vmem:[#allocation2 + $0x304] sm:$0xff]
    %v194 = vld [vmem:[#allocation2 + $0x30c] sm:$0xf]
    %v195 = vld [vmem:[#allocation2 + $0x310] sm:$0xff]
    %v196 = vld [vmem:[#allocation2 + $0x318] sm:$0xff]
    %v197 = vld [vmem:[#allocation2 + $0x320] sm:$0xff]
    %v198 = vld [vmem:[#allocation2 + $0x328] sm:$0xf]
    %v199 = vld [vmem:[#allocation2 + $0x32c] sm:$0xff]
    %v200 = vld [vmem:[#allocation2 + $0x334] sm:$0xff]
    %v201 = vld [vmem:[#allocation2 + $0x33c] sm:$0xff]
    %v202 = vld [vmem:[#allocation2 + $0x344] sm:$0xf]
    %v203 = vld [vmem:[#allocation2 + $0x348] sm:$0xff]
    %v204 = vld [vmem:[#allocation2 + $0x350] sm:$0xff]
    %v205 = vld [vmem:[#allocation2 + $0x358] sm:$0xff]
    %v206 = vld [vmem:[#allocation2 + $0x360] sm:$0xf]
    %v207 = vld [vmem:[#allocation2 + $0x364] sm:$0xff]
    %v208 = vld [vmem:[#allocation2 + $0x36c] sm:$0xff]
    %v209 = vld [vmem:[#allocation2 + $0x374] sm:$0xff]
    %v210 = vld [vmem:[#allocation2 + $0x37c] sm:$0xf]
    %v211 = vld [vmem:[#allocation5] sm:$0xff]
    %v212 = vld [vmem:[#allocation5 + $0x8] sm:$0xff]
    %v213 = vld [vmem:[#allocation5 + $0x10] sm:$0xff]
    %v214 = vld [vmem:[#allocation5 + $0x18] sm:$0xff]
    %v215 = vld [vmem:[#allocation5 + $0x20] sm:$0xff]
    %v216 = vld [vmem:[#allocation5 + $0x28] sm:$0xff]
    %v217 = vld [vmem:[#allocation5 + $0x30] sm:$0xff]
    %v218 = vld [vmem:[#allocation5 + $0x38] sm:$0xff]
    %v219 = vld [vmem:[#allocation5 + $0x40] sm:$0xff]
    %v220 = vld [vmem:[#allocation5 + $0x48] sm:$0xff]
    %v221 = vld [vmem:[#allocation5 + $0x50] sm:$0xff]
    %v222 = vld [vmem:[#allocation5 + $0x58] sm:$0xff]
    %v223 = vld [vmem:[#allocation5 + $0x60] sm:$0xff]
    %v224 = vld [vmem:[#allocation5 + $0x68] sm:$0xff]
    %v225 = vld [vmem:[#allocation5 + $0x70] sm:$0xff]
    %v226 = vld [vmem:[#allocation5 + $0x78] sm:$0xff]
    %v227 = vld [vmem:[#allocation5 + $0x80] sm:$0xff]
    %v228 = vld [vmem:[#allocation5 + $0x88] sm:$0xff]
    %v229 = vld [vmem:[#allocation5 + $0x90] sm:$0xff]
    %v230 = vld [vmem:[#allocation5 + $0x98] sm:$0xff]
    %v231 = vld [vmem:[#allocation5 + $0xa0] sm:$0xff]
    %v232 = vld [vmem:[#allocation5 + $0xa8] sm:$0xff]
    %v233 = vld [vmem:[#allocation5 + $0xb0] sm:$0xff]
    %v234 = vld [vmem:[#allocation5 + $0xb8] sm:$0xff]
    %v235 = vld [vmem:[#allocation5 + $0xc0] sm:$0xff]
    %v236 = vld [vmem:[#allocation5 + $0xc8] sm:$0xff]
    %v237 = vld [vmem:[#allocation5 + $0xd0] sm:$0xff]
    %v238 = vld [vmem:[#allocation5 + $0xd8] sm:$0xff]
    %v239 = vld [vmem:[#allocation5 + $0xe0] sm:$0xff]
    %v240 = vld [vmem:[#allocation5 + $0xe8] sm:$0xff]
    %v241 = vld [vmem:[#allocation5 + $0xf0] sm:$0xff]
    %v242 = vld [vmem:[#allocation5 + $0xf8] sm:$0xff]
    %v243 = vld [vmem:[#allocation5 + $0x100] sm:$0xff]
    %v244 = vld [vmem:[#allocation5 + $0x108] sm:$0xff]
    %v245 = vld [vmem:[#allocation5 + $0x110] sm:$0xff]
    %v246 = vld [vmem:[#allocation5 + $0x118] sm:$0xff]
    %v247 = vld [vmem:[#allocation5 + $0x120] sm:$0xff]
    %v248 = vld [vmem:[#allocation5 + $0x128] sm:$0xff]
    %v249 = vld [vmem:[#allocation5 + $0x130] sm:$0xff]
    %v250 = vld [vmem:[#allocation5 + $0x138] sm:$0xff]
    %v251 = vld [vmem:[#allocation5 + $0x140] sm:$0xff]
    %v252 = vld [vmem:[#allocation5 + $0x148] sm:$0xff]
    %v253 = vld [vmem:[#allocation5 + $0x150] sm:$0xff]
    %v254 = vld [vmem:[#allocation5 + $0x158] sm:$0xff]
    %v255 = vld [vmem:[#allocation5 + $0x160] sm:$0xff]
    %v256 = vld [vmem:[#allocation5 + $0x168] sm:$0xff]
    %v257 = vld [vmem:[#allocation5 + $0x170] sm:$0xff]
    %v258 = vld [vmem:[#allocation5 + $0x178] sm:$0xff]
    %v259 = vld [vmem:[#allocation5 + $0x180] sm:$0xff]
    %v260 = vld [vmem:[#allocation5 + $0x188] sm:$0xff]
    %v261 = vld [vmem:[#allocation5 + $0x190] sm:$0xff]
    %v262 = vld [vmem:[#allocation5 + $0x198] sm:$0xff]
    %v263 = vld [vmem:[#allocation5 + $0x1a0] sm:$0xff]
    %v264 = vld [vmem:[#allocation5 + $0x1a8] sm:$0xff]
    %v265 = vld [vmem:[#allocation5 + $0x1b0] sm:$0xff]
    %v266 = vld [vmem:[#allocation5 + $0x1b8] sm:$0xff]
    %v267 = vld [vmem:[#allocation5 + $0x1c0] sm:$0xff]
    %v268 = vld [vmem:[#allocation5 + $0x1c8] sm:$0xff]
    %v269 = vld [vmem:[#allocation5 + $0x1d0] sm:$0xff]
    %v270 = vld [vmem:[#allocation5 + $0x1d8] sm:$0xff]
    %v271 = vld [vmem:[#allocation5 + $0x1e0] sm:$0xff]
    %v272 = vld [vmem:[#allocation5 + $0x1e8] sm:$0xff]
    %v273 = vld [vmem:[#allocation5 + $0x1f0] sm:$0xff]
    %v274 = vld [vmem:[#allocation5 + $0x1f8] sm:$0xff]
    %v275 = vld [vmem:[#allocation5 + $0x200] sm:$0xff]
    %v276 = vld [vmem:[#allocation5 + $0x208] sm:$0xff]
    %v277 = vld [vmem:[#allocation5 + $0x210] sm:$0xff]
    %v278 = vld [vmem:[#allocation5 + $0x218] sm:$0xff]
    %v279 = vld [vmem:[#allocation5 + $0x220] sm:$0xff]
    %v280 = vld [vmem:[#allocation5 + $0x228] sm:$0xff]
    %v281 = vld [vmem:[#allocation5 + $0x230] sm:$0xff]
    %v282 = vld [vmem:[#allocation5 + $0x238] sm:$0xff]
    %v283 = vld [vmem:[#allocation5 + $0x240] sm:$0xff]
    %v284 = vld [vmem:[#allocation5 + $0x248] sm:$0xff]
    %v285 = vld [vmem:[#allocation5 + $0x250] sm:$0xff]
    %v286 = vld [vmem:[#allocation5 + $0x258] sm:$0xff]
    %v287 = vld [vmem:[#allocation5 + $0x260] sm:$0xff]
    %v288 = vld [vmem:[#allocation5 + $0x268] sm:$0xff]
    %v289 = vld [vmem:[#allocation5 + $0x270] sm:$0xff]
    %v290 = vld [vmem:[#allocation5 + $0x278] sm:$0xff]
    %v291 = vld [vmem:[#allocation5 + $0x280] sm:$0xff]
    %v292 = vld [vmem:[#allocation5 + $0x288] sm:$0xff]
    %v293 = vld [vmem:[#allocation5 + $0x290] sm:$0xff]
    %v294 = vld [vmem:[#allocation5 + $0x298] sm:$0xff]
    %v295 = vld [vmem:[#allocation5 + $0x2a0] sm:$0xff]
    %v296 = vld [vmem:[#allocation5 + $0x2a8] sm:$0xff]
    %v297 = vld [vmem:[#allocation5 + $0x2b0] sm:$0xff]
    %v298 = vld [vmem:[#allocation5 + $0x2b8] sm:$0xff]
    %v299 = vld [vmem:[#allocation5 + $0x2c0] sm:$0xff]
    %v300 = vld [vmem:[#allocation5 + $0x2c8] sm:$0xff]
    %v301 = vld [vmem:[#allocation5 + $0x2d0] sm:$0xff]
    %v302 = vld [vmem:[#allocation5 + $0x2d8] sm:$0xff]
    %v303 = vld [vmem:[#allocation5 + $0x2e0] sm:$0xff]
    %v304 = vld [vmem:[#allocation5 + $0x2e8] sm:$0xff]
    %v305 = vld [vmem:[#allocation5 + $0x2f0] sm:$0xff]
    %v306 = vld [vmem:[#allocation5 + $0x2f8] sm:$0xff]
    %v307 = vld [vmem:[#allocation5 + $0x300] sm:$0xff]
    %v308 = vld [vmem:[#allocation5 + $0x308] sm:$0xff]
    %v309 = vld [vmem:[#allocation5 + $0x310] sm:$0xff]
    %v310 = vld [vmem:[#allocation5 + $0x318] sm:$0xff]
    %v311 = vld [vmem:[#allocation5 + $0x320] sm:$0xff]
    %v312 = vld [vmem:[#allocation5 + $0x328] sm:$0xff]
    %v313 = vld [vmem:[#allocation5 + $0x330] sm:$0xff]
    %v314 = vld [vmem:[#allocation5 + $0x338] sm:$0xff]
    %v315 = vld [vmem:[#allocation5 + $0x340] sm:$0xff]
    %v316 = vld [vmem:[#allocation5 + $0x348] sm:$0xff]
    %v317 = vld [vmem:[#allocation5 + $0x350] sm:$0xff]
    %v318 = vld [vmem:[#allocation5 + $0x358] sm:$0xff]
    %v319 = vld [vmem:[#allocation5 + $0x360] sm:$0xff]
    %v320 = vld [vmem:[#allocation5 + $0x368] sm:$0xff]
    %v321 = vld [vmem:[#allocation5 + $0x370] sm:$0xff]
    %v322 = vld [vmem:[#allocation5 + $0x378] sm:$0xff]
    %v323 = vld [vmem:[#allocation5 + $0x380] sm:$0xff]
    %v324 = vld [vmem:[#allocation5 + $0x388] sm:$0xff]
    %v325 = vld [vmem:[#allocation5 + $0x390] sm:$0xff]
    %v326 = vld [vmem:[#allocation5 + $0x398] sm:$0xff]
    %v327 = vld [vmem:[#allocation5 + $0x3a0] sm:$0xff]
    %v328 = vld [vmem:[#allocation5 + $0x3a8] sm:$0xff]
    %v329 = vld [vmem:[#allocation5 + $0x3b0] sm:$0xff]
    %v330 = vld [vmem:[#allocation5 + $0x3b8] sm:$0xff]
    %v331 = vld [vmem:[#allocation5 + $0x3c0] sm:$0xff]
    %v332 = vld [vmem:[#allocation5 + $0x3c8] sm:$0xff]
    %v333 = vld [vmem:[#allocation5 + $0x3d0] sm:$0xff]
    %v334 = vld [vmem:[#allocation5 + $0x3d8] sm:$0xff]
    %v335 = vld [vmem:[#allocation5 + $0x3e0] sm:$0xff]
    %v336 = vld [vmem:[#allocation5 + $0x3e8] sm:$0xff]
    %v337 = vld [vmem:[#allocation5 + $0x3f0] sm:$0xff]
    %v338 = vld [vmem:[#allocation5 + $0x3f8] sm:$0xff]
    %v339 = vld [vmem:[#allocation5 + $0x400] sm:$0xff]
    %v340 = vld [vmem:[#allocation5 + $0x408] sm:$0xff]
    %v341 = vld [vmem:[#allocation5 + $0x410] sm:$0xff]
    %v342 = vld [vmem:[#allocation5 + $0x418] sm:$0xff]
    %v343 = vld [vmem:[#allocation5 + $0x420] sm:$0xff]
    %v344 = vld [vmem:[#allocation5 + $0x428] sm:$0xff]
    %v345 = vld [vmem:[#allocation5 + $0x430] sm:$0xff]
    %v346 = vld [vmem:[#allocation5 + $0x438] sm:$0xff]
    %v347 = vld [vmem:[#allocation5 + $0x440] sm:$0xff]
    %v348 = vld [vmem:[#allocation5 + $0x448] sm:$0xff]
    %v349 = vld [vmem:[#allocation5 + $0x450] sm:$0xff]
    %v350 = vld [vmem:[#allocation5 + $0x458] sm:$0xff]
    %v351 = vld [vmem:[#allocation5 + $0x460] sm:$0xff]
    %v352 = vld [vmem:[#allocation5 + $0x468] sm:$0xff]
    %v353 = vld [vmem:[#allocation5 + $0x470] sm:$0xff]
    %v354 = vld [vmem:[#allocation5 + $0x478] sm:$0xff]
    %v355 = vld [vmem:[#allocation5 + $0x480] sm:$0xff]
    %v356 = vld [vmem:[#allocation5 + $0x488] sm:$0xff]
    %v357 = vld [vmem:[#allocation5 + $0x490] sm:$0xff]
    %v358 = vld [vmem:[#allocation5 + $0x498] sm:$0xff]
    %v359 = vld [vmem:[#allocation5 + $0x4a0] sm:$0xff]
    %v360 = vld [vmem:[#allocation5 + $0x4a8] sm:$0xff]
    %v361 = vld [vmem:[#allocation5 + $0x4b0] sm:$0xff]
    %v362 = vld [vmem:[#allocation5 + $0x4b8] sm:$0xff]
    %v363 = vld [vmem:[#allocation5 + $0x4c0] sm:$0xff]
    %v364 = vld [vmem:[#allocation5 + $0x4c8] sm:$0xff]
    %v365 = vld [vmem:[#allocation5 + $0x4d0] sm:$0xff]
    %v366 = vld [vmem:[#allocation5 + $0x4d8] sm:$0xff]
    %v367 = vld [vmem:[#allocation5 + $0x4e0] sm:$0xff]
    %v368 = vld [vmem:[#allocation5 + $0x4e8] sm:$0xff]
    %v369 = vld [vmem:[#allocation5 + $0x4f0] sm:$0xff]
    %v370 = vld [vmem:[#allocation5 + $0x4f8] sm:$0xff]
    %v371 = vld [vmem:[#allocation5 + $0x500] sm:$0xff]
    %v372 = vld [vmem:[#allocation5 + $0x508] sm:$0xff]
    %v373 = vld [vmem:[#allocation5 + $0x510] sm:$0xff]
    %v374 = vld [vmem:[#allocation5 + $0x518] sm:$0xff]
    %v375 = vld [vmem:[#allocation5 + $0x520] sm:$0xff]
    %v376 = vld [vmem:[#allocation5 + $0x528] sm:$0xff]
    %v377 = vld [vmem:[#allocation5 + $0x530] sm:$0xff]
    %v378 = vld [vmem:[#allocation5 + $0x538] sm:$0xff]
    %v379 = vld [vmem:[#allocation5 + $0x540] sm:$0xff]
    %v380 = vld [vmem:[#allocation5 + $0x548] sm:$0xff]
    %v381 = vld [vmem:[#allocation5 + $0x550] sm:$0xff]
    %v382 = vld [vmem:[#allocation5 + $0x558] sm:$0xff]
    %v383 = vld [vmem:[#allocation5 + $0x560] sm:$0xff]
    %v384 = vld [vmem:[#allocation5 + $0x568] sm:$0xff]
    %v385 = vld [vmem:[#allocation5 + $0x570] sm:$0xff]
    %v386 = vld [vmem:[#allocation5 + $0x578] sm:$0xff]
    %v387 = vld [vmem:[#allocation5 + $0x580] sm:$0xff]
    %v388 = vld [vmem:[#allocation5 + $0x588] sm:$0xff]
    %v389 = vld [vmem:[#allocation5 + $0x590] sm:$0xff]
    %v390 = vld [vmem:[#allocation5 + $0x598] sm:$0xff]
    %v391 = vld [vmem:[#allocation5 + $0x5a0] sm:$0xff]
    %v392 = vld [vmem:[#allocation5 + $0x5a8] sm:$0xff]
    %v393 = vld [vmem:[#allocation5 + $0x5b0] sm:$0xff]
    %v394 = vld [vmem:[#allocation5 + $0x5b8] sm:$0xff]
    %v395 = vld [vmem:[#allocation5 + $0x5c0] sm:$0xff]
    %v396 = vld [vmem:[#allocation5 + $0x5c8] sm:$0xff]
    %v397 = vld [vmem:[#allocation5 + $0x5d0] sm:$0xff]
    %v398 = vld [vmem:[#allocation5 + $0x5d8] sm:$0xff]
    %v399 = vld [vmem:[#allocation5 + $0x5e0] sm:$0xff]
    %v400 = vld [vmem:[#allocation5 + $0x5e8] sm:$0xff]
    %v401 = vld [vmem:[#allocation5 + $0x5f0] sm:$0xff]
    %v402 = vld [vmem:[#allocation5 + $0x5f8] sm:$0xff]
    %v403 = vld [vmem:[#allocation5 + $0x600] sm:$0xff]
    %v404 = vld [vmem:[#allocation5 + $0x608] sm:$0xff]
    %v405 = vld [vmem:[#allocation5 + $0x610] sm:$0xff]
    %v406 = vld [vmem:[#allocation5 + $0x618] sm:$0xff]
    %v407 = vld [vmem:[#allocation5 + $0x620] sm:$0xff]
    %v408 = vld [vmem:[#allocation5 + $0x628] sm:$0xff]
    %v409 = vld [vmem:[#allocation5 + $0x630] sm:$0xff]
    %v410 = vld [vmem:[#allocation5 + $0x638] sm:$0xff]
    %v411 = vld [vmem:[#allocation5 + $0x640] sm:$0xff]
    %v412 = vld [vmem:[#allocation5 + $0x648] sm:$0xff]
    %v413 = vld [vmem:[#allocation5 + $0x650] sm:$0xff]
    %v414 = vld [vmem:[#allocation5 + $0x658] sm:$0xff]
    %v415 = vld [vmem:[#allocation5 + $0x660] sm:$0xff]
    %v416 = vld [vmem:[#allocation5 + $0x668] sm:$0xff]
    %v417 = vld [vmem:[#allocation5 + $0x670] sm:$0xff]
    %v418 = vld [vmem:[#allocation5 + $0x678] sm:$0xff]
    %v419 = vld [vmem:[#allocation5 + $0x680] sm:$0xff]
    %v420 = vld [vmem:[#allocation5 + $0x688] sm:$0xff]
    %v421 = vld [vmem:[#allocation5 + $0x690] sm:$0xff]
    %v422 = vld [vmem:[#allocation5 + $0x698] sm:$0xff]
    %v423 = vld [vmem:[#allocation5 + $0x6a0] sm:$0xff]
    %v424 = vld [vmem:[#allocation5 + $0x6a8] sm:$0xff]
    %v425 = vld [vmem:[#allocation5 + $0x6b0] sm:$0xff]
    %v426 = vld [vmem:[#allocation5 + $0x6b8] sm:$0xff]
    %v427 = vld [vmem:[#allocation5 + $0x6c0] sm:$0xff]
    %v428 = vld [vmem:[#allocation5 + $0x6c8] sm:$0xff]
    %v429 = vld [vmem:[#allocation5 + $0x6d0] sm:$0xff]
    %v430 = vld [vmem:[#allocation5 + $0x6d8] sm:$0xff]
    %v431 = vld [vmem:[#allocation5 + $0x6e0] sm:$0xff]
    %v432 = vld [vmem:[#allocation5 + $0x6e8] sm:$0xff]
    %v433 = vld [vmem:[#allocation5 + $0x6f0] sm:$0xff]
    %v434 = vld [vmem:[#allocation5 + $0x6f8] sm:$0xff]
    %v435 = vld [vmem:[%s2] sm:$0xf]
    %v437 = vlaneseq
    %v438 = vshrl.u32 %v437, 7
    %v439 = vsub.s32 0, %v438
    %v440 = vrot.slane %v435, %v439
    %v441 = vlaneseq
    %v442 = vshrl.u32 %v441, 7
    %v443 = vsub.s32 1, %v442
    %v444 = vrot.slane %v435, %v443
    %v445 = vlaneseq
    %v446 = vshrl.u32 %v445, 7
    %v447 = vsub.s32 2, %v446
    %v448 = vrot.slane %v435, %v447
    %v449 = vlaneseq
    %v450 = vshrl.u32 %v449, 7
    %v451 = vsub.s32 3, %v450
    %v452 = vrot.slane %v435, %v451
    %v585 = vunpack.c.l.b16 %v83
    %v586 = vunpack.c.h.b16 %v83
    %v587 = vunpack.c.l.b16 %v84
    %v588 = vunpack.c.h.b16 %v84
    %v589 = vunpack.c.l.b16 %v85
    %v590 = vunpack.c.h.b16 %v85
    %v591 = vunpack.c.l.b16 %v86
    %v592 = vunpack.c.l.b16 %v87
    %v593 = vunpack.c.h.b16 %v87
    %v594 = vunpack.c.l.b16 %v88
    %v595 = vunpack.c.h.b16 %v88
    %v596 = vunpack.c.l.b16 %v89
    %v597 = vunpack.c.h.b16 %v89
    %v598 = vunpack.c.l.b16 %v90
    %v599 = vunpack.c.l.b16 %v91
    %v600 = vunpack.c.h.b16 %v91
    %v601 = vunpack.c.l.b16 %v92
    %v602 = vunpack.c.h.b16 %v92
    %v603 = vunpack.c.l.b16 %v93
    %v604 = vunpack.c.h.b16 %v93
    %v605 = vunpack.c.l.b16 %v94
    %v606 = vunpack.c.l.b16 %v95
    %v607 = vunpack.c.h.b16 %v95
    %v608 = vunpack.c.l.b16 %v96
    %v609 = vunpack.c.h.b16 %v96
    %v610 = vunpack.c.l.b16 %v97
    %v611 = vunpack.c.h.b16 %v97
    %v612 = vunpack.c.l.b16 %v98
    %v613 = vunpack.c.l.b16 %v99
    %v614 = vunpack.c.h.b16 %v99
    %v615 = vunpack.c.l.b16 %v100
    %v616 = vunpack.c.h.b16 %v100
    %v617 = vunpack.c.l.b16 %v101
    %v618 = vunpack.c.h.b16 %v101
    %v619 = vunpack.c.l.b16 %v102
    %v620 = vunpack.c.l.b16 %v103
    %v621 = vunpack.c.h.b16 %v103
    %v622 = vunpack.c.l.b16 %v104
    %v623 = vunpack.c.h.b16 %v104
    %v624 = vunpack.c.l.b16 %v105
    %v625 = vunpack.c.h.b16 %v105
    %v626 = vunpack.c.l.b16 %v106
    %v627 = vunpack.c.l.b16 %v107
    %v628 = vunpack.c.h.b16 %v107
    %v629 = vunpack.c.l.b16 %v108
    %v630 = vunpack.c.h.b16 %v108
    %v631 = vunpack.c.l.b16 %v109
    %v632 = vunpack.c.h.b16 %v109
    %v633 = vunpack.c.l.b16 %v110
    %v634 = vunpack.c.l.b16 %v111
    %v635 = vunpack.c.h.b16 %v111
    %v636 = vunpack.c.l.b16 %v112
    %v637 = vunpack.c.h.b16 %v112
    %v638 = vunpack.c.l.b16 %v113
    %v639 = vunpack.c.h.b16 %v113
    %v640 = vunpack.c.l.b16 %v114
    %v641 = vunpack.c.l.b16 %v115
    %v642 = vunpack.c.h.b16 %v115
    %v643 = vunpack.c.l.b16 %v116
    %v644 = vunpack.c.h.b16 %v116
    %v645 = vunpack.c.l.b16 %v117
    %v646 = vunpack.c.h.b16 %v117
    %v647 = vunpack.c.l.b16 %v118
    %v648 = vunpack.c.l.b16 %v119
    %v649 = vunpack.c.h.b16 %v119
    %v650 = vunpack.c.l.b16 %v120
    %v651 = vunpack.c.h.b16 %v120
    %v652 = vunpack.c.l.b16 %v121
    %v653 = vunpack.c.h.b16 %v121
    %v654 = vunpack.c.l.b16 %v122
    %v655 = vunpack.c.l.b16 %v123
    %v656 = vunpack.c.h.b16 %v123
    %v657 = vunpack.c.l.b16 %v124
    %v658 = vunpack.c.h.b16 %v124
    %v659 = vunpack.c.l.b16 %v125
    %v660 = vunpack.c.h.b16 %v125
    %v661 = vunpack.c.l.b16 %v126
    %v662 = vunpack.c.l.b16 %v127
    %v663 = vunpack.c.h.b16 %v127
    %v664 = vunpack.c.l.b16 %v128
    %v665 = vunpack.c.h.b16 %v128
    %v666 = vunpack.c.l.b16 %v129
    %v667 = vunpack.c.h.b16 %v129
    %v668 = vunpack.c.l.b16 %v130
    %v669 = vunpack.c.l.b16 %v131
    %v670 = vunpack.c.h.b16 %v131
    %v671 = vunpack.c.l.b16 %v132
    %v672 = vunpack.c.h.b16 %v132
    %v673 = vunpack.c.l.b16 %v133
    %v674 = vunpack.c.h.b16 %v133
    %v675 = vunpack.c.l.b16 %v134
    %v676 = vunpack.c.l.b16 %v135
    %v677 = vunpack.c.h.b16 %v135
    %v678 = vunpack.c.l.b16 %v136
    %v679 = vunpack.c.h.b16 %v136
    %v680 = vunpack.c.l.b16 %v137
    %v681 = vunpack.c.h.b16 %v137
    %v682 = vunpack.c.l.b16 %v138
    %v683 = vunpack.c.l.b16 %v139
    %v684 = vunpack.c.h.b16 %v139
    %v685 = vunpack.c.l.b16 %v140
    %v686 = vunpack.c.h.b16 %v140
    %v687 = vunpack.c.l.b16 %v141
    %v688 = vunpack.c.h.b16 %v141
    %v689 = vunpack.c.l.b16 %v142
    %v690 = vunpack.c.l.b16 %v143
    %v691 = vunpack.c.h.b16 %v143
    %v692 = vunpack.c.l.b16 %v144
    %v693 = vunpack.c.h.b16 %v144
    %v694 = vunpack.c.l.b16 %v145
    %v695 = vunpack.c.h.b16 %v145
    %v696 = vunpack.c.l.b16 %v146
    %v697 = vunpack.c.l.b16 %v147
    %v698 = vunpack.c.h.b16 %v147
    %v699 = vunpack.c.l.b16 %v148
    %v700 = vunpack.c.h.b16 %v148
    %v701 = vunpack.c.l.b16 %v149
    %v702 = vunpack.c.h.b16 %v149
    %v703 = vunpack.c.l.b16 %v150
    %v704 = vunpack.c.l.b16 %v151
    %v705 = vunpack.c.h.b16 %v151
    %v706 = vunpack.c.l.b16 %v152
    %v707 = vunpack.c.h.b16 %v152
    %v708 = vunpack.c.l.b16 %v153
    %v709 = vunpack.c.h.b16 %v153
    %v710 = vunpack.c.l.b16 %v154
    %v711 = vunpack.c.l.b16 %v155
    %v712 = vunpack.c.h.b16 %v155
    %v713 = vunpack.c.l.b16 %v156
    %v714 = vunpack.c.h.b16 %v156
    %v715 = vunpack.c.l.b16 %v157
    %v716 = vunpack.c.h.b16 %v157
    %v717 = vunpack.c.l.b16 %v158
    %v718 = vunpack.c.l.b16 %v159
    %v719 = vunpack.c.h.b16 %v159
    %v720 = vunpack.c.l.b16 %v160
    %v721 = vunpack.c.h.b16 %v160
    %v722 = vunpack.c.l.b16 %v161
    %v723 = vunpack.c.h.b16 %v161
    %v724 = vunpack.c.l.b16 %v162
    %v725 = vunpack.c.l.b16 %v163
    %v726 = vunpack.c.h.b16 %v163
    %v727 = vunpack.c.l.b16 %v164
    %v728 = vunpack.c.h.b16 %v164
    %v729 = vunpack.c.l.b16 %v165
    %v730 = vunpack.c.h.b16 %v165
    %v731 = vunpack.c.l.b16 %v166
    %v732 = vunpack.c.l.b16 %v167
    %v733 = vunpack.c.h.b16 %v167
    %v734 = vunpack.c.l.b16 %v168
    %v735 = vunpack.c.h.b16 %v168
    %v736 = vunpack.c.l.b16 %v169
    %v737 = vunpack.c.h.b16 %v169
    %v738 = vunpack.c.l.b16 %v170
    %v739 = vunpack.c.l.b16 %v171
    %v740 = vunpack.c.h.b16 %v171
    %v741 = vunpack.c.l.b16 %v172
    %v742 = vunpack.c.h.b16 %v172
    %v743 = vunpack.c.l.b16 %v173
    %v744 = vunpack.c.h.b16 %v173
    %v745 = vunpack.c.l.b16 %v174
    %v746 = vunpack.c.l.b16 %v175
    %v747 = vunpack.c.h.b16 %v175
    %v748 = vunpack.c.l.b16 %v176
    %v749 = vunpack.c.h.b16 %v176
    %v750 = vunpack.c.l.b16 %v177
    %v751 = vunpack.c.h.b16 %v177
    %v752 = vunpack.c.l.b16 %v178
    %v753 = vunpack.c.l.b16 %v179
    %v754 = vunpack.c.h.b16 %v179
    %v755 = vunpack.c.l.b16 %v180
    %v756 = vunpack.c.h.b16 %v180
    %v757 = vunpack.c.l.b16 %v181
    %v758 = vunpack.c.h.b16 %v181
    %v759 = vunpack.c.l.b16 %v182
    %v760 = vunpack.c.l.b16 %v183
    %v761 = vunpack.c.h.b16 %v183
    %v762 = vunpack.c.l.b16 %v184
    %v763 = vunpack.c.h.b16 %v184
    %v764 = vunpack.c.l.b16 %v185
    %v765 = vunpack.c.h.b16 %v185
    %v766 = vunpack.c.l.b16 %v186
    %v767 = vunpack.c.l.b16 %v187
    %v768 = vunpack.c.h.b16 %v187
    %v769 = vunpack.c.l.b16 %v188
    %v770 = vunpack.c.h.b16 %v188
    %v771 = vunpack.c.l.b16 %v189
    %v772 = vunpack.c.h.b16 %v189
    %v773 = vunpack.c.l.b16 %v190
    %v774 = vunpack.c.l.b16 %v191
    %v775 = vunpack.c.h.b16 %v191
    %v776 = vunpack.c.l.b16 %v192
    %v777 = vunpack.c.h.b16 %v192
    %v778 = vunpack.c.l.b16 %v193
    %v779 = vunpack.c.h.b16 %v193
    %v780 = vunpack.c.l.b16 %v194
    %v781 = vunpack.c.l.b16 %v195
    %v782 = vunpack.c.h.b16 %v195
    %v783 = vunpack.c.l.b16 %v196
    %v784 = vunpack.c.h.b16 %v196
    %v785 = vunpack.c.l.b16 %v197
    %v786 = vunpack.c.h.b16 %v197
    %v787 = vunpack.c.l.b16 %v198
    %v788 = vunpack.c.l.b16 %v199
    %v789 = vunpack.c.h.b16 %v199
    %v790 = vunpack.c.l.b16 %v200
    %v791 = vunpack.c.h.b16 %v200
    %v792 = vunpack.c.l.b16 %v201
    %v793 = vunpack.c.h.b16 %v201
    %v794 = vunpack.c.l.b16 %v202
    %v795 = vunpack.c.l.b16 %v203
    %v796 = vunpack.c.h.b16 %v203
    %v797 = vunpack.c.l.b16 %v204
    %v798 = vunpack.c.h.b16 %v204
    %v799 = vunpack.c.l.b16 %v205
    %v800 = vunpack.c.h.b16 %v205
    %v801 = vunpack.c.l.b16 %v206
    %v802 = vunpack.c.l.b16 %v207
    %v803 = vunpack.c.h.b16 %v207
    %v804 = vunpack.c.l.b16 %v208
    %v805 = vunpack.c.h.b16 %v208
    %v806 = vunpack.c.l.b16 %v209
    %v807 = vunpack.c.h.b16 %v209
    %v808 = vunpack.c.l.b16 %v210
    %v809 = vpack.c.b16 %v592, %v585
    %v810 = vpack.c.b16 %v593, %v586
    %v811 = vpack.c.b16 %v594, %v587
    %v812 = vpack.c.b16 %v595, %v588
    %v813 = vpack.c.b16 %v596, %v589
    %v814 = vpack.c.b16 %v597, %v590
    %v815 = vpack.c.b16 %v598, %v591
    %v816 = vpack.c.b16 %v606, %v599
    %v817 = vpack.c.b16 %v607, %v600
    %v818 = vpack.c.b16 %v608, %v601
    %v819 = vpack.c.b16 %v609, %v602
    %v820 = vpack.c.b16 %v610, %v603
    %v821 = vpack.c.b16 %v611, %v604
    %v822 = vpack.c.b16 %v612, %v605
    %v823 = vpack.c.b16 %v620, %v613
    %v824 = vpack.c.b16 %v621, %v614
    %v825 = vpack.c.b16 %v622, %v615
    %v826 = vpack.c.b16 %v623, %v616
    %v827 = vpack.c.b16 %v624, %v617
    %v828 = vpack.c.b16 %v625, %v618
    %v829 = vpack.c.b16 %v626, %v619
    %v830 = vpack.c.b16 %v634, %v627
    %v831 = vpack.c.b16 %v635, %v628
    %v832 = vpack.c.b16 %v636, %v629
    %v833 = vpack.c.b16 %v637, %v630
    %v834 = vpack.c.b16 %v638, %v631
    %v835 = vpack.c.b16 %v639, %v632
    %v836 = vpack.c.b16 %v640, %v633
    %v837 = vpack.c.b16 %v648, %v641
    %v838 = vpack.c.b16 %v649, %v642
    %v839 = vpack.c.b16 %v650, %v643
    %v840 = vpack.c.b16 %v651, %v644
    %v841 = vpack.c.b16 %v652, %v645
    %v842 = vpack.c.b16 %v653, %v646
    %v843 = vpack.c.b16 %v654, %v647
    %v844 = vpack.c.b16 %v662, %v655
    %v845 = vpack.c.b16 %v663, %v656
    %v846 = vpack.c.b16 %v664, %v657
    %v847 = vpack.c.b16 %v665, %v658
    %v848 = vpack.c.b16 %v666, %v659
    %v849 = vpack.c.b16 %v667, %v660
    %v850 = vpack.c.b16 %v668, %v661
    %v851 = vpack.c.b16 %v676, %v669
    %v852 = vpack.c.b16 %v677, %v670
    %v853 = vpack.c.b16 %v678, %v671
    %v854 = vpack.c.b16 %v679, %v672
    %v855 = vpack.c.b16 %v680, %v673
    %v856 = vpack.c.b16 %v681, %v674
    %v857 = vpack.c.b16 %v682, %v675
    %v858 = vpack.c.b16 %v690, %v683
    %v859 = vpack.c.b16 %v691, %v684
    %v860 = vpack.c.b16 %v692, %v685
    %v861 = vpack.c.b16 %v693, %v686
    %v862 = vpack.c.b16 %v694, %v687
    %v863 = vpack.c.b16 %v695, %v688
    %v864 = vpack.c.b16 %v696, %v689
    %v865 = vpack.c.b16 %v704, %v697
    %v866 = vpack.c.b16 %v705, %v698
    %v867 = vpack.c.b16 %v706, %v699
    %v868 = vpack.c.b16 %v707, %v700
    %v869 = vpack.c.b16 %v708, %v701
    %v870 = vpack.c.b16 %v709, %v702
    %v871 = vpack.c.b16 %v710, %v703
    %v872 = vpack.c.b16 %v718, %v711
    %v873 = vpack.c.b16 %v719, %v712
    %v874 = vpack.c.b16 %v720, %v713
    %v875 = vpack.c.b16 %v721, %v714
    %v876 = vpack.c.b16 %v722, %v715
    %v877 = vpack.c.b16 %v723, %v716
    %v878 = vpack.c.b16 %v724, %v717
    %v879 = vpack.c.b16 %v732, %v725
    %v880 = vpack.c.b16 %v733, %v726
    %v881 = vpack.c.b16 %v734, %v727
    %v882 = vpack.c.b16 %v735, %v728
    %v883 = vpack.c.b16 %v736, %v729
    %v884 = vpack.c.b16 %v737, %v730
    %v885 = vpack.c.b16 %v738, %v731
    %v886 = vpack.c.b16 %v746, %v739
    %v887 = vpack.c.b16 %v747, %v740
    %v888 = vpack.c.b16 %v748, %v741
    %v889 = vpack.c.b16 %v749, %v742
    %v890 = vpack.c.b16 %v750, %v743
    %v891 = vpack.c.b16 %v751, %v744
    %v892 = vpack.c.b16 %v752, %v745
    %v893 = vpack.c.b16 %v760, %v753
    %v894 = vpack.c.b16 %v761, %v754
    %v895 = vpack.c.b16 %v762, %v755
    %v896 = vpack.c.b16 %v763, %v756
    %v897 = vpack.c.b16 %v764, %v757
    %v898 = vpack.c.b16 %v765, %v758
    %v899 = vpack.c.b16 %v766, %v759
    %v900 = vpack.c.b16 %v774, %v767
    %v901 = vpack.c.b16 %v775, %v768
    %v902 = vpack.c.b16 %v776, %v769
    %v903 = vpack.c.b16 %v777, %v770
    %v904 = vpack.c.b16 %v778, %v771
    %v905 = vpack.c.b16 %v779, %v772
    %v906 = vpack.c.b16 %v780, %v773
    %v907 = vpack.c.b16 %v788, %v781
    %v908 = vpack.c.b16 %v789, %v782
    %v909 = vpack.c.b16 %v790, %v783
    %v910 = vpack.c.b16 %v791, %v784
    %v911 = vpack.c.b16 %v792, %v785
    %v912 = vpack.c.b16 %v793, %v786
    %v913 = vpack.c.b16 %v794, %v787
    %v914 = vpack.c.b16 %v802, %v795
    %v915 = vpack.c.b16 %v803, %v796
    %v916 = vpack.c.b16 %v804, %v797
    %v917 = vpack.c.b16 %v805, %v798
    %v918 = vpack.c.b16 %v806, %v799
    %v919 = vpack.c.b16 %v807, %v800
    %v920 = vpack.c.b16 %v808, %v801
    %v1257 = vunpack.c.l.b16 %v211
    %v1258 = vunpack.c.h.b16 %v211
    %v1259 = vunpack.c.l.b16 %v212
    %v1260 = vunpack.c.h.b16 %v212
    %v1261 = vunpack.c.l.b16 %v213
    %v1262 = vunpack.c.h.b16 %v213
    %v1263 = vunpack.c.l.b16 %v214
    %v1264 = vunpack.c.h.b16 %v214
    %v1265 = vunpack.c.l.b16 %v215
    %v1266 = vunpack.c.h.b16 %v215
    %v1267 = vunpack.c.l.b16 %v216
    %v1268 = vunpack.c.h.b16 %v216
    %v1269 = vunpack.c.l.b16 %v217
    %v1270 = vunpack.c.h.b16 %v217
    %v1271 = vunpack.c.l.b16 %v218
    %v1272 = vunpack.c.h.b16 %v218
    %v1273 = vunpack.c.l.b16 %v219
    %v1274 = vunpack.c.h.b16 %v219
    %v1275 = vunpack.c.l.b16 %v220
    %v1276 = vunpack.c.h.b16 %v220
    %v1277 = vunpack.c.l.b16 %v221
    %v1278 = vunpack.c.h.b16 %v221
    %v1279 = vunpack.c.l.b16 %v222
    %v1280 = vunpack.c.h.b16 %v222
    %v1281 = vunpack.c.l.b16 %v223
    %v1282 = vunpack.c.h.b16 %v223
    %v1283 = vunpack.c.l.b16 %v224
    %v1284 = vunpack.c.h.b16 %v224
    %v1285 = vunpack.c.l.b16 %v225
    %v1286 = vunpack.c.h.b16 %v225
    %v1287 = vunpack.c.l.b16 %v226
    %v1288 = vunpack.c.h.b16 %v226
    %v1289 = vunpack.c.l.b16 %v227
    %v1290 = vunpack.c.h.b16 %v227
    %v1291 = vunpack.c.l.b16 %v228
    %v1292 = vunpack.c.h.b16 %v228
    %v1293 = vunpack.c.l.b16 %v229
    %v1294 = vunpack.c.h.b16 %v229
    %v1295 = vunpack.c.l.b16 %v230
    %v1296 = vunpack.c.h.b16 %v230
    %v1297 = vunpack.c.l.b16 %v231
    %v1298 = vunpack.c.h.b16 %v231
    %v1299 = vunpack.c.l.b16 %v232
    %v1300 = vunpack.c.h.b16 %v232
    %v1301 = vunpack.c.l.b16 %v233
    %v1302 = vunpack.c.h.b16 %v233
    %v1303 = vunpack.c.l.b16 %v234
    %v1304 = vunpack.c.h.b16 %v234
    %v1305 = vunpack.c.l.b16 %v235
    %v1306 = vunpack.c.h.b16 %v235
    %v1307 = vunpack.c.l.b16 %v236
    %v1308 = vunpack.c.h.b16 %v236
    %v1309 = vunpack.c.l.b16 %v237
    %v1310 = vunpack.c.h.b16 %v237
    %v1311 = vunpack.c.l.b16 %v238
    %v1312 = vunpack.c.h.b16 %v238
    %v1313 = vunpack.c.l.b16 %v239
    %v1314 = vunpack.c.h.b16 %v239
    %v1315 = vunpack.c.l.b16 %v240
    %v1316 = vunpack.c.h.b16 %v240
    %v1317 = vunpack.c.l.b16 %v241
    %v1318 = vunpack.c.h.b16 %v241
    %v1319 = vunpack.c.l.b16 %v242
    %v1320 = vunpack.c.h.b16 %v242
    %v1321 = vunpack.c.l.b16 %v243
    %v1322 = vunpack.c.h.b16 %v243
    %v1323 = vunpack.c.l.b16 %v244
    %v1324 = vunpack.c.h.b16 %v244
    %v1325 = vunpack.c.l.b16 %v245
    %v1326 = vunpack.c.h.b16 %v245
    %v1327 = vunpack.c.l.b16 %v246
    %v1328 = vunpack.c.h.b16 %v246
    %v1329 = vunpack.c.l.b16 %v247
    %v1330 = vunpack.c.h.b16 %v247
    %v1331 = vunpack.c.l.b16 %v248
    %v1332 = vunpack.c.h.b16 %v248
    %v1333 = vunpack.c.l.b16 %v249
    %v1334 = vunpack.c.h.b16 %v249
    %v1335 = vunpack.c.l.b16 %v250
    %v1336 = vunpack.c.h.b16 %v250
    %v1337 = vunpack.c.l.b16 %v251
    %v1338 = vunpack.c.h.b16 %v251
    %v1339 = vunpack.c.l.b16 %v252
    %v1340 = vunpack.c.h.b16 %v252
    %v1341 = vunpack.c.l.b16 %v253
    %v1342 = vunpack.c.h.b16 %v253
    %v1343 = vunpack.c.l.b16 %v254
    %v1344 = vunpack.c.h.b16 %v254
    %v1345 = vunpack.c.l.b16 %v255
    %v1346 = vunpack.c.h.b16 %v255
    %v1347 = vunpack.c.l.b16 %v256
    %v1348 = vunpack.c.h.b16 %v256
    %v1349 = vunpack.c.l.b16 %v257
    %v1350 = vunpack.c.h.b16 %v257
    %v1351 = vunpack.c.l.b16 %v258
    %v1352 = vunpack.c.h.b16 %v258
    %v1353 = vunpack.c.l.b16 %v259
    %v1354 = vunpack.c.h.b16 %v259
    %v1355 = vunpack.c.l.b16 %v260
    %v1356 = vunpack.c.h.b16 %v260
    %v1357 = vunpack.c.l.b16 %v261
    %v1358 = vunpack.c.h.b16 %v261
    %v1359 = vunpack.c.l.b16 %v262
    %v1360 = vunpack.c.h.b16 %v262
    %v1361 = vunpack.c.l.b16 %v263
    %v1362 = vunpack.c.h.b16 %v263
    %v1363 = vunpack.c.l.b16 %v264
    %v1364 = vunpack.c.h.b16 %v264
    %v1365 = vunpack.c.l.b16 %v265
    %v1366 = vunpack.c.h.b16 %v265
    %v1367 = vunpack.c.l.b16 %v266
    %v1368 = vunpack.c.h.b16 %v266
    %v1369 = vunpack.c.l.b16 %v267
    %v1370 = vunpack.c.h.b16 %v267
    %v1371 = vunpack.c.l.b16 %v268
    %v1372 = vunpack.c.h.b16 %v268
    %v1373 = vunpack.c.l.b16 %v269
    %v1374 = vunpack.c.h.b16 %v269
    %v1375 = vunpack.c.l.b16 %v270
    %v1376 = vunpack.c.h.b16 %v270
    %v1377 = vunpack.c.l.b16 %v271
    %v1378 = vunpack.c.h.b16 %v271
    %v1379 = vunpack.c.l.b16 %v272
    %v1380 = vunpack.c.h.b16 %v272
    %v1381 = vunpack.c.l.b16 %v273
    %v1382 = vunpack.c.h.b16 %v273
    %v1383 = vunpack.c.l.b16 %v274
    %v1384 = vunpack.c.h.b16 %v274
    %v1385 = vunpack.c.l.b16 %v275
    %v1386 = vunpack.c.h.b16 %v275
    %v1387 = vunpack.c.l.b16 %v276
    %v1388 = vunpack.c.h.b16 %v276
    %v1389 = vunpack.c.l.b16 %v277
    %v1390 = vunpack.c.h.b16 %v277
    %v1391 = vunpack.c.l.b16 %v278
    %v1392 = vunpack.c.h.b16 %v278
    %v1393 = vunpack.c.l.b16 %v279
    %v1394 = vunpack.c.h.b16 %v279
    %v1395 = vunpack.c.l.b16 %v280
    %v1396 = vunpack.c.h.b16 %v280
    %v1397 = vunpack.c.l.b16 %v281
    %v1398 = vunpack.c.h.b16 %v281
    %v1399 = vunpack.c.l.b16 %v282
    %v1400 = vunpack.c.h.b16 %v282
    %v1401 = vunpack.c.l.b16 %v283
    %v1402 = vunpack.c.h.b16 %v283
    %v1403 = vunpack.c.l.b16 %v284
    %v1404 = vunpack.c.h.b16 %v284
    %v1405 = vunpack.c.l.b16 %v285
    %v1406 = vunpack.c.h.b16 %v285
    %v1407 = vunpack.c.l.b16 %v286
    %v1408 = vunpack.c.h.b16 %v286
    %v1409 = vunpack.c.l.b16 %v287
    %v1410 = vunpack.c.h.b16 %v287
    %v1411 = vunpack.c.l.b16 %v288
    %v1412 = vunpack.c.h.b16 %v288
    %v1413 = vunpack.c.l.b16 %v289
    %v1414 = vunpack.c.h.b16 %v289
    %v1415 = vunpack.c.l.b16 %v290
    %v1416 = vunpack.c.h.b16 %v290
    %v1417 = vunpack.c.l.b16 %v291
    %v1418 = vunpack.c.h.b16 %v291
    %v1419 = vunpack.c.l.b16 %v292
    %v1420 = vunpack.c.h.b16 %v292
    %v1421 = vunpack.c.l.b16 %v293
    %v1422 = vunpack.c.h.b16 %v293
    %v1423 = vunpack.c.l.b16 %v294
    %v1424 = vunpack.c.h.b16 %v294
    %v1425 = vunpack.c.l.b16 %v295
    %v1426 = vunpack.c.h.b16 %v295
    %v1427 = vunpack.c.l.b16 %v296
    %v1428 = vunpack.c.h.b16 %v296
    %v1429 = vunpack.c.l.b16 %v297
    %v1430 = vunpack.c.h.b16 %v297
    %v1431 = vunpack.c.l.b16 %v298
    %v1432 = vunpack.c.h.b16 %v298
    %v1433 = vunpack.c.l.b16 %v299
    %v1434 = vunpack.c.h.b16 %v299
    %v1435 = vunpack.c.l.b16 %v300
    %v1436 = vunpack.c.h.b16 %v300
    %v1437 = vunpack.c.l.b16 %v301
    %v1438 = vunpack.c.h.b16 %v301
    %v1439 = vunpack.c.l.b16 %v302
    %v1440 = vunpack.c.h.b16 %v302
    %v1441 = vunpack.c.l.b16 %v303
    %v1442 = vunpack.c.h.b16 %v303
    %v1443 = vunpack.c.l.b16 %v304
    %v1444 = vunpack.c.h.b16 %v304
    %v1445 = vunpack.c.l.b16 %v305
    %v1446 = vunpack.c.h.b16 %v305
    %v1447 = vunpack.c.l.b16 %v306
    %v1448 = vunpack.c.h.b16 %v306
    %v1449 = vunpack.c.l.b16 %v307
    %v1450 = vunpack.c.h.b16 %v307
    %v1451 = vunpack.c.l.b16 %v308
    %v1452 = vunpack.c.h.b16 %v308
    %v1453 = vunpack.c.l.b16 %v309
    %v1454 = vunpack.c.h.b16 %v309
    %v1455 = vunpack.c.l.b16 %v310
    %v1456 = vunpack.c.h.b16 %v310
    %v1457 = vunpack.c.l.b16 %v311
    %v1458 = vunpack.c.h.b16 %v311
    %v1459 = vunpack.c.l.b16 %v312
    %v1460 = vunpack.c.h.b16 %v312
    %v1461 = vunpack.c.l.b16 %v313
    %v1462 = vunpack.c.h.b16 %v313
    %v1463 = vunpack.c.l.b16 %v314
    %v1464 = vunpack.c.h.b16 %v314
    %v1465 = vunpack.c.l.b16 %v315
    %v1466 = vunpack.c.h.b16 %v315
    %v1467 = vunpack.c.l.b16 %v316
    %v1468 = vunpack.c.h.b16 %v316
    %v1469 = vunpack.c.l.b16 %v317
    %v1470 = vunpack.c.h.b16 %v317
    %v1471 = vunpack.c.l.b16 %v318
    %v1472 = vunpack.c.h.b16 %v318
    %v1473 = vunpack.c.l.b16 %v319
    %v1474 = vunpack.c.h.b16 %v319
    %v1475 = vunpack.c.l.b16 %v320
    %v1476 = vunpack.c.h.b16 %v320
    %v1477 = vunpack.c.l.b16 %v321
    %v1478 = vunpack.c.h.b16 %v321
    %v1479 = vunpack.c.l.b16 %v322
    %v1480 = vunpack.c.h.b16 %v322
    %v1481 = vunpack.c.l.b16 %v323
    %v1482 = vunpack.c.h.b16 %v323
    %v1483 = vunpack.c.l.b16 %v324
    %v1484 = vunpack.c.h.b16 %v324
    %v1485 = vunpack.c.l.b16 %v325
    %v1486 = vunpack.c.h.b16 %v325
    %v1487 = vunpack.c.l.b16 %v326
    %v1488 = vunpack.c.h.b16 %v326
    %v1489 = vunpack.c.l.b16 %v327
    %v1490 = vunpack.c.h.b16 %v327
    %v1491 = vunpack.c.l.b16 %v328
    %v1492 = vunpack.c.h.b16 %v328
    %v1493 = vunpack.c.l.b16 %v329
    %v1494 = vunpack.c.h.b16 %v329
    %v1495 = vunpack.c.l.b16 %v330
    %v1496 = vunpack.c.h.b16 %v330
    %v1497 = vunpack.c.l.b16 %v331
    %v1498 = vunpack.c.h.b16 %v331
    %v1499 = vunpack.c.l.b16 %v332
    %v1500 = vunpack.c.h.b16 %v332
    %v1501 = vunpack.c.l.b16 %v333
    %v1502 = vunpack.c.h.b16 %v333
    %v1503 = vunpack.c.l.b16 %v334
    %v1504 = vunpack.c.h.b16 %v334
    %v1505 = vunpack.c.l.b16 %v335
    %v1506 = vunpack.c.h.b16 %v335
    %v1507 = vunpack.c.l.b16 %v336
    %v1508 = vunpack.c.h.b16 %v336
    %v1509 = vunpack.c.l.b16 %v337
    %v1510 = vunpack.c.h.b16 %v337
    %v1511 = vunpack.c.l.b16 %v338
    %v1512 = vunpack.c.h.b16 %v338
    %v1513 = vunpack.c.l.b16 %v339
    %v1514 = vunpack.c.h.b16 %v339
    %v1515 = vunpack.c.l.b16 %v340
    %v1516 = vunpack.c.h.b16 %v340
    %v1517 = vunpack.c.l.b16 %v341
    %v1518 = vunpack.c.h.b16 %v341
    %v1519 = vunpack.c.l.b16 %v342
    %v1520 = vunpack.c.h.b16 %v342
    %v1521 = vunpack.c.l.b16 %v343
    %v1522 = vunpack.c.h.b16 %v343
    %v1523 = vunpack.c.l.b16 %v344
    %v1524 = vunpack.c.h.b16 %v344
    %v1525 = vunpack.c.l.b16 %v345
    %v1526 = vunpack.c.h.b16 %v345
    %v1527 = vunpack.c.l.b16 %v346
    %v1528 = vunpack.c.h.b16 %v346
    %v1529 = vunpack.c.l.b16 %v347
    %v1530 = vunpack.c.h.b16 %v347
    %v1531 = vunpack.c.l.b16 %v348
    %v1532 = vunpack.c.h.b16 %v348
    %v1533 = vunpack.c.l.b16 %v349
    %v1534 = vunpack.c.h.b16 %v349
    %v1535 = vunpack.c.l.b16 %v350
    %v1536 = vunpack.c.h.b16 %v350
    %v1537 = vunpack.c.l.b16 %v351
    %v1538 = vunpack.c.h.b16 %v351
    %v1539 = vunpack.c.l.b16 %v352
    %v1540 = vunpack.c.h.b16 %v352
    %v1541 = vunpack.c.l.b16 %v353
    %v1542 = vunpack.c.h.b16 %v353
    %v1543 = vunpack.c.l.b16 %v354
    %v1544 = vunpack.c.h.b16 %v354
    %v1545 = vunpack.c.l.b16 %v355
    %v1546 = vunpack.c.h.b16 %v355
    %v1547 = vunpack.c.l.b16 %v356
    %v1548 = vunpack.c.h.b16 %v356
    %v1549 = vunpack.c.l.b16 %v357
    %v1550 = vunpack.c.h.b16 %v357
    %v1551 = vunpack.c.l.b16 %v358
    %v1552 = vunpack.c.h.b16 %v358
    %v1553 = vunpack.c.l.b16 %v359
    %v1554 = vunpack.c.h.b16 %v359
    %v1555 = vunpack.c.l.b16 %v360
    %v1556 = vunpack.c.h.b16 %v360
    %v1557 = vunpack.c.l.b16 %v361
    %v1558 = vunpack.c.h.b16 %v361
    %v1559 = vunpack.c.l.b16 %v362
    %v1560 = vunpack.c.h.b16 %v362
    %v1561 = vunpack.c.l.b16 %v363
    %v1562 = vunpack.c.h.b16 %v363
    %v1563 = vunpack.c.l.b16 %v364
    %v1564 = vunpack.c.h.b16 %v364
    %v1565 = vunpack.c.l.b16 %v365
    %v1566 = vunpack.c.h.b16 %v365
    %v1567 = vunpack.c.l.b16 %v366
    %v1568 = vunpack.c.h.b16 %v366
    %v1569 = vunpack.c.l.b16 %v367
    %v1570 = vunpack.c.h.b16 %v367
    %v1571 = vunpack.c.l.b16 %v368
    %v1572 = vunpack.c.h.b16 %v368
    %v1573 = vunpack.c.l.b16 %v369
    %v1574 = vunpack.c.h.b16 %v369
    %v1575 = vunpack.c.l.b16 %v370
    %v1576 = vunpack.c.h.b16 %v370
    %v1577 = vunpack.c.l.b16 %v371
    %v1578 = vunpack.c.h.b16 %v371
    %v1579 = vunpack.c.l.b16 %v372
    %v1580 = vunpack.c.h.b16 %v372
    %v1581 = vunpack.c.l.b16 %v373
    %v1582 = vunpack.c.h.b16 %v373
    %v1583 = vunpack.c.l.b16 %v374
    %v1584 = vunpack.c.h.b16 %v374
    %v1585 = vunpack.c.l.b16 %v375
    %v1586 = vunpack.c.h.b16 %v375
    %v1587 = vunpack.c.l.b16 %v376
    %v1588 = vunpack.c.h.b16 %v376
    %v1589 = vunpack.c.l.b16 %v377
    %v1590 = vunpack.c.h.b16 %v377
    %v1591 = vunpack.c.l.b16 %v378
    %v1592 = vunpack.c.h.b16 %v378
    %v1593 = vunpack.c.l.b16 %v379
    %v1594 = vunpack.c.h.b16 %v379
    %v1595 = vunpack.c.l.b16 %v380
    %v1596 = vunpack.c.h.b16 %v380
    %v1597 = vunpack.c.l.b16 %v381
    %v1598 = vunpack.c.h.b16 %v381
    %v1599 = vunpack.c.l.b16 %v382
    %v1600 = vunpack.c.h.b16 %v382
    %v1601 = vunpack.c.l.b16 %v383
    %v1602 = vunpack.c.h.b16 %v383
    %v1603 = vunpack.c.l.b16 %v384
    %v1604 = vunpack.c.h.b16 %v384
    %v1605 = vunpack.c.l.b16 %v385
    %v1606 = vunpack.c.h.b16 %v385
    %v1607 = vunpack.c.l.b16 %v386
    %v1608 = vunpack.c.h.b16 %v386
    %v1609 = vunpack.c.l.b16 %v387
    %v1610 = vunpack.c.h.b16 %v387
    %v1611 = vunpack.c.l.b16 %v388
    %v1612 = vunpack.c.h.b16 %v388
    %v1613 = vunpack.c.l.b16 %v389
    %v1614 = vunpack.c.h.b16 %v389
    %v1615 = vunpack.c.l.b16 %v390
    %v1616 = vunpack.c.h.b16 %v390
    %v1617 = vunpack.c.l.b16 %v391
    %v1618 = vunpack.c.h.b16 %v391
    %v1619 = vunpack.c.l.b16 %v392
    %v1620 = vunpack.c.h.b16 %v392
    %v1621 = vunpack.c.l.b16 %v393
    %v1622 = vunpack.c.h.b16 %v393
    %v1623 = vunpack.c.l.b16 %v394
    %v1624 = vunpack.c.h.b16 %v394
    %v1625 = vunpack.c.l.b16 %v395
    %v1626 = vunpack.c.h.b16 %v395
    %v1627 = vunpack.c.l.b16 %v396
    %v1628 = vunpack.c.h.b16 %v396
    %v1629 = vunpack.c.l.b16 %v397
    %v1630 = vunpack.c.h.b16 %v397
    %v1631 = vunpack.c.l.b16 %v398
    %v1632 = vunpack.c.h.b16 %v398
    %v1633 = vunpack.c.l.b16 %v399
    %v1634 = vunpack.c.h.b16 %v399
    %v1635 = vunpack.c.l.b16 %v400
    %v1636 = vunpack.c.h.b16 %v400
    %v1637 = vunpack.c.l.b16 %v401
    %v1638 = vunpack.c.h.b16 %v401
    %v1639 = vunpack.c.l.b16 %v402
    %v1640 = vunpack.c.h.b16 %v402
    %v1641 = vunpack.c.l.b16 %v403
    %v1642 = vunpack.c.h.b16 %v403
    %v1643 = vunpack.c.l.b16 %v404
    %v1644 = vunpack.c.h.b16 %v404
    %v1645 = vunpack.c.l.b16 %v405
    %v1646 = vunpack.c.h.b16 %v405
    %v1647 = vunpack.c.l.b16 %v406
    %v1648 = vunpack.c.h.b16 %v406
    %v1649 = vunpack.c.l.b16 %v407
    %v1650 = vunpack.c.h.b16 %v407
    %v1651 = vunpack.c.l.b16 %v408
    %v1652 = vunpack.c.h.b16 %v408
    %v1653 = vunpack.c.l.b16 %v409
    %v1654 = vunpack.c.h.b16 %v409
    %v1655 = vunpack.c.l.b16 %v410
    %v1656 = vunpack.c.h.b16 %v410
    %v1657 = vunpack.c.l.b16 %v411
    %v1658 = vunpack.c.h.b16 %v411
    %v1659 = vunpack.c.l.b16 %v412
    %v1660 = vunpack.c.h.b16 %v412
    %v1661 = vunpack.c.l.b16 %v413
    %v1662 = vunpack.c.h.b16 %v413
    %v1663 = vunpack.c.l.b16 %v414
    %v1664 = vunpack.c.h.b16 %v414
    %v1665 = vunpack.c.l.b16 %v415
    %v1666 = vunpack.c.h.b16 %v415
    %v1667 = vunpack.c.l.b16 %v416
    %v1668 = vunpack.c.h.b16 %v416
    %v1669 = vunpack.c.l.b16 %v417
    %v1670 = vunpack.c.h.b16 %v417
    %v1671 = vunpack.c.l.b16 %v418
    %v1672 = vunpack.c.h.b16 %v418
    %v1673 = vunpack.c.l.b16 %v419
    %v1674 = vunpack.c.h.b16 %v419
    %v1675 = vunpack.c.l.b16 %v420
    %v1676 = vunpack.c.h.b16 %v420
    %v1677 = vunpack.c.l.b16 %v421
    %v1678 = vunpack.c.h.b16 %v421
    %v1679 = vunpack.c.l.b16 %v422
    %v1680 = vunpack.c.h.b16 %v422
    %v1681 = vunpack.c.l.b16 %v423
    %v1682 = vunpack.c.h.b16 %v423
    %v1683 = vunpack.c.l.b16 %v424
    %v1684 = vunpack.c.h.b16 %v424
    %v1685 = vunpack.c.l.b16 %v425
    %v1686 = vunpack.c.h.b16 %v425
    %v1687 = vunpack.c.l.b16 %v426
    %v1688 = vunpack.c.h.b16 %v426
    %v1689 = vunpack.c.l.b16 %v427
    %v1690 = vunpack.c.h.b16 %v427
    %v1691 = vunpack.c.l.b16 %v428
    %v1692 = vunpack.c.h.b16 %v428
    %v1693 = vunpack.c.l.b16 %v429
    %v1694 = vunpack.c.h.b16 %v429
    %v1695 = vunpack.c.l.b16 %v430
    %v1696 = vunpack.c.h.b16 %v430
    %v1697 = vunpack.c.l.b16 %v431
    %v1698 = vunpack.c.h.b16 %v431
    %v1699 = vunpack.c.l.b16 %v432
    %v1700 = vunpack.c.h.b16 %v432
    %v1701 = vunpack.c.l.b16 %v433
    %v1702 = vunpack.c.h.b16 %v433
    %v1703 = vunpack.c.l.b16 %v434
    %v1704 = vunpack.c.h.b16 %v434
    %v1705 = vpack.c.b16 %v1261, %v1257
    %v1706 = vpack.c.b16 %v1262, %v1258
    %v1707 = vpack.c.b16 %v1263, %v1259
    %v1708 = vpack.c.b16 %v1264, %v1260
    %v1709 = vpack.c.b16 %v1269, %v1265
    %v1710 = vpack.c.b16 %v1270, %v1266
    %v1711 = vpack.c.b16 %v1271, %v1267
    %v1712 = vpack.c.b16 %v1272, %v1268
    %v1713 = vpack.c.b16 %v1277, %v1273
    %v1714 = vpack.c.b16 %v1278, %v1274
    %v1715 = vpack.c.b16 %v1279, %v1275
    %v1716 = vpack.c.b16 %v1280, %v1276
    %v1717 = vpack.c.b16 %v1285, %v1281
    %v1718 = vpack.c.b16 %v1286, %v1282
    %v1719 = vpack.c.b16 %v1287, %v1283
    %v1720 = vpack.c.b16 %v1288, %v1284
    %v1721 = vpack.c.b16 %v1293, %v1289
    %v1722 = vpack.c.b16 %v1294, %v1290
    %v1723 = vpack.c.b16 %v1295, %v1291
    %v1724 = vpack.c.b16 %v1296, %v1292
    %v1725 = vpack.c.b16 %v1301, %v1297
    %v1726 = vpack.c.b16 %v1302, %v1298
    %v1727 = vpack.c.b16 %v1303, %v1299
    %v1728 = vpack.c.b16 %v1304, %v1300
    %v1729 = vpack.c.b16 %v1309, %v1305
    %v1730 = vpack.c.b16 %v1310, %v1306
    %v1731 = vpack.c.b16 %v1311, %v1307
    %v1732 = vpack.c.b16 %v1312, %v1308
    %v1733 = vpack.c.b16 %v1317, %v1313
    %v1734 = vpack.c.b16 %v1318, %v1314
    %v1735 = vpack.c.b16 %v1319, %v1315
    %v1736 = vpack.c.b16 %v1320, %v1316
    %v1737 = vpack.c.b16 %v1325, %v1321
    %v1738 = vpack.c.b16 %v1326, %v1322
    %v1739 = vpack.c.b16 %v1327, %v1323
    %v1740 = vpack.c.b16 %v1328, %v1324
    %v1741 = vpack.c.b16 %v1333, %v1329
    %v1742 = vpack.c.b16 %v1334, %v1330
    %v1743 = vpack.c.b16 %v1335, %v1331
    %v1744 = vpack.c.b16 %v1336, %v1332
    %v1745 = vpack.c.b16 %v1341, %v1337
    %v1746 = vpack.c.b16 %v1342, %v1338
    %v1747 = vpack.c.b16 %v1343, %v1339
    %v1748 = vpack.c.b16 %v1344, %v1340
    %v1749 = vpack.c.b16 %v1349, %v1345
    %v1750 = vpack.c.b16 %v1350, %v1346
    %v1751 = vpack.c.b16 %v1351, %v1347
    %v1752 = vpack.c.b16 %v1352, %v1348
    %v1753 = vpack.c.b16 %v1357, %v1353
    %v1754 = vpack.c.b16 %v1358, %v1354
    %v1755 = vpack.c.b16 %v1359, %v1355
    %v1756 = vpack.c.b16 %v1360, %v1356
    %v1757 = vpack.c.b16 %v1365, %v1361
    %v1758 = vpack.c.b16 %v1366, %v1362
    %v1759 = vpack.c.b16 %v1367, %v1363
    %v1760 = vpack.c.b16 %v1368, %v1364
    %v1761 = vpack.c.b16 %v1373, %v1369
    %v1762 = vpack.c.b16 %v1374, %v1370
    %v1763 = vpack.c.b16 %v1375, %v1371
    %v1764 = vpack.c.b16 %v1376, %v1372
    %v1765 = vpack.c.b16 %v1381, %v1377
    %v1766 = vpack.c.b16 %v1382, %v1378
    %v1767 = vpack.c.b16 %v1383, %v1379
    %v1768 = vpack.c.b16 %v1384, %v1380
    %v1769 = vpack.c.b16 %v1389, %v1385
    %v1770 = vpack.c.b16 %v1390, %v1386
    %v1771 = vpack.c.b16 %v1391, %v1387
    %v1772 = vpack.c.b16 %v1392, %v1388
    %v1773 = vpack.c.b16 %v1397, %v1393
    %v1774 = vpack.c.b16 %v1398, %v1394
    %v1775 = vpack.c.b16 %v1399, %v1395
    %v1776 = vpack.c.b16 %v1400, %v1396
    %v1777 = vpack.c.b16 %v1405, %v1401
    %v1778 = vpack.c.b16 %v1406, %v1402
    %v1779 = vpack.c.b16 %v1407, %v1403
    %v1780 = vpack.c.b16 %v1408, %v1404
    %v1781 = vpack.c.b16 %v1413, %v1409
    %v1782 = vpack.c.b16 %v1414, %v1410
    %v1783 = vpack.c.b16 %v1415, %v1411
    %v1784 = vpack.c.b16 %v1416, %v1412
    %v1785 = vpack.c.b16 %v1421, %v1417
    %v1786 = vpack.c.b16 %v1422, %v1418
    %v1787 = vpack.c.b16 %v1423, %v1419
    %v1788 = vpack.c.b16 %v1424, %v1420
    %v1789 = vpack.c.b16 %v1429, %v1425
    %v1790 = vpack.c.b16 %v1430, %v1426
    %v1791 = vpack.c.b16 %v1431, %v1427
    %v1792 = vpack.c.b16 %v1432, %v1428
    %v1793 = vpack.c.b16 %v1437, %v1433
    %v1794 = vpack.c.b16 %v1438, %v1434
    %v1795 = vpack.c.b16 %v1439, %v1435
    %v1796 = vpack.c.b16 %v1440, %v1436
    %v1797 = vpack.c.b16 %v1445, %v1441
    %v1798 = vpack.c.b16 %v1446, %v1442
    %v1799 = vpack.c.b16 %v1447, %v1443
    %v1800 = vpack.c.b16 %v1448, %v1444
    %v1801 = vpack.c.b16 %v1453, %v1449
    %v1802 = vpack.c.b16 %v1454, %v1450
    %v1803 = vpack.c.b16 %v1455, %v1451
    %v1804 = vpack.c.b16 %v1456, %v1452
    %v1805 = vpack.c.b16 %v1461, %v1457
    %v1806 = vpack.c.b16 %v1462, %v1458
    %v1807 = vpack.c.b16 %v1463, %v1459
    %v1808 = vpack.c.b16 %v1464, %v1460
    %v1809 = vpack.c.b16 %v1469, %v1465
    %v1810 = vpack.c.b16 %v1470, %v1466
    %v1811 = vpack.c.b16 %v1471, %v1467
    %v1812 = vpack.c.b16 %v1472, %v1468
    %v1813 = vpack.c.b16 %v1477, %v1473
    %v1814 = vpack.c.b16 %v1478, %v1474
    %v1815 = vpack.c.b16 %v1479, %v1475
    %v1816 = vpack.c.b16 %v1480, %v1476
    %v1817 = vpack.c.b16 %v1485, %v1481
    %v1818 = vpack.c.b16 %v1486, %v1482
    %v1819 = vpack.c.b16 %v1487, %v1483
    %v1820 = vpack.c.b16 %v1488, %v1484
    %v1821 = vpack.c.b16 %v1493, %v1489
    %v1822 = vpack.c.b16 %v1494, %v1490
    %v1823 = vpack.c.b16 %v1495, %v1491
    %v1824 = vpack.c.b16 %v1496, %v1492
    %v1825 = vpack.c.b16 %v1501, %v1497
    %v1826 = vpack.c.b16 %v1502, %v1498
    %v1827 = vpack.c.b16 %v1503, %v1499
    %v1828 = vpack.c.b16 %v1504, %v1500
    %v1829 = vpack.c.b16 %v1509, %v1505
    %v1830 = vpack.c.b16 %v1510, %v1506
    %v1831 = vpack.c.b16 %v1511, %v1507
    %v1832 = vpack.c.b16 %v1512, %v1508
    %v1833 = vpack.c.b16 %v1517, %v1513
    %v1834 = vpack.c.b16 %v1518, %v1514
    %v1835 = vpack.c.b16 %v1519, %v1515
    %v1836 = vpack.c.b16 %v1520, %v1516
    %v1837 = vpack.c.b16 %v1525, %v1521
    %v1838 = vpack.c.b16 %v1526, %v1522
    %v1839 = vpack.c.b16 %v1527, %v1523
    %v1840 = vpack.c.b16 %v1528, %v1524
    %v1841 = vpack.c.b16 %v1533, %v1529
    %v1842 = vpack.c.b16 %v1534, %v1530
    %v1843 = vpack.c.b16 %v1535, %v1531
    %v1844 = vpack.c.b16 %v1536, %v1532
    %v1845 = vpack.c.b16 %v1541, %v1537
    %v1846 = vpack.c.b16 %v1542, %v1538
    %v1847 = vpack.c.b16 %v1543, %v1539
    %v1848 = vpack.c.b16 %v1544, %v1540
    %v1849 = vpack.c.b16 %v1549, %v1545
    %v1850 = vpack.c.b16 %v1550, %v1546
    %v1851 = vpack.c.b16 %v1551, %v1547
    %v1852 = vpack.c.b16 %v1552, %v1548
    %v1853 = vpack.c.b16 %v1557, %v1553
    %v1854 = vpack.c.b16 %v1558, %v1554
    %v1855 = vpack.c.b16 %v1559, %v1555
    %v1856 = vpack.c.b16 %v1560, %v1556
    %v1857 = vpack.c.b16 %v1565, %v1561
    %v1858 = vpack.c.b16 %v1566, %v1562
    %v1859 = vpack.c.b16 %v1567, %v1563
    %v1860 = vpack.c.b16 %v1568, %v1564
    %v1861 = vpack.c.b16 %v1573, %v1569
    %v1862 = vpack.c.b16 %v1574, %v1570
    %v1863 = vpack.c.b16 %v1575, %v1571
    %v1864 = vpack.c.b16 %v1576, %v1572
    %v1865 = vpack.c.b16 %v1581, %v1577
    %v1866 = vpack.c.b16 %v1582, %v1578
    %v1867 = vpack.c.b16 %v1583, %v1579
    %v1868 = vpack.c.b16 %v1584, %v1580
    %v1869 = vpack.c.b16 %v1589, %v1585
    %v1870 = vpack.c.b16 %v1590, %v1586
    %v1871 = vpack.c.b16 %v1591, %v1587
    %v1872 = vpack.c.b16 %v1592, %v1588
    %v1873 = vpack.c.b16 %v1597, %v1593
    %v1874 = vpack.c.b16 %v1598, %v1594
    %v1875 = vpack.c.b16 %v1599, %v1595
    %v1876 = vpack.c.b16 %v1600, %v1596
    %v1877 = vpack.c.b16 %v1605, %v1601
    %v1878 = vpack.c.b16 %v1606, %v1602
    %v1879 = vpack.c.b16 %v1607, %v1603
    %v1880 = vpack.c.b16 %v1608, %v1604
    %v1881 = vpack.c.b16 %v1613, %v1609
    %v1882 = vpack.c.b16 %v1614, %v1610
    %v1883 = vpack.c.b16 %v1615, %v1611
    %v1884 = vpack.c.b16 %v1616, %v1612
    %v1885 = vpack.c.b16 %v1621, %v1617
    %v1886 = vpack.c.b16 %v1622, %v1618
    %v1887 = vpack.c.b16 %v1623, %v1619
    %v1888 = vpack.c.b16 %v1624, %v1620
    %v1889 = vpack.c.b16 %v1629, %v1625
    %v1890 = vpack.c.b16 %v1630, %v1626
    %v1891 = vpack.c.b16 %v1631, %v1627
    %v1892 = vpack.c.b16 %v1632, %v1628
    %v1893 = vpack.c.b16 %v1637, %v1633
    %v1894 = vpack.c.b16 %v1638, %v1634
    %v1895 = vpack.c.b16 %v1639, %v1635
    %v1896 = vpack.c.b16 %v1640, %v1636
    %v1897 = vpack.c.b16 %v1645, %v1641
    %v1898 = vpack.c.b16 %v1646, %v1642
    %v1899 = vpack.c.b16 %v1647, %v1643
    %v1900 = vpack.c.b16 %v1648, %v1644
    %v1901 = vpack.c.b16 %v1653, %v1649
    %v1902 = vpack.c.b16 %v1654, %v1650
    %v1903 = vpack.c.b16 %v1655, %v1651
    %v1904 = vpack.c.b16 %v1656, %v1652
    %v1905 = vpack.c.b16 %v1661, %v1657
    %v1906 = vpack.c.b16 %v1662, %v1658
    %v1907 = vpack.c.b16 %v1663, %v1659
    %v1908 = vpack.c.b16 %v1664, %v1660
    %v1909 = vpack.c.b16 %v1669, %v1665
    %v1910 = vpack.c.b16 %v1670, %v1666
    %v1911 = vpack.c.b16 %v1671, %v1667
    %v1912 = vpack.c.b16 %v1672, %v1668
    %v1913 = vpack.c.b16 %v1677, %v1673
    %v1914 = vpack.c.b16 %v1678, %v1674
    %v1915 = vpack.c.b16 %v1679, %v1675
    %v1916 = vpack.c.b16 %v1680, %v1676
    %v1917 = vpack.c.b16 %v1685, %v1681
    %v1918 = vpack.c.b16 %v1686, %v1682
    %v1919 = vpack.c.b16 %v1687, %v1683
    %v1920 = vpack.c.b16 %v1688, %v1684
    %v1921 = vpack.c.b16 %v1693, %v1689
    %v1922 = vpack.c.b16 %v1694, %v1690
    %v1923 = vpack.c.b16 %v1695, %v1691
    %v1924 = vpack.c.b16 %v1696, %v1692
    %v1925 = vpack.c.b16 %v1701, %v1697
    %v1926 = vpack.c.b16 %v1702, %v1698
    %v1927 = vpack.c.b16 %v1703, %v1699
    %v1928 = vpack.c.b16 %v1704, %v1700
    %2153 = vmatprep.subr.bf16.mxu0 %v1706
    %2154 = vmatpush1.bf16.msra.mxu0 %v1705
    %2155 = vmatprep.subr.bf16.mxu0 %v1710
    %2156 = vmatpush1.bf16.msra.mxu0 %v1709
    %2157 = vmatprep.subr.bf16.mxu0 %v1714
    %2158 = vmatpush1.bf16.msra.mxu0 %v1713
    %2159 = vmatprep.subr.bf16.mxu0 %v1718
    %2160 = vmatpush1.bf16.msra.mxu0 %v1717
    %2161 = vmatprep.subr.bf16.mxu0 %v1722
    %2162 = vmatpush1.bf16.msra.mxu0 %v1721
    %2163 = vmatprep.subr.bf16.mxu0 %v1726
    %2164 = vmatpush1.bf16.msra.mxu0 %v1725
    %2165 = vmatprep.subr.bf16.mxu0 %v1730
    %2166 = vmatpush1.bf16.msra.mxu0 %v1729
    %2167 = vmatprep.subr.bf16.mxu0 %v1734
    %2168 = vmatpush1.bf16.msra.mxu0 %v1733
    %2169 = vmatprep.subr.bf16.mxu0 %v1738
    %2170 = vmatpush1.bf16.msra.mxu0 %v1737
    %2171 = vmatprep.subr.bf16.mxu0 %v1742
    %2172 = vmatpush1.bf16.msra.mxu0 %v1741
    %2173 = vmatprep.subr.bf16.mxu0 %v1746
    %2174 = vmatpush1.bf16.msra.mxu0 %v1745
    %2175 = vmatprep.subr.bf16.mxu0 %v1750
    %2176 = vmatpush1.bf16.msra.mxu0 %v1749
    %2177 = vmatprep.subr.bf16.mxu0 %v1754
    %2178 = vmatpush1.bf16.msra.mxu0 %v1753
    %2179 = vmatprep.subr.bf16.mxu0 %v1758
    %2180 = vmatpush1.bf16.msra.mxu0 %v1757
    %2181 = vmatprep.subr.bf16.mxu0 %v1762
    %2182 = vmatpush1.bf16.msra.mxu0 %v1761
    %2183 = vmatprep.subr.bf16.mxu0 %v1766
    %2184 = vmatpush1.bf16.msra.mxu0 %v1765
    %2185 = vmatprep.mubr.bf16.mxu0 %v810
    %2186 = vmatmul.mubr.bf16.gmra.mrb[0].mxu0 %v809
    %v2187 = vpop.f32.mrb[0].mxu0
    %v2188 = vadd.f32 %v440, %v2187
    %v2189 = vpop.f32.mrb[0].mxu0
    %v2190 = vadd.f32 %v444, %v2189
    %v2191 = vpop.f32.mrb[0].mxu0
    %v2192 = vadd.f32 %v440, %v2191
    %v2193 = vpop.f32.mrb[0].mxu0
    %v2194 = vadd.f32 %v444, %v2193
    %2195 = vmatprep.mubr.bf16.mxu0 %v817
    %2196 = vmatmul.mubr.bf16.gmra.mrb[0].mxu0 %v816
    %v2197 = vpop.f32.mrb[0].mxu0
    %v2198 = vadd.f32 %v440, %v2197
    %v2199 = vpop.f32.mrb[0].mxu0
    %v2200 = vadd.f32 %v444, %v2199
    %v2201 = vpop.f32.mrb[0].mxu0
    %v2202 = vadd.f32 %v440, %v2201
    %v2203 = vpop.f32.mrb[0].mxu0
    %v2204 = vadd.f32 %v444, %v2203
    %2205 = vmatprep.mubr.bf16.mxu0 %v824
    %2206 = vmatmul.mubr.bf16.gmra.mrb[0].mxu0 %v823
    %v2207 = vpop.f32.mrb[0].mxu0
    %v2208 = vadd.f32 %v440, %v2207
    %v2209 = vpop.f32.mrb[0].mxu0
    %v2210 = vadd.f32 %v444, %v2209
    %v2211 = vpop.f32.mrb[0].mxu0
    %v2212 = vadd.f32 %v440, %v2211
    %v2213 = vpop.f32.mrb[0].mxu0
    %v2214 = vadd.f32 %v444, %v2213
    %2215 = vmatprep.mubr.bf16.mxu0 %v831
    %2216 = vmatmul.mubr.bf16.gmra.mrb[0].mxu0 %v830
    %v2217 = vpop.f32.mrb[0].mxu0
    %v2218 = vadd.f32 %v440, %v2217
    %v2219 = vpop.f32.mrb[0].mxu0
    %v2220 = vadd.f32 %v444, %v2219
    %v2221 = vpop.f32.mrb[0].mxu0
    %v2222 = vadd.f32 %v440, %v2221
    %v2223 = vpop.f32.mrb[0].mxu0
    %v2224 = vadd.f32 %v444, %v2223
    %2225 = vmatprep.mubr.bf16.mxu0 %v838
    %2226 = vmatmul.mubr.bf16.gmra.mrb[0].mxu0 %v837
    %v2227 = vpop.f32.mrb[0].mxu0
    %v2228 = vadd.f32 %v440, %v2227
    %v2229 = vpop.f32.mrb[0].mxu0
    %v2230 = vadd.f32 %v444, %v2229
    %v2231 = vpop.f32.mrb[0].mxu0
    %v2232 = vadd.f32 %v440, %v2231
    %v2233 = vpop.f32.mrb[0].mxu0
    %v2234 = vadd.f32 %v444, %v2233
    %2235 = vmatprep.mubr.bf16.mxu0 %v845
    %2236 = vmatmul.mubr.bf16.gmra.mrb[0].mxu0 %v844
    %v2237 = vpop.f32.mrb[0].mxu0
    %v2238 = vadd.f32 %v440, %v2237
    %v2239 = vpop.f32.mrb[0].mxu0
    %v2240 = vadd.f32 %v444, %v2239
    %v2241 = vpop.f32.mrb[0].mxu0
    %v2242 = vadd.f32 %v440, %v2241
    %v2243 = vpop.f32.mrb[0].mxu0
    %v2244 = vadd.f32 %v444, %v2243
    %2245 = vmatprep.mubr.bf16.mxu0 %v852
    %2246 = vmatmul.mubr.bf16.gmra.mrb[0].mxu0 %v851
    %v2247 = vpop.f32.mrb[0].mxu0
    %v2248 = vadd.f32 %v440, %v2247
    %v2249 = vpop.f32.mrb[0].mxu0
    %v2250 = vadd.f32 %v444, %v2249
    %v2251 = vpop.f32.mrb[0].mxu0
    %v2252 = vadd.f32 %v440, %v2251
    %v2253 = vpop.f32.mrb[0].mxu0
    %v2254 = vadd.f32 %v444, %v2253
    %2255 = vmatprep.mubr.bf16.mxu0 %v859
    %2256 = vmatmul.mubr.bf16.gmra.mrb[0].mxu0 %v858
    %v2257 = vpop.f32.mrb[0].mxu0
    %v2258 = vadd.f32 %v440, %v2257
    %v2259 = vpop.f32.mrb[0].mxu0
    %v2260 = vadd.f32 %v444, %v2259
    %v2261 = vpop.f32.mrb[0].mxu0
    %v2262 = vadd.f32 %v440, %v2261
    %v2263 = vpop.f32.mrb[0].mxu0
    %v2264 = vadd.f32 %v444, %v2263
    %2265 = vmatprep.mubr.bf16.mxu0 %v866
    %2266 = vmatmul.mubr.bf16.gmra.mrb[0].mxu0 %v865
    %v2267 = vpop.f32.mrb[0].mxu0
    %v2268 = vadd.f32 %v440, %v2267
    %v2269 = vpop.f32.mrb[0].mxu0
    %v2270 = vadd.f32 %v444, %v2269
    %v2271 = vpop.f32.mrb[0].mxu0
    %v2272 = vadd.f32 %v440, %v2271
    %v2273 = vpop.f32.mrb[0].mxu0
    %v2274 = vadd.f32 %v444, %v2273
    %2275 = vmatprep.mubr.bf16.mxu0 %v873
    %2276 = vmatmul.mubr.bf16.gmra.mrb[0].mxu0 %v872
    %v2277 = vpop.f32.mrb[0].mxu0
    %v2278 = vadd.f32 %v440, %v2277
    %v2279 = vpop.f32.mrb[0].mxu0
    %v2280 = vadd.f32 %v444, %v2279
    %v2281 = vpop.f32.mrb[0].mxu0
    %v2282 = vadd.f32 %v440, %v2281
    %v2283 = vpop.f32.mrb[0].mxu0
    %v2284 = vadd.f32 %v444, %v2283
    %2285 = vmatprep.mubr.bf16.mxu0 %v880
    %2286 = vmatmul.mubr.bf16.gmra.mrb[0].mxu0 %v879
    %v2287 = vpop.f32.mrb[0].mxu0
    %v2288 = vadd.f32 %v440, %v2287
    %v2289 = vpop.f32.mrb[0].mxu0
    %v2290 = vadd.f32 %v444, %v2289
    %v2291 = vpop.f32.mrb[0].mxu0
    %v2292 = vadd.f32 %v440, %v2291
    %v2293 = vpop.f32.mrb[0].mxu0
    %v2294 = vadd.f32 %v444, %v2293
    %2295 = vmatprep.mubr.bf16.mxu0 %v887
    %2296 = vmatmul.mubr.bf16.gmra.mrb[0].mxu0 %v886
    %v2297 = vpop.f32.mrb[0].mxu0
    %v2298 = vadd.f32 %v440, %v2297
    %v2299 = vpop.f32.mrb[0].mxu0
    %v2300 = vadd.f32 %v444, %v2299
    %v2301 = vpop.f32.mrb[0].mxu0
    %v2302 = vadd.f32 %v440, %v2301
    %v2303 = vpop.f32.mrb[0].mxu0
    %v2304 = vadd.f32 %v444, %v2303
    %2305 = vmatprep.mubr.bf16.mxu0 %v894
    %2306 = vmatmul.mubr.bf16.gmra.mrb[0].mxu0 %v893
    %v2307 = vpop.f32.mrb[0].mxu0
    %v2308 = vadd.f32 %v440, %v2307
    %v2309 = vpop.f32.mrb[0].mxu0
    %v2310 = vadd.f32 %v444, %v2309
    %v2311 = vpop.f32.mrb[0].mxu0
    %v2312 = vadd.f32 %v440, %v2311
    %v2313 = vpop.f32.mrb[0].mxu0
    %v2314 = vadd.f32 %v444, %v2313
    %2315 = vmatprep.mubr.bf16.mxu0 %v901
    %2316 = vmatmul.mubr.bf16.gmra.mrb[0].mxu0 %v900
    %v2317 = vpop.f32.mrb[0].mxu0
    %v2318 = vadd.f32 %v440, %v2317
    %v2319 = vpop.f32.mrb[0].mxu0
    %v2320 = vadd.f32 %v444, %v2319
    %v2321 = vpop.f32.mrb[0].mxu0
    %v2322 = vadd.f32 %v440, %v2321
    %v2323 = vpop.f32.mrb[0].mxu0
    %v2324 = vadd.f32 %v444, %v2323
    %2325 = vmatprep.mubr.bf16.mxu0 %v908
    %2326 = vmatmul.mubr.bf16.gmra.mrb[0].mxu0 %v907
    %v2327 = vpop.f32.mrb[0].mxu0
    %v2328 = vadd.f32 %v440, %v2327
    %v2329 = vpop.f32.mrb[0].mxu0
    %v2330 = vadd.f32 %v444, %v2329
    %v2331 = vpop.f32.mrb[0].mxu0
    %v2332 = vadd.f32 %v440, %v2331
    %v2333 = vpop.f32.mrb[0].mxu0
    %v2334 = vadd.f32 %v444, %v2333
    %2335 = vmatprep.mubr.bf16.mxu0 %v915
    %2336 = vmatmul.mubr.bf16.gmra.mrb[0].mxu0 %v914
    %v2337 = vpop.f32.mrb[0].mxu0
    %v2338 = vadd.f32 %v440, %v2337
    %v2339 = vpop.f32.mrb[0].mxu0
    %v2340 = vadd.f32 %v444, %v2339
    %v2341 = vpop.f32.mrb[0].mxu0
    %v2342 = vadd.f32 %v440, %v2341
    %v2343 = vpop.f32.mrb[0].mxu0
    %v2344 = vadd.f32 %v444, %v2343
    %2345 = vdwg.mxu0
    %2346 = vmatprep.subr.bf16.mxu0 %v1770
    %2347 = vmatpush1.bf16.msra.mxu0 %v1769
    %2348 = vmatprep.subr.bf16.mxu0 %v1774
    %2349 = vmatpush1.bf16.msra.mxu0 %v1773
    %2350 = vmatprep.subr.bf16.mxu0 %v1778
    %2351 = vmatpush1.bf16.msra.mxu0 %v1777
    %2352 = vmatprep.subr.bf16.mxu0 %v1782
    %2353 = vmatpush1.bf16.msra.mxu0 %v1781
    %2354 = vmatprep.subr.bf16.mxu0 %v1786
    %2355 = vmatpush1.bf16.msra.mxu0 %v1785
    %2356 = vmatprep.subr.bf16.mxu0 %v1790
    %2357 = vmatpush1.bf16.msra.mxu0 %v1789
    %2358 = vmatprep.subr.bf16.mxu0 %v1794
    %2359 = vmatpush1.bf16.msra.mxu0 %v1793
    %2360 = vmatprep.subr.bf16.mxu0 %v1798
    %2361 = vmatpush1.bf16.msra.mxu0 %v1797
    %2362 = vmatprep.subr.bf16.mxu0 %v1802
    %2363 = vmatpush1.bf16.msra.mxu0 %v1801
    %2364 = vmatprep.subr.bf16.mxu0 %v1806
    %2365 = vmatpush1.bf16.msra.mxu0 %v1805
    %2366 = vmatprep.subr.bf16.mxu0 %v1810
    %2367 = vmatpush1.bf16.msra.mxu0 %v1809
    %2368 = vmatprep.subr.bf16.mxu0 %v1814
    %2369 = vmatpush1.bf16.msra.mxu0 %v1813
    %2370 = vmatprep.subr.bf16.mxu0 %v1818
    %2371 = vmatpush1.bf16.msra.mxu0 %v1817
    %2372 = vmatprep.subr.bf16.mxu0 %v1822
    %2373 = vmatpush1.bf16.msra.mxu0 %v1821
    %2374 = vmatprep.subr.bf16.mxu0 %v1826
    %2375 = vmatpush1.bf16.msra.mxu0 %v1825
    %2376 = vmatprep.subr.bf16.mxu0 %v1830
    %2377 = vmatpush1.bf16.msra.mxu0 %v1829
    %2378 = vmatprep.mubr.bf16.mxu0 %v812
    %2379 = vmatmul.mubr.bf16.gmra.mrb[0].mxu0 %v811
    %v2380 = vpop.f32.mrb[0].mxu0
    %v2381 = vadd.f32 %v2188, %v2380
    %v2382 = vpop.f32.mrb[0].mxu0
    %v2383 = vadd.f32 %v2190, %v2382
    %v2384 = vpop.f32.mrb[0].mxu0
    %v2385 = vadd.f32 %v2192, %v2384
    %v2386 = vpop.f32.mrb[0].mxu0
    %v2387 = vadd.f32 %v2194, %v2386
    %2388 = vmatprep.mubr.bf16.mxu0 %v819
    %2389 = vmatmul.mubr.bf16.gmra.mrb[0].mxu0 %v818
    %v2390 = vpop.f32.mrb[0].mxu0
    %v2391 = vadd.f32 %v2198, %v2390
    %v2392 = vpop.f32.mrb[0].mxu0
    %v2393 = vadd.f32 %v2200, %v2392
    %v2394 = vpop.f32.mrb[0].mxu0
    %v2395 = vadd.f32 %v2202, %v2394
    %v2396 = vpop.f32.mrb[0].mxu0
    %v2397 = vadd.f32 %v2204, %v2396
    %2398 = vmatprep.mubr.bf16.mxu0 %v826
    %2399 = vmatmul.mubr.bf16.gmra.mrb[0].mxu0 %v825
    %v2400 = vpop.f32.mrb[0].mxu0
    %v2401 = vadd.f32 %v2208, %v2400
    %v2402 = vpop.f32.mrb[0].mxu0
    %v2403 = vadd.f32 %v2210, %v2402
    %v2404 = vpop.f32.mrb[0].mxu0
    %v2405 = vadd.f32 %v2212, %v2404
    %v2406 = vpop.f32.mrb[0].mxu0
    %v2407 = vadd.f32 %v2214, %v2406
    %2408 = vmatprep.mubr.bf16.mxu0 %v833
    %2409 = vmatmul.mubr.bf16.gmra.mrb[0].mxu0 %v832
    %v2410 = vpop.f32.mrb[0].mxu0
    %v2411 = vadd.f32 %v2218, %v2410
    %v2412 = vpop.f32.mrb[0].mxu0
    %v2413 = vadd.f32 %v2220, %v2412
    %v2414 = vpop.f32.mrb[0].mxu0
    %v2415 = vadd.f32 %v2222, %v2414
    %v2416 = vpop.f32.mrb[0].mxu0
    %v2417 = vadd.f32 %v2224, %v2416
    %2418 = vmatprep.mubr.bf16.mxu0 %v840
    %2419 = vmatmul.mubr.bf16.gmra.mrb[0].mxu0 %v839
    %v2420 = vpop.f32.mrb[0].mxu0
    %v2421 = vadd.f32 %v2228, %v2420
    %v2422 = vpop.f32.mrb[0].mxu0
    %v2423 = vadd.f32 %v2230, %v2422
    %v2424 = vpop.f32.mrb[0].mxu0
    %v2425 = vadd.f32 %v2232, %v2424
    %v2426 = vpop.f32.mrb[0].mxu0
    %v2427 = vadd.f32 %v2234, %v2426
    %2428 = vmatprep.mubr.bf16.mxu0 %v847
    %2429 = vmatmul.mubr.bf16.gmra.mrb[0].mxu0 %v846
    %v2430 = vpop.f32.mrb[0].mxu0
    %v2431 = vadd.f32 %v2238, %v2430
    %v2432 = vpop.f32.mrb[0].mxu0
    %v2433 = vadd.f32 %v2240, %v2432
    %v2434 = vpop.f32.mrb[0].mxu0
    %v2435 = vadd.f32 %v2242, %v2434
    %v2436 = vpop.f32.mrb[0].mxu0
    %v2437 = vadd.f32 %v2244, %v2436
    %2438 = vmatprep.mubr.bf16.mxu0 %v854
    %2439 = vmatmul.mubr.bf16.gmra.mrb[0].mxu0 %v853
    %v2440 = vpop.f32.mrb[0].mxu0
    %v2441 = vadd.f32 %v2248, %v2440
    %v2442 = vpop.f32.mrb[0].mxu0
    %v2443 = vadd.f32 %v2250, %v2442
    %v2444 = vpop.f32.mrb[0].mxu0
    %v2445 = vadd.f32 %v2252, %v2444
    %v2446 = vpop.f32.mrb[0].mxu0
    %v2447 = vadd.f32 %v2254, %v2446
    %2448 = vmatprep.mubr.bf16.mxu0 %v861
    %2449 = vmatmul.mubr.bf16.gmra.mrb[0].mxu0 %v860
    %v2450 = vpop.f32.mrb[0].mxu0
    %v2451 = vadd.f32 %v2258, %v2450
    %v2452 = vpop.f32.mrb[0].mxu0
    %v2453 = vadd.f32 %v2260, %v2452
    %v2454 = vpop.f32.mrb[0].mxu0
    %v2455 = vadd.f32 %v2262, %v2454
    %v2456 = vpop.f32.mrb[0].mxu0
    %v2457 = vadd.f32 %v2264, %v2456
    %2458 = vmatprep.mubr.bf16.mxu0 %v868
    %2459 = vmatmul.mubr.bf16.gmra.mrb[0].mxu0 %v867
    %v2460 = vpop.f32.mrb[0].mxu0
    %v2461 = vadd.f32 %v2268, %v2460
    %v2462 = vpop.f32.mrb[0].mxu0
    %v2463 = vadd.f32 %v2270, %v2462
    %v2464 = vpop.f32.mrb[0].mxu0
    %v2465 = vadd.f32 %v2272, %v2464
    %v2466 = vpop.f32.mrb[0].mxu0
    %v2467 = vadd.f32 %v2274, %v2466
    %2468 = vmatprep.mubr.bf16.mxu0 %v875
    %2469 = vmatmul.mubr.bf16.gmra.mrb[0].mxu0 %v874
    %v2470 = vpop.f32.mrb[0].mxu0
    %v2471 = vadd.f32 %v2278, %v2470
    %v2472 = vpop.f32.mrb[0].mxu0
    %v2473 = vadd.f32 %v2280, %v2472
    %v2474 = vpop.f32.mrb[0].mxu0
    %v2475 = vadd.f32 %v2282, %v2474
    %v2476 = vpop.f32.mrb[0].mxu0
    %v2477 = vadd.f32 %v2284, %v2476
    %2478 = vmatprep.mubr.bf16.mxu0 %v882
    %2479 = vmatmul.mubr.bf16.gmra.mrb[0].mxu0 %v881
    %v2480 = vpop.f32.mrb[0].mxu0
    %v2481 = vadd.f32 %v2288, %v2480
    %v2482 = vpop.f32.mrb[0].mxu0
    %v2483 = vadd.f32 %v2290, %v2482
    %v2484 = vpop.f32.mrb[0].mxu0
    %v2485 = vadd.f32 %v2292, %v2484
    %v2486 = vpop.f32.mrb[0].mxu0
    %v2487 = vadd.f32 %v2294, %v2486
    %2488 = vmatprep.mubr.bf16.mxu0 %v889
    %2489 = vmatmul.mubr.bf16.gmra.mrb[0].mxu0 %v888
    %v2490 = vpop.f32.mrb[0].mxu0
    %v2491 = vadd.f32 %v2298, %v2490
    %v2492 = vpop.f32.mrb[0].mxu0
    %v2493 = vadd.f32 %v2300, %v2492
    %v2494 = vpop.f32.mrb[0].mxu0
    %v2495 = vadd.f32 %v2302, %v2494
    %v2496 = vpop.f32.mrb[0].mxu0
    %v2497 = vadd.f32 %v2304, %v2496
    %2498 = vmatprep.mubr.bf16.mxu0 %v896
    %2499 = vmatmul.mubr.bf16.gmra.mrb[0].mxu0 %v895
    %v2500 = vpop.f32.mrb[0].mxu0
    %v2501 = vadd.f32 %v2308, %v2500
    %v2502 = vpop.f32.mrb[0].mxu0
    %v2503 = vadd.f32 %v2310, %v2502
    %v2504 = vpop.f32.mrb[0].mxu0
    %v2505 = vadd.f32 %v2312, %v2504
    %v2506 = vpop.f32.mrb[0].mxu0
    %v2507 = vadd.f32 %v2314, %v2506
    %2508 = vmatprep.mubr.bf16.mxu0 %v903
    %2509 = vmatmul.mubr.bf16.gmra.mrb[0].mxu0 %v902
    %v2510 = vpop.f32.mrb[0].mxu0
    %v2511 = vadd.f32 %v2318, %v2510
    %v2512 = vpop.f32.mrb[0].mxu0
    %v2513 = vadd.f32 %v2320, %v2512
    %v2514 = vpop.f32.mrb[0].mxu0
    %v2515 = vadd.f32 %v2322, %v2514
    %v2516 = vpop.f32.mrb[0].mxu0
    %v2517 = vadd.f32 %v2324, %v2516
    %2518 = vmatprep.mubr.bf16.mxu0 %v910
    %2519 = vmatmul.mubr.bf16.gmra.mrb[0].mxu0 %v909
    %v2520 = vpop.f32.mrb[0].mxu0
    %v2521 = vadd.f32 %v2328, %v2520
    %v2522 = vpop.f32.mrb[0].mxu0
    %v2523 = vadd.f32 %v2330, %v2522
    %v2524 = vpop.f32.mrb[0].mxu0
    %v2525 = vadd.f32 %v2332, %v2524
    %v2526 = vpop.f32.mrb[0].mxu0
    %v2527 = vadd.f32 %v2334, %v2526
    %2528 = vmatprep.mubr.bf16.mxu0 %v917
    %2529 = vmatmul.mubr.bf16.gmra.mrb[0].mxu0 %v916
    %v2530 = vpop.f32.mrb[0].mxu0
    %v2531 = vadd.f32 %v2338, %v2530
    %v2532 = vpop.f32.mrb[0].mxu0
    %v2533 = vadd.f32 %v2340, %v2532
    %v2534 = vpop.f32.mrb[0].mxu0
    %v2535 = vadd.f32 %v2342, %v2534
    %v2536 = vpop.f32.mrb[0].mxu0
    %v2537 = vadd.f32 %v2344, %v2536
    %2538 = vdwg.mxu0
    %2539 = vmatprep.subr.bf16.mxu0 %v1834
    %2540 = vmatpush1.bf16.msra.mxu0 %v1833
    %2541 = vmatprep.subr.bf16.mxu0 %v1838
    %2542 = vmatpush1.bf16.msra.mxu0 %v1837
    %2543 = vmatprep.subr.bf16.mxu0 %v1842
    %2544 = vmatpush1.bf16.msra.mxu0 %v1841
    %2545 = vmatprep.subr.bf16.mxu0 %v1846
    %2546 = vmatpush1.bf16.msra.mxu0 %v1845
    %2547 = vmatprep.subr.bf16.mxu0 %v1850
    %2548 = vmatpush1.bf16.msra.mxu0 %v1849
    %2549 = vmatprep.subr.bf16.mxu0 %v1854
    %2550 = vmatpush1.bf16.msra.mxu0 %v1853
    %2551 = vmatprep.subr.bf16.mxu0 %v1858
    %2552 = vmatpush1.bf16.msra.mxu0 %v1857
    %2553 = vmatprep.subr.bf16.mxu0 %v1862
    %2554 = vmatpush1.bf16.msra.mxu0 %v1861
    %2555 = vmatprep.subr.bf16.mxu0 %v1866
    %2556 = vmatpush1.bf16.msra.mxu0 %v1865
    %2557 = vmatprep.subr.bf16.mxu0 %v1870
    %2558 = vmatpush1.bf16.msra.mxu0 %v1869
    %2559 = vmatprep.subr.bf16.mxu0 %v1874
    %2560 = vmatpush1.bf16.msra.mxu0 %v1873
    %2561 = vmatprep.subr.bf16.mxu0 %v1878
    %2562 = vmatpush1.bf16.msra.mxu0 %v1877
    %2563 = vmatprep.subr.bf16.mxu0 %v1882
    %2564 = vmatpush1.bf16.msra.mxu0 %v1881
    %2565 = vmatprep.subr.bf16.mxu0 %v1886
    %2566 = vmatpush1.bf16.msra.mxu0 %v1885
    %2567 = vmatprep.subr.bf16.mxu0 %v1890
    %2568 = vmatpush1.bf16.msra.mxu0 %v1889
    %2569 = vmatprep.subr.bf16.mxu0 %v1894
    %2570 = vmatpush1.bf16.msra.mxu0 %v1893
    %2571 = vmatprep.mubr.bf16.mxu0 %v814
    %2572 = vmatmul.mubr.bf16.gmra.mrb[0].mxu0 %v813
    %v2573 = vpop.f32.mrb[0].mxu0
    %v2574 = vadd.f32 %v2381, %v2573
    %v2575 = vpop.f32.mrb[0].mxu0
    %v2576 = vadd.f32 %v2383, %v2575
    %v2577 = vpop.f32.mrb[0].mxu0
    %v2578 = vadd.f32 %v2385, %v2577
    %v2579 = vpop.f32.mrb[0].mxu0
    %v2580 = vadd.f32 %v2387, %v2579
    %2581 = vmatprep.mubr.bf16.mxu0 %v821
    %2582 = vmatmul.mubr.bf16.gmra.mrb[0].mxu0 %v820
    %v2583 = vpop.f32.mrb[0].mxu0
    %v2584 = vadd.f32 %v2391, %v2583
    %v2585 = vpop.f32.mrb[0].mxu0
    %v2586 = vadd.f32 %v2393, %v2585
    %v2587 = vpop.f32.mrb[0].mxu0
    %v2588 = vadd.f32 %v2395, %v2587
    %v2589 = vpop.f32.mrb[0].mxu0
    %v2590 = vadd.f32 %v2397, %v2589
    %2591 = vmatprep.mubr.bf16.mxu0 %v828
    %2592 = vmatmul.mubr.bf16.gmra.mrb[0].mxu0 %v827
    %v2593 = vpop.f32.mrb[0].mxu0
    %v2594 = vadd.f32 %v2401, %v2593
    %v2595 = vpop.f32.mrb[0].mxu0
    %v2596 = vadd.f32 %v2403, %v2595
    %v2597 = vpop.f32.mrb[0].mxu0
    %v2598 = vadd.f32 %v2405, %v2597
    %v2599 = vpop.f32.mrb[0].mxu0
    %v2600 = vadd.f32 %v2407, %v2599
    %2601 = vmatprep.mubr.bf16.mxu0 %v835
    %2602 = vmatmul.mubr.bf16.gmra.mrb[0].mxu0 %v834
    %v2603 = vpop.f32.mrb[0].mxu0
    %v2604 = vadd.f32 %v2411, %v2603
    %v2605 = vpop.f32.mrb[0].mxu0
    %v2606 = vadd.f32 %v2413, %v2605
    %v2607 = vpop.f32.mrb[0].mxu0
    %v2608 = vadd.f32 %v2415, %v2607
    %v2609 = vpop.f32.mrb[0].mxu0
    %v2610 = vadd.f32 %v2417, %v2609
    %2611 = vmatprep.mubr.bf16.mxu0 %v842
    %2612 = vmatmul.mubr.bf16.gmra.mrb[0].mxu0 %v841
    %v2613 = vpop.f32.mrb[0].mxu0
    %v2614 = vadd.f32 %v2421, %v2613
    %v2615 = vpop.f32.mrb[0].mxu0
    %v2616 = vadd.f32 %v2423, %v2615
    %v2617 = vpop.f32.mrb[0].mxu0
    %v2618 = vadd.f32 %v2425, %v2617
    %v2619 = vpop.f32.mrb[0].mxu0
    %v2620 = vadd.f32 %v2427, %v2619
    %2621 = vmatprep.mubr.bf16.mxu0 %v849
    %2622 = vmatmul.mubr.bf16.gmra.mrb[0].mxu0 %v848
    %v2623 = vpop.f32.mrb[0].mxu0
    %v2624 = vadd.f32 %v2431, %v2623
    %v2625 = vpop.f32.mrb[0].mxu0
    %v2626 = vadd.f32 %v2433, %v2625
    %v2627 = vpop.f32.mrb[0].mxu0
    %v2628 = vadd.f32 %v2435, %v2627
    %v2629 = vpop.f32.mrb[0].mxu0
    %v2630 = vadd.f32 %v2437, %v2629
    %2631 = vmatprep.mubr.bf16.mxu0 %v856
    %2632 = vmatmul.mubr.bf16.gmra.mrb[0].mxu0 %v855
    %v2633 = vpop.f32.mrb[0].mxu0
    %v2634 = vadd.f32 %v2441, %v2633
    %v2635 = vpop.f32.mrb[0].mxu0
    %v2636 = vadd.f32 %v2443, %v2635
    %v2637 = vpop.f32.mrb[0].mxu0
    %v2638 = vadd.f32 %v2445, %v2637
    %v2639 = vpop.f32.mrb[0].mxu0
    %v2640 = vadd.f32 %v2447, %v2639
    %2641 = vmatprep.mubr.bf16.mxu0 %v863
    %2642 = vmatmul.mubr.bf16.gmra.mrb[0].mxu0 %v862
    %v2643 = vpop.f32.mrb[0].mxu0
    %v2644 = vadd.f32 %v2451, %v2643
    %v2645 = vpop.f32.mrb[0].mxu0
    %v2646 = vadd.f32 %v2453, %v2645
    %v2647 = vpop.f32.mrb[0].mxu0
    %v2648 = vadd.f32 %v2455, %v2647
    %v2649 = vpop.f32.mrb[0].mxu0
    %v2650 = vadd.f32 %v2457, %v2649
    %2651 = vmatprep.mubr.bf16.mxu0 %v870
    %2652 = vmatmul.mubr.bf16.gmra.mrb[0].mxu0 %v869
    %v2653 = vpop.f32.mrb[0].mxu0
    %v2654 = vadd.f32 %v2461, %v2653
    %v2655 = vpop.f32.mrb[0].mxu0
    %v2656 = vadd.f32 %v2463, %v2655
    %v2657 = vpop.f32.mrb[0].mxu0
    %v2658 = vadd.f32 %v2465, %v2657
    %v2659 = vpop.f32.mrb[0].mxu0
    %v2660 = vadd.f32 %v2467, %v2659
    %2661 = vmatprep.mubr.bf16.mxu0 %v877
    %2662 = vmatmul.mubr.bf16.gmra.mrb[0].mxu0 %v876
    %v2663 = vpop.f32.mrb[0].mxu0
    %v2664 = vadd.f32 %v2471, %v2663
    %v2665 = vpop.f32.mrb[0].mxu0
    %v2666 = vadd.f32 %v2473, %v2665
    %v2667 = vpop.f32.mrb[0].mxu0
    %v2668 = vadd.f32 %v2475, %v2667
    %v2669 = vpop.f32.mrb[0].mxu0
    %v2670 = vadd.f32 %v2477, %v2669
    %2671 = vmatprep.mubr.bf16.mxu0 %v884
    %2672 = vmatmul.mubr.bf16.gmra.mrb[0].mxu0 %v883
    %v2673 = vpop.f32.mrb[0].mxu0
    %v2674 = vadd.f32 %v2481, %v2673
    %v2675 = vpop.f32.mrb[0].mxu0
    %v2676 = vadd.f32 %v2483, %v2675
    %v2677 = vpop.f32.mrb[0].mxu0
    %v2678 = vadd.f32 %v2485, %v2677
    %v2679 = vpop.f32.mrb[0].mxu0
    %v2680 = vadd.f32 %v2487, %v2679
    %2681 = vmatprep.mubr.bf16.mxu0 %v891
    %2682 = vmatmul.mubr.bf16.gmra.mrb[0].mxu0 %v890
    %v2683 = vpop.f32.mrb[0].mxu0
    %v2684 = vadd.f32 %v2491, %v2683
    %v2685 = vpop.f32.mrb[0].mxu0
    %v2686 = vadd.f32 %v2493, %v2685
    %v2687 = vpop.f32.mrb[0].mxu0
    %v2688 = vadd.f32 %v2495, %v2687
    %v2689 = vpop.f32.mrb[0].mxu0
    %v2690 = vadd.f32 %v2497, %v2689
    %2691 = vmatprep.mubr.bf16.mxu0 %v898
    %2692 = vmatmul.mubr.bf16.gmra.mrb[0].mxu0 %v897
    %v2693 = vpop.f32.mrb[0].mxu0
    %v2694 = vadd.f32 %v2501, %v2693
    %v2695 = vpop.f32.mrb[0].mxu0
    %v2696 = vadd.f32 %v2503, %v2695
    %v2697 = vpop.f32.mrb[0].mxu0
    %v2698 = vadd.f32 %v2505, %v2697
    %v2699 = vpop.f32.mrb[0].mxu0
    %v2700 = vadd.f32 %v2507, %v2699
    %2701 = vmatprep.mubr.bf16.mxu0 %v905
    %2702 = vmatmul.mubr.bf16.gmra.mrb[0].mxu0 %v904
    %v2703 = vpop.f32.mrb[0].mxu0
    %v2704 = vadd.f32 %v2511, %v2703
    %v2705 = vpop.f32.mrb[0].mxu0
    %v2706 = vadd.f32 %v2513, %v2705
    %v2707 = vpop.f32.mrb[0].mxu0
    %v2708 = vadd.f32 %v2515, %v2707
    %v2709 = vpop.f32.mrb[0].mxu0
    %v2710 = vadd.f32 %v2517, %v2709
    %2711 = vmatprep.mubr.bf16.mxu0 %v912
    %2712 = vmatmul.mubr.bf16.gmra.mrb[0].mxu0 %v911
    %v2713 = vpop.f32.mrb[0].mxu0
    %v2714 = vadd.f32 %v2521, %v2713
    %v2715 = vpop.f32.mrb[0].mxu0
    %v2716 = vadd.f32 %v2523, %v2715
    %v2717 = vpop.f32.mrb[0].mxu0
    %v2718 = vadd.f32 %v2525, %v2717
    %v2719 = vpop.f32.mrb[0].mxu0
    %v2720 = vadd.f32 %v2527, %v2719
    %2721 = vmatprep.mubr.bf16.mxu0 %v919
    %2722 = vmatmul.mubr.bf16.gmra.mrb[0].mxu0 %v918
    %v2723 = vpop.f32.mrb[0].mxu0
    %v2724 = vadd.f32 %v2531, %v2723
    %v2725 = vpop.f32.mrb[0].mxu0
    %v2726 = vadd.f32 %v2533, %v2725
    %v2727 = vpop.f32.mrb[0].mxu0
    %v2728 = vadd.f32 %v2535, %v2727
    %v2729 = vpop.f32.mrb[0].mxu0
    %v2730 = vadd.f32 %v2537, %v2729
    %2731 = vdwg.mxu0
    %2732 = vmatprep.subr.bf16.mxu0 %v1898
    %2733 = vmatpush1.bf16.msra.mxu0 %v1897
    %2734 = vmatprep.subr.bf16.mxu0 %v1902
    %2735 = vmatpush1.bf16.msra.mxu0 %v1901
    %2736 = vmatprep.subr.bf16.mxu0 %v1906
    %2737 = vmatpush1.bf16.msra.mxu0 %v1905
    %2738 = vmatprep.subr.bf16.mxu0 %v1910
    %2739 = vmatpush1.bf16.msra.mxu0 %v1909
    %2740 = vmatprep.subr.bf16.mxu0 %v1914
    %2741 = vmatpush1.bf16.msra.mxu0 %v1913
    %2742 = vmatprep.subr.bf16.mxu0 %v1918
    %2743 = vmatpush1.bf16.msra.mxu0 %v1917
    %2744 = vmatprep.subr.bf16.mxu0 %v1922
    %2745 = vmatpush1.bf16.msra.mxu0 %v1921
    %2746 = vmatprep.subr.bf16.mxu0 %v1926
    %2747 = vmatpush1.bf16.msra.mxu0 %v1925
    %2748 = vmatprep.subr.bf16.mxu0 0
    %2749 = vmatpush1.bf16.msra.mxu0 0
    %2750 = vmatprep.subr.bf16.mxu0 0
    %2751 = vmatpush1.bf16.msra.mxu0 0
    %2752 = vmatprep.subr.bf16.mxu0 0
    %2753 = vmatpush1.bf16.msra.mxu0 0
    %2754 = vmatprep.subr.bf16.mxu0 0
    %2755 = vmatpush1.bf16.msra.mxu0 0
    %2756 = vmatprep.subr.bf16.mxu0 0
    %2757 = vmatpush1.bf16.msra.mxu0 0
    %2758 = vmatprep.subr.bf16.mxu0 0
    %2759 = vmatpush1.bf16.msra.mxu0 0
    %2760 = vmatprep.subr.bf16.mxu0 0
    %2761 = vmatpush1.bf16.msra.mxu0 0
    %2762 = vmatprep.subr.bf16.mxu0 0
    %2763 = vmatpush1.bf16.msra.mxu0 0
    %2764 = vmatprep.mubr.bf16.mxu0 0
    %2765 = vmatmul.mubr.bf16.gmra.mrb[0].mxu0 %v815
    %v2766 = vpop.f32.mrb[0].mxu0
    %v2767 = vadd.f32 %v2574, %v2766
    %v2768 = vpop.f32.mrb[0].mxu0
    %v2769 = vadd.f32 %v2576, %v2768
    %v2770 = vpop.f32.mrb[0].mxu0
    %v2771 = vadd.f32 %v2578, %v2770
    %v2772 = vpop.f32.mrb[0].mxu0
    %v2773 = vadd.f32 %v2580, %v2772
    %2774 = vmatprep.mubr.bf16.mxu0 0
    %2775 = vmatmul.mubr.bf16.gmra.mrb[0].mxu0 %v822
    %v2776 = vpop.f32.mrb[0].mxu0
    %v2777 = vadd.f32 %v2584, %v2776
    %v2778 = vpop.f32.mrb[0].mxu0
    %v2779 = vadd.f32 %v2586, %v2778
    %v2780 = vpop.f32.mrb[0].mxu0
    %v2781 = vadd.f32 %v2588, %v2780
    %v2782 = vpop.f32.mrb[0].mxu0
    %v2783 = vadd.f32 %v2590, %v2782
    %2784 = vmatprep.mubr.bf16.mxu0 0
    %2785 = vmatmul.mubr.bf16.gmra.mrb[0].mxu0 %v829
    %v2786 = vpop.f32.mrb[0].mxu0
    %v2787 = vadd.f32 %v2594, %v2786
    %v2788 = vpop.f32.mrb[0].mxu0
    %v2789 = vadd.f32 %v2596, %v2788
    %v2790 = vpop.f32.mrb[0].mxu0
    %v2791 = vadd.f32 %v2598, %v2790
    %v2792 = vpop.f32.mrb[0].mxu0
    %v2793 = vadd.f32 %v2600, %v2792
    %2794 = vmatprep.mubr.bf16.mxu0 0
    %2795 = vmatmul.mubr.bf16.gmra.mrb[0].mxu0 %v836
    %v2796 = vpop.f32.mrb[0].mxu0
    %v2797 = vadd.f32 %v2604, %v2796
    %v2798 = vpop.f32.mrb[0].mxu0
    %v2799 = vadd.f32 %v2606, %v2798
    %v2800 = vpop.f32.mrb[0].mxu0
    %v2801 = vadd.f32 %v2608, %v2800
    %v2802 = vpop.f32.mrb[0].mxu0
    %v2803 = vadd.f32 %v2610, %v2802
    %2804 = vmatprep.mubr.bf16.mxu0 0
    %2805 = vmatmul.mubr.bf16.gmra.mrb[0].mxu0 %v843
    %v2806 = vpop.f32.mrb[0].mxu0
    %v2807 = vadd.f32 %v2614, %v2806
    %v2808 = vpop.f32.mrb[0].mxu0
    %v2809 = vadd.f32 %v2616, %v2808
    %v2810 = vpop.f32.mrb[0].mxu0
    %v2811 = vadd.f32 %v2618, %v2810
    %v2812 = vpop.f32.mrb[0].mxu0
    %v2813 = vadd.f32 %v2620, %v2812
    %2814 = vmatprep.mubr.bf16.mxu0 0
    %2815 = vmatmul.mubr.bf16.gmra.mrb[0].mxu0 %v850
    %v2816 = vpop.f32.mrb[0].mxu0
    %v2817 = vadd.f32 %v2624, %v2816
    %v2818 = vpop.f32.mrb[0].mxu0
    %v2819 = vadd.f32 %v2626, %v2818
    %v2820 = vpop.f32.mrb[0].mxu0
    %v2821 = vadd.f32 %v2628, %v2820
    %v2822 = vpop.f32.mrb[0].mxu0
    %v2823 = vadd.f32 %v2630, %v2822
    %2824 = vmatprep.mubr.bf16.mxu0 0
    %2825 = vmatmul.mubr.bf16.gmra.mrb[0].mxu0 %v857
    %v2826 = vpop.f32.mrb[0].mxu0
    %v2827 = vadd.f32 %v2634, %v2826
    %v2828 = vpop.f32.mrb[0].mxu0
    %v2829 = vadd.f32 %v2636, %v2828
    %v2830 = vpop.f32.mrb[0].mxu0
    %v2831 = vadd.f32 %v2638, %v2830
    %v2832 = vpop.f32.mrb[0].mxu0
    %v2833 = vadd.f32 %v2640, %v2832
    %2834 = vmatprep.mubr.bf16.mxu0 0
    %2835 = vmatmul.mubr.bf16.gmra.mrb[0].mxu0 %v864
    %v2836 = vpop.f32.mrb[0].mxu0
    %v2837 = vadd.f32 %v2644, %v2836
    %v2838 = vpop.f32.mrb[0].mxu0
    %v2839 = vadd.f32 %v2646, %v2838
    %v2840 = vpop.f32.mrb[0].mxu0
    %v2841 = vadd.f32 %v2648, %v2840
    %v2842 = vpop.f32.mrb[0].mxu0
    %v2843 = vadd.f32 %v2650, %v2842
    %2844 = vmatprep.mubr.bf16.mxu0 0
    %2845 = vmatmul.mubr.bf16.gmra.mrb[0].mxu0 %v871
    %v2846 = vpop.f32.mrb[0].mxu0
    %v2847 = vadd.f32 %v2654, %v2846
    %v2848 = vpop.f32.mrb[0].mxu0
    %v2849 = vadd.f32 %v2656, %v2848
    %v2850 = vpop.f32.mrb[0].mxu0
    %v2851 = vadd.f32 %v2658, %v2850
    %v2852 = vpop.f32.mrb[0].mxu0
    %v2853 = vadd.f32 %v2660, %v2852
    %2854 = vmatprep.mubr.bf16.mxu0 0
    %2855 = vmatmul.mubr.bf16.gmra.mrb[0].mxu0 %v878
    %v2856 = vpop.f32.mrb[0].mxu0
    %v2857 = vadd.f32 %v2664, %v2856
    %v2858 = vpop.f32.mrb[0].mxu0
    %v2859 = vadd.f32 %v2666, %v2858
    %v2860 = vpop.f32.mrb[0].mxu0
    %v2861 = vadd.f32 %v2668, %v2860
    %v2862 = vpop.f32.mrb[0].mxu0
    %v2863 = vadd.f32 %v2670, %v2862
    %2864 = vmatprep.mubr.bf16.mxu0 0
    %2865 = vmatmul.mubr.bf16.gmra.mrb[0].mxu0 %v885
    %v2866 = vpop.f32.mrb[0].mxu0
    %v2867 = vadd.f32 %v2674, %v2866
    %v2868 = vpop.f32.mrb[0].mxu0
    %v2869 = vadd.f32 %v2676, %v2868
    %v2870 = vpop.f32.mrb[0].mxu0
    %v2871 = vadd.f32 %v2678, %v2870
    %v2872 = vpop.f32.mrb[0].mxu0
    %v2873 = vadd.f32 %v2680, %v2872
    %2874 = vmatprep.mubr.bf16.mxu0 0
    %2875 = vmatmul.mubr.bf16.gmra.mrb[0].mxu0 %v892
    %v2876 = vpop.f32.mrb[0].mxu0
    %v2877 = vadd.f32 %v2684, %v2876
    %v2878 = vpop.f32.mrb[0].mxu0
    %v2879 = vadd.f32 %v2686, %v2878
    %v2880 = vpop.f32.mrb[0].mxu0
    %v2881 = vadd.f32 %v2688, %v2880
    %v2882 = vpop.f32.mrb[0].mxu0
    %v2883 = vadd.f32 %v2690, %v2882
    %2884 = vmatprep.mubr.bf16.mxu0 0
    %2885 = vmatmul.mubr.bf16.gmra.mrb[0].mxu0 %v899
    %v2886 = vpop.f32.mrb[0].mxu0
    %v2887 = vadd.f32 %v2694, %v2886
    %v2888 = vpop.f32.mrb[0].mxu0
    %v2889 = vadd.f32 %v2696, %v2888
    %v2890 = vpop.f32.mrb[0].mxu0
    %v2891 = vadd.f32 %v2698, %v2890
    %v2892 = vpop.f32.mrb[0].mxu0
    %v2893 = vadd.f32 %v2700, %v2892
    %2894 = vmatprep.mubr.bf16.mxu0 0
    %2895 = vmatmul.mubr.bf16.gmra.mrb[0].mxu0 %v906
    %v2896 = vpop.f32.mrb[0].mxu0
    %v2897 = vadd.f32 %v2704, %v2896
    %v2898 = vpop.f32.mrb[0].mxu0
    %v2899 = vadd.f32 %v2706, %v2898
    %v2900 = vpop.f32.mrb[0].mxu0
    %v2901 = vadd.f32 %v2708, %v2900
    %v2902 = vpop.f32.mrb[0].mxu0
    %v2903 = vadd.f32 %v2710, %v2902
    %2904 = vmatprep.mubr.bf16.mxu0 0
    %2905 = vmatmul.mubr.bf16.gmra.mrb[0].mxu0 %v913
    %v2906 = vpop.f32.mrb[0].mxu0
    %v2907 = vadd.f32 %v2714, %v2906
    %v2908 = vpop.f32.mrb[0].mxu0
    %v2909 = vadd.f32 %v2716, %v2908
    %v2910 = vpop.f32.mrb[0].mxu0
    %v2911 = vadd.f32 %v2718, %v2910
    %v2912 = vpop.f32.mrb[0].mxu0
    %v2913 = vadd.f32 %v2720, %v2912
    %2914 = vmatprep.mubr.bf16.mxu0 0
    %2915 = vmatmul.mubr.bf16.gmra.mrb[0].mxu0 %v920
    %v2916 = vpop.f32.mrb[0].mxu0
    %v2917 = vadd.f32 %v2724, %v2916
    %v2918 = vpop.f32.mrb[0].mxu0
    %v2919 = vadd.f32 %v2726, %v2918
    %v2920 = vpop.f32.mrb[0].mxu0
    %v2921 = vadd.f32 %v2728, %v2920
    %v2922 = vpop.f32.mrb[0].mxu0
    %v2923 = vadd.f32 %v2730, %v2922
    %2924 = vdwg.mxu0
    %2925 = vmatprep.subr.bf16.mxu0 %v1708
    %2926 = vmatpush1.bf16.msra.mxu0 %v1707
    %2927 = vmatprep.subr.bf16.mxu0 %v1712
    %2928 = vmatpush1.bf16.msra.mxu0 %v1711
    %2929 = vmatprep.subr.bf16.mxu0 %v1716
    %2930 = vmatpush1.bf16.msra.mxu0 %v1715
    %2931 = vmatprep.subr.bf16.mxu0 %v1720
    %2932 = vmatpush1.bf16.msra.mxu0 %v1719
    %2933 = vmatprep.subr.bf16.mxu0 %v1724
    %2934 = vmatpush1.bf16.msra.mxu0 %v1723
    %2935 = vmatprep.subr.bf16.mxu0 %v1728
    %2936 = vmatpush1.bf16.msra.mxu0 %v1727
    %2937 = vmatprep.subr.bf16.mxu0 %v1732
    %2938 = vmatpush1.bf16.msra.mxu0 %v1731
    %2939 = vmatprep.subr.bf16.mxu0 %v1736
    %2940 = vmatpush1.bf16.msra.mxu0 %v1735
    %2941 = vmatprep.subr.bf16.mxu0 %v1740
    %2942 = vmatpush1.bf16.msra.mxu0 %v1739
    %2943 = vmatprep.subr.bf16.mxu0 %v1744
    %2944 = vmatpush1.bf16.msra.mxu0 %v1743
    %2945 = vmatprep.subr.bf16.mxu0 %v1748
    %2946 = vmatpush1.bf16.msra.mxu0 %v1747
    %2947 = vmatprep.subr.bf16.mxu0 %v1752
    %2948 = vmatpush1.bf16.msra.mxu0 %v1751
    %2949 = vmatprep.subr.bf16.mxu0 %v1756
    %2950 = vmatpush1.bf16.msra.mxu0 %v1755
    %2951 = vmatprep.subr.bf16.mxu0 %v1760
    %2952 = vmatpush1.bf16.msra.mxu0 %v1759
    %2953 = vmatprep.subr.bf16.mxu0 %v1764
    %2954 = vmatpush1.bf16.msra.mxu0 %v1763
    %2955 = vmatprep.subr.bf16.mxu0 %v1768
    %2956 = vmatpush1.bf16.msra.mxu0 %v1767
    %2957 = vmatprep.mubr.bf16.mxu0 %v810
    %2958 = vmatmul.mubr.bf16.gmra.mrb[0].mxu0 %v809
    %v2959 = vpop.f32.mrb[0].mxu0
    %v2960 = vadd.f32 %v448, %v2959
    %v2961 = vpop.f32.mrb[0].mxu0
    %v2962 = vadd.f32 %v452, %v2961
    %v2963 = vpop.f32.mrb[0].mxu0
    %v2964 = vadd.f32 %v448, %v2963
    %v2965 = vpop.f32.mrb[0].mxu0
    %v2966 = vadd.f32 %v452, %v2965
    %2967 = vmatprep.mubr.bf16.mxu0 %v817
    %2968 = vmatmul.mubr.bf16.gmra.mrb[0].mxu0 %v816
    %v2969 = vpop.f32.mrb[0].mxu0
    %v2970 = vadd.f32 %v448, %v2969
    %v2971 = vpop.f32.mrb[0].mxu0
    %v2972 = vadd.f32 %v452, %v2971
    %v2973 = vpop.f32.mrb[0].mxu0
    %v2974 = vadd.f32 %v448, %v2973
    %v2975 = vpop.f32.mrb[0].mxu0
    %v2976 = vadd.f32 %v452, %v2975
    %2977 = vmatprep.mubr.bf16.mxu0 %v824
    %2978 = vmatmul.mubr.bf16.gmra.mrb[0].mxu0 %v823
    %v2979 = vpop.f32.mrb[0].mxu0
    %v2980 = vadd.f32 %v448, %v2979
    %v2981 = vpop.f32.mrb[0].mxu0
    %v2982 = vadd.f32 %v452, %v2981
    %v2983 = vpop.f32.mrb[0].mxu0
    %v2984 = vadd.f32 %v448, %v2983
    %v2985 = vpop.f32.mrb[0].mxu0
    %v2986 = vadd.f32 %v452, %v2985
    %2987 = vmatprep.mubr.bf16.mxu0 %v831
    %2988 = vmatmul.mubr.bf16.gmra.mrb[0].mxu0 %v830
    %v2989 = vpop.f32.mrb[0].mxu0
    %v2990 = vadd.f32 %v448, %v2989
    %v2991 = vpop.f32.mrb[0].mxu0
    %v2992 = vadd.f32 %v452, %v2991
    %v2993 = vpop.f32.mrb[0].mxu0
    %v2994 = vadd.f32 %v448, %v2993
    %v2995 = vpop.f32.mrb[0].mxu0
    %v2996 = vadd.f32 %v452, %v2995
    %2997 = vmatprep.mubr.bf16.mxu0 %v838
    %2998 = vmatmul.mubr.bf16.gmra.mrb[0].mxu0 %v837
    %v2999 = vpop.f32.mrb[0].mxu0
    %v3000 = vadd.f32 %v448, %v2999
    %v3001 = vpop.f32.mrb[0].mxu0
    %v3002 = vadd.f32 %v452, %v3001
    %v3003 = vpop.f32.mrb[0].mxu0
    %v3004 = vadd.f32 %v448, %v3003
    %v3005 = vpop.f32.mrb[0].mxu0
    %v3006 = vadd.f32 %v452, %v3005
    %3007 = vmatprep.mubr.bf16.mxu0 %v845
    %3008 = vmatmul.mubr.bf16.gmra.mrb[0].mxu0 %v844
    %v3009 = vpop.f32.mrb[0].mxu0
    %v3010 = vadd.f32 %v448, %v3009
    %v3011 = vpop.f32.mrb[0].mxu0
    %v3012 = vadd.f32 %v452, %v3011
    %v3013 = vpop.f32.mrb[0].mxu0
    %v3014 = vadd.f32 %v448, %v3013
    %v3015 = vpop.f32.mrb[0].mxu0
    %v3016 = vadd.f32 %v452, %v3015
    %3017 = vmatprep.mubr.bf16.mxu0 %v852
    %3018 = vmatmul.mubr.bf16.gmra.mrb[0].mxu0 %v851
    %v3019 = vpop.f32.mrb[0].mxu0
    %v3020 = vadd.f32 %v448, %v3019
    %v3021 = vpop.f32.mrb[0].mxu0
    %v3022 = vadd.f32 %v452, %v3021
    %v3023 = vpop.f32.mrb[0].mxu0
    %v3024 = vadd.f32 %v448, %v3023
    %v3025 = vpop.f32.mrb[0].mxu0
    %v3026 = vadd.f32 %v452, %v3025
    %3027 = vmatprep.mubr.bf16.mxu0 %v859
    %3028 = vmatmul.mubr.bf16.gmra.mrb[0].mxu0 %v858
    %v3029 = vpop.f32.mrb[0].mxu0
    %v3030 = vadd.f32 %v448, %v3029
    %v3031 = vpop.f32.mrb[0].mxu0
    %v3032 = vadd.f32 %v452, %v3031
    %v3033 = vpop.f32.mrb[0].mxu0
    %v3034 = vadd.f32 %v448, %v3033
    %v3035 = vpop.f32.mrb[0].mxu0
    %v3036 = vadd.f32 %v452, %v3035
    %3037 = vmatprep.mubr.bf16.mxu0 %v866
    %3038 = vmatmul.mubr.bf16.gmra.mrb[0].mxu0 %v865
    %v3039 = vpop.f32.mrb[0].mxu0
    %v3040 = vadd.f32 %v448, %v3039
    %v3041 = vpop.f32.mrb[0].mxu0
    %v3042 = vadd.f32 %v452, %v3041
    %v3043 = vpop.f32.mrb[0].mxu0
    %v3044 = vadd.f32 %v448, %v3043
    %v3045 = vpop.f32.mrb[0].mxu0
    %v3046 = vadd.f32 %v452, %v3045
    %3047 = vmatprep.mubr.bf16.mxu0 %v873
    %3048 = vmatmul.mubr.bf16.gmra.mrb[0].mxu0 %v872
    %v3049 = vpop.f32.mrb[0].mxu0
    %v3050 = vadd.f32 %v448, %v3049
    %v3051 = vpop.f32.mrb[0].mxu0
    %v3052 = vadd.f32 %v452, %v3051
    %v3053 = vpop.f32.mrb[0].mxu0
    %v3054 = vadd.f32 %v448, %v3053
    %v3055 = vpop.f32.mrb[0].mxu0
    %v3056 = vadd.f32 %v452, %v3055
    %3057 = vmatprep.mubr.bf16.mxu0 %v880
    %3058 = vmatmul.mubr.bf16.gmra.mrb[0].mxu0 %v879
    %v3059 = vpop.f32.mrb[0].mxu0
    %v3060 = vadd.f32 %v448, %v3059
    %v3061 = vpop.f32.mrb[0].mxu0
    %v3062 = vadd.f32 %v452, %v3061
    %v3063 = vpop.f32.mrb[0].mxu0
    %v3064 = vadd.f32 %v448, %v3063
    %v3065 = vpop.f32.mrb[0].mxu0
    %v3066 = vadd.f32 %v452, %v3065
    %3067 = vmatprep.mubr.bf16.mxu0 %v887
    %3068 = vmatmul.mubr.bf16.gmra.mrb[0].mxu0 %v886
    %v3069 = vpop.f32.mrb[0].mxu0
    %v3070 = vadd.f32 %v448, %v3069
    %v3071 = vpop.f32.mrb[0].mxu0
    %v3072 = vadd.f32 %v452, %v3071
    %v3073 = vpop.f32.mrb[0].mxu0
    %v3074 = vadd.f32 %v448, %v3073
    %v3075 = vpop.f32.mrb[0].mxu0
    %v3076 = vadd.f32 %v452, %v3075
    %3077 = vmatprep.mubr.bf16.mxu0 %v894
    %3078 = vmatmul.mubr.bf16.gmra.mrb[0].mxu0 %v893
    %v3079 = vpop.f32.mrb[0].mxu0
    %v3080 = vadd.f32 %v448, %v3079
    %v3081 = vpop.f32.mrb[0].mxu0
    %v3082 = vadd.f32 %v452, %v3081
    %v3083 = vpop.f32.mrb[0].mxu0
    %v3084 = vadd.f32 %v448, %v3083
    %v3085 = vpop.f32.mrb[0].mxu0
    %v3086 = vadd.f32 %v452, %v3085
    %3087 = vmatprep.mubr.bf16.mxu0 %v901
    %3088 = vmatmul.mubr.bf16.gmra.mrb[0].mxu0 %v900
    %v3089 = vpop.f32.mrb[0].mxu0
    %v3090 = vadd.f32 %v448, %v3089
    %v3091 = vpop.f32.mrb[0].mxu0
    %v3092 = vadd.f32 %v452, %v3091
    %v3093 = vpop.f32.mrb[0].mxu0
    %v3094 = vadd.f32 %v448, %v3093
    %v3095 = vpop.f32.mrb[0].mxu0
    %v3096 = vadd.f32 %v452, %v3095
    %3097 = vmatprep.mubr.bf16.mxu0 %v908
    %3098 = vmatmul.mubr.bf16.gmra.mrb[0].mxu0 %v907
    %v3099 = vpop.f32.mrb[0].mxu0
    %v3100 = vadd.f32 %v448, %v3099
    %v3101 = vpop.f32.mrb[0].mxu0
    %v3102 = vadd.f32 %v452, %v3101
    %v3103 = vpop.f32.mrb[0].mxu0
    %v3104 = vadd.f32 %v448, %v3103
    %v3105 = vpop.f32.mrb[0].mxu0
    %v3106 = vadd.f32 %v452, %v3105
    %3107 = vmatprep.mubr.bf16.mxu0 %v915
    %3108 = vmatmul.mubr.bf16.gmra.mrb[0].mxu0 %v914
    %v3109 = vpop.f32.mrb[0].mxu0
    %v3110 = vadd.f32 %v448, %v3109
    %v3111 = vpop.f32.mrb[0].mxu0
    %v3112 = vadd.f32 %v452, %v3111
    %v3113 = vpop.f32.mrb[0].mxu0
    %v3114 = vadd.f32 %v448, %v3113
    %v3115 = vpop.f32.mrb[0].mxu0
    %v3116 = vadd.f32 %v452, %v3115
    %3117 = vdwg.mxu0
    %3118 = vmatprep.subr.bf16.mxu0 %v1772
    %3119 = vmatpush1.bf16.msra.mxu0 %v1771
    %3120 = vmatprep.subr.bf16.mxu0 %v1776
    %3121 = vmatpush1.bf16.msra.mxu0 %v1775
    %3122 = vmatprep.subr.bf16.mxu0 %v1780
    %3123 = vmatpush1.bf16.msra.mxu0 %v1779
    %3124 = vmatprep.subr.bf16.mxu0 %v1784
    %3125 = vmatpush1.bf16.msra.mxu0 %v1783
    %3126 = vmatprep.subr.bf16.mxu0 %v1788
    %3127 = vmatpush1.bf16.msra.mxu0 %v1787
    %3128 = vmatprep.subr.bf16.mxu0 %v1792
    %3129 = vmatpush1.bf16.msra.mxu0 %v1791
    %3130 = vmatprep.subr.bf16.mxu0 %v1796
    %3131 = vmatpush1.bf16.msra.mxu0 %v1795
    %3132 = vmatprep.subr.bf16.mxu0 %v1800
    %3133 = vmatpush1.bf16.msra.mxu0 %v1799
    %3134 = vmatprep.subr.bf16.mxu0 %v1804
    %3135 = vmatpush1.bf16.msra.mxu0 %v1803
    %3136 = vmatprep.subr.bf16.mxu0 %v1808
    %3137 = vmatpush1.bf16.msra.mxu0 %v1807
    %3138 = vmatprep.subr.bf16.mxu0 %v1812
    %3139 = vmatpush1.bf16.msra.mxu0 %v1811
    %3140 = vmatprep.subr.bf16.mxu0 %v1816
    %3141 = vmatpush1.bf16.msra.mxu0 %v1815
    %3142 = vmatprep.subr.bf16.mxu0 %v1820
    %3143 = vmatpush1.bf16.msra.mxu0 %v1819
    %3144 = vmatprep.subr.bf16.mxu0 %v1824
    %3145 = vmatpush1.bf16.msra.mxu0 %v1823
    %3146 = vmatprep.subr.bf16.mxu0 %v1828
    %3147 = vmatpush1.bf16.msra.mxu0 %v1827
    %3148 = vmatprep.subr.bf16.mxu0 %v1832
    %3149 = vmatpush1.bf16.msra.mxu0 %v1831
    %3150 = vmatprep.mubr.bf16.mxu0 %v812
    %3151 = vmatmul.mubr.bf16.gmra.mrb[0].mxu0 %v811
    %v3152 = vpop.f32.mrb[0].mxu0
    %v3153 = vadd.f32 %v2960, %v3152
    %v3154 = vpop.f32.mrb[0].mxu0
    %v3155 = vadd.f32 %v2962, %v3154
    %v3156 = vpop.f32.mrb[0].mxu0
    %v3157 = vadd.f32 %v2964, %v3156
    %v3158 = vpop.f32.mrb[0].mxu0
    %v3159 = vadd.f32 %v2966, %v3158
    %3160 = vmatprep.mubr.bf16.mxu0 %v819
    %3161 = vmatmul.mubr.bf16.gmra.mrb[0].mxu0 %v818
    %v3162 = vpop.f32.mrb[0].mxu0
    %v3163 = vadd.f32 %v2970, %v3162
    %v3164 = vpop.f32.mrb[0].mxu0
    %v3165 = vadd.f32 %v2972, %v3164
    %v3166 = vpop.f32.mrb[0].mxu0
    %v3167 = vadd.f32 %v2974, %v3166
    %v3168 = vpop.f32.mrb[0].mxu0
    %v3169 = vadd.f32 %v2976, %v3168
    %3170 = vmatprep.mubr.bf16.mxu0 %v826
    %3171 = vmatmul.mubr.bf16.gmra.mrb[0].mxu0 %v825
    %v3172 = vpop.f32.mrb[0].mxu0
    %v3173 = vadd.f32 %v2980, %v3172
    %v3174 = vpop.f32.mrb[0].mxu0
    %v3175 = vadd.f32 %v2982, %v3174
    %v3176 = vpop.f32.mrb[0].mxu0
    %v3177 = vadd.f32 %v2984, %v3176
    %v3178 = vpop.f32.mrb[0].mxu0
    %v3179 = vadd.f32 %v2986, %v3178
    %3180 = vmatprep.mubr.bf16.mxu0 %v833
    %3181 = vmatmul.mubr.bf16.gmra.mrb[0].mxu0 %v832
    %v3182 = vpop.f32.mrb[0].mxu0
    %v3183 = vadd.f32 %v2990, %v3182
    %v3184 = vpop.f32.mrb[0].mxu0
    %v3185 = vadd.f32 %v2992, %v3184
    %v3186 = vpop.f32.mrb[0].mxu0
    %v3187 = vadd.f32 %v2994, %v3186
    %v3188 = vpop.f32.mrb[0].mxu0
    %v3189 = vadd.f32 %v2996, %v3188
    %3190 = vmatprep.mubr.bf16.mxu0 %v840
    %3191 = vmatmul.mubr.bf16.gmra.mrb[0].mxu0 %v839
    %v3192 = vpop.f32.mrb[0].mxu0
    %v3193 = vadd.f32 %v3000, %v3192
    %v3194 = vpop.f32.mrb[0].mxu0
    %v3195 = vadd.f32 %v3002, %v3194
    %v3196 = vpop.f32.mrb[0].mxu0
    %v3197 = vadd.f32 %v3004, %v3196
    %v3198 = vpop.f32.mrb[0].mxu0
    %v3199 = vadd.f32 %v3006, %v3198
    %3200 = vmatprep.mubr.bf16.mxu0 %v847
    %3201 = vmatmul.mubr.bf16.gmra.mrb[0].mxu0 %v846
    %v3202 = vpop.f32.mrb[0].mxu0
    %v3203 = vadd.f32 %v3010, %v3202
    %v3204 = vpop.f32.mrb[0].mxu0
    %v3205 = vadd.f32 %v3012, %v3204
    %v3206 = vpop.f32.mrb[0].mxu0
    %v3207 = vadd.f32 %v3014, %v3206
    %v3208 = vpop.f32.mrb[0].mxu0
    %v3209 = vadd.f32 %v3016, %v3208
    %3210 = vmatprep.mubr.bf16.mxu0 %v854
    %3211 = vmatmul.mubr.bf16.gmra.mrb[0].mxu0 %v853
    %v3212 = vpop.f32.mrb[0].mxu0
    %v3213 = vadd.f32 %v3020, %v3212
    %v3214 = vpop.f32.mrb[0].mxu0
    %v3215 = vadd.f32 %v3022, %v3214
    %v3216 = vpop.f32.mrb[0].mxu0
    %v3217 = vadd.f32 %v3024, %v3216
    %v3218 = vpop.f32.mrb[0].mxu0
    %v3219 = vadd.f32 %v3026, %v3218
    %3220 = vmatprep.mubr.bf16.mxu0 %v861
    %3221 = vmatmul.mubr.bf16.gmra.mrb[0].mxu0 %v860
    %v3222 = vpop.f32.mrb[0].mxu0
    %v3223 = vadd.f32 %v3030, %v3222
    %v3224 = vpop.f32.mrb[0].mxu0
    %v3225 = vadd.f32 %v3032, %v3224
    %v3226 = vpop.f32.mrb[0].mxu0
    %v3227 = vadd.f32 %v3034, %v3226
    %v3228 = vpop.f32.mrb[0].mxu0
    %v3229 = vadd.f32 %v3036, %v3228
    %3230 = vmatprep.mubr.bf16.mxu0 %v868
    %3231 = vmatmul.mubr.bf16.gmra.mrb[0].mxu0 %v867
    %v3232 = vpop.f32.mrb[0].mxu0
    %v3233 = vadd.f32 %v3040, %v3232
    %v3234 = vpop.f32.mrb[0].mxu0
    %v3235 = vadd.f32 %v3042, %v3234
    %v3236 = vpop.f32.mrb[0].mxu0
    %v3237 = vadd.f32 %v3044, %v3236
    %v3238 = vpop.f32.mrb[0].mxu0
    %v3239 = vadd.f32 %v3046, %v3238
    %3240 = vmatprep.mubr.bf16.mxu0 %v875
    %3241 = vmatmul.mubr.bf16.gmra.mrb[0].mxu0 %v874
    %v3242 = vpop.f32.mrb[0].mxu0
    %v3243 = vadd.f32 %v3050, %v3242
    %v3244 = vpop.f32.mrb[0].mxu0
    %v3245 = vadd.f32 %v3052, %v3244
    %v3246 = vpop.f32.mrb[0].mxu0
    %v3247 = vadd.f32 %v3054, %v3246
    %v3248 = vpop.f32.mrb[0].mxu0
    %v3249 = vadd.f32 %v3056, %v3248
    %3250 = vmatprep.mubr.bf16.mxu0 %v882
    %3251 = vmatmul.mubr.bf16.gmra.mrb[0].mxu0 %v881
    %v3252 = vpop.f32.mrb[0].mxu0
    %v3253 = vadd.f32 %v3060, %v3252
    %v3254 = vpop.f32.mrb[0].mxu0
    %v3255 = vadd.f32 %v3062, %v3254
    %v3256 = vpop.f32.mrb[0].mxu0
    %v3257 = vadd.f32 %v3064, %v3256
    %v3258 = vpop.f32.mrb[0].mxu0
    %v3259 = vadd.f32 %v3066, %v3258
    %3260 = vmatprep.mubr.bf16.mxu0 %v889
    %3261 = vmatmul.mubr.bf16.gmra.mrb[0].mxu0 %v888
    %v3262 = vpop.f32.mrb[0].mxu0
    %v3263 = vadd.f32 %v3070, %v3262
    %v3264 = vpop.f32.mrb[0].mxu0
    %v3265 = vadd.f32 %v3072, %v3264
    %v3266 = vpop.f32.mrb[0].mxu0
    %v3267 = vadd.f32 %v3074, %v3266
    %v3268 = vpop.f32.mrb[0].mxu0
    %v3269 = vadd.f32 %v3076, %v3268
    %3270 = vmatprep.mubr.bf16.mxu0 %v896
    %3271 = vmatmul.mubr.bf16.gmra.mrb[0].mxu0 %v895
    %v3272 = vpop.f32.mrb[0].mxu0
    %v3273 = vadd.f32 %v3080, %v3272
    %v3274 = vpop.f32.mrb[0].mxu0
    %v3275 = vadd.f32 %v3082, %v3274
    %v3276 = vpop.f32.mrb[0].mxu0
    %v3277 = vadd.f32 %v3084, %v3276
    %v3278 = vpop.f32.mrb[0].mxu0
    %v3279 = vadd.f32 %v3086, %v3278
    %3280 = vmatprep.mubr.bf16.mxu0 %v903
    %3281 = vmatmul.mubr.bf16.gmra.mrb[0].mxu0 %v902
    %v3282 = vpop.f32.mrb[0].mxu0
    %v3283 = vadd.f32 %v3090, %v3282
    %v3284 = vpop.f32.mrb[0].mxu0
    %v3285 = vadd.f32 %v3092, %v3284
    %v3286 = vpop.f32.mrb[0].mxu0
    %v3287 = vadd.f32 %v3094, %v3286
    %v3288 = vpop.f32.mrb[0].mxu0
    %v3289 = vadd.f32 %v3096, %v3288
    %3290 = vmatprep.mubr.bf16.mxu0 %v910
    %3291 = vmatmul.mubr.bf16.gmra.mrb[0].mxu0 %v909
    %v3292 = vpop.f32.mrb[0].mxu0
    %v3293 = vadd.f32 %v3100, %v3292
    %v3294 = vpop.f32.mrb[0].mxu0
    %v3295 = vadd.f32 %v3102, %v3294
    %v3296 = vpop.f32.mrb[0].mxu0
    %v3297 = vadd.f32 %v3104, %v3296
    %v3298 = vpop.f32.mrb[0].mxu0
    %v3299 = vadd.f32 %v3106, %v3298
    %3300 = vmatprep.mubr.bf16.mxu0 %v917
    %3301 = vmatmul.mubr.bf16.gmra.mrb[0].mxu0 %v916
    %v3302 = vpop.f32.mrb[0].mxu0
    %v3303 = vadd.f32 %v3110, %v3302
    %v3304 = vpop.f32.mrb[0].mxu0
    %v3305 = vadd.f32 %v3112, %v3304
    %v3306 = vpop.f32.mrb[0].mxu0
    %v3307 = vadd.f32 %v3114, %v3306
    %v3308 = vpop.f32.mrb[0].mxu0
    %v3309 = vadd.f32 %v3116, %v3308
    %3310 = vdwg.mxu0
    %3311 = vmatprep.subr.bf16.mxu0 %v1836
    %3312 = vmatpush1.bf16.msra.mxu0 %v1835
    %3313 = vmatprep.subr.bf16.mxu0 %v1840
    %3314 = vmatpush1.bf16.msra.mxu0 %v1839
    %3315 = vmatprep.subr.bf16.mxu0 %v1844
    %3316 = vmatpush1.bf16.msra.mxu0 %v1843
    %3317 = vmatprep.subr.bf16.mxu0 %v1848
    %3318 = vmatpush1.bf16.msra.mxu0 %v1847
    %3319 = vmatprep.subr.bf16.mxu0 %v1852
    %3320 = vmatpush1.bf16.msra.mxu0 %v1851
    %3321 = vmatprep.subr.bf16.mxu0 %v1856
    %3322 = vmatpush1.bf16.msra.mxu0 %v1855
    %3323 = vmatprep.subr.bf16.mxu0 %v1860
    %3324 = vmatpush1.bf16.msra.mxu0 %v1859
    %3325 = vmatprep.subr.bf16.mxu0 %v1864
    %3326 = vmatpush1.bf16.msra.mxu0 %v1863
    %3327 = vmatprep.subr.bf16.mxu0 %v1868
    %3328 = vmatpush1.bf16.msra.mxu0 %v1867
    %3329 = vmatprep.subr.bf16.mxu0 %v1872
    %3330 = vmatpush1.bf16.msra.mxu0 %v1871
    %3331 = vmatprep.subr.bf16.mxu0 %v1876
    %3332 = vmatpush1.bf16.msra.mxu0 %v1875
    %3333 = vmatprep.subr.bf16.mxu0 %v1880
    %3334 = vmatpush1.bf16.msra.mxu0 %v1879
    %3335 = vmatprep.subr.bf16.mxu0 %v1884
    %3336 = vmatpush1.bf16.msra.mxu0 %v1883
    %3337 = vmatprep.subr.bf16.mxu0 %v1888
    %3338 = vmatpush1.bf16.msra.mxu0 %v1887
    %3339 = vmatprep.subr.bf16.mxu0 %v1892
    %3340 = vmatpush1.bf16.msra.mxu0 %v1891
    %3341 = vmatprep.subr.bf16.mxu0 %v1896
    %3342 = vmatpush1.bf16.msra.mxu0 %v1895
    %3343 = vmatprep.mubr.bf16.mxu0 %v814
    %3344 = vmatmul.mubr.bf16.gmra.mrb[0].mxu0 %v813
    %v3345 = vpop.f32.mrb[0].mxu0
    %v3346 = vadd.f32 %v3153, %v3345
    %v3347 = vpop.f32.mrb[0].mxu0
    %v3348 = vadd.f32 %v3155, %v3347
    %v3349 = vpop.f32.mrb[0].mxu0
    %v3350 = vadd.f32 %v3157, %v3349
    %v3351 = vpop.f32.mrb[0].mxu0
    %v3352 = vadd.f32 %v3159, %v3351
    %3353 = vmatprep.mubr.bf16.mxu0 %v821
    %3354 = vmatmul.mubr.bf16.gmra.mrb[0].mxu0 %v820
    %v3355 = vpop.f32.mrb[0].mxu0
    %v3356 = vadd.f32 %v3163, %v3355
    %v3357 = vpop.f32.mrb[0].mxu0
    %v3358 = vadd.f32 %v3165, %v3357
    %v3359 = vpop.f32.mrb[0].mxu0
    %v3360 = vadd.f32 %v3167, %v3359
    %v3361 = vpop.f32.mrb[0].mxu0
    %v3362 = vadd.f32 %v3169, %v3361
    %3363 = vmatprep.mubr.bf16.mxu0 %v828
    %3364 = vmatmul.mubr.bf16.gmra.mrb[0].mxu0 %v827
    %v3365 = vpop.f32.mrb[0].mxu0
    %v3366 = vadd.f32 %v3173, %v3365
    %v3367 = vpop.f32.mrb[0].mxu0
    %v3368 = vadd.f32 %v3175, %v3367
    %v3369 = vpop.f32.mrb[0].mxu0
    %v3370 = vadd.f32 %v3177, %v3369
    %v3371 = vpop.f32.mrb[0].mxu0
    %v3372 = vadd.f32 %v3179, %v3371
    %3373 = vmatprep.mubr.bf16.mxu0 %v835
    %3374 = vmatmul.mubr.bf16.gmra.mrb[0].mxu0 %v834
    %v3375 = vpop.f32.mrb[0].mxu0
    %v3376 = vadd.f32 %v3183, %v3375
    %v3377 = vpop.f32.mrb[0].mxu0
    %v3378 = vadd.f32 %v3185, %v3377
    %v3379 = vpop.f32.mrb[0].mxu0
    %v3380 = vadd.f32 %v3187, %v3379
    %v3381 = vpop.f32.mrb[0].mxu0
    %v3382 = vadd.f32 %v3189, %v3381
    %3383 = vmatprep.mubr.bf16.mxu0 %v842
    %3384 = vmatmul.mubr.bf16.gmra.mrb[0].mxu0 %v841
    %v3385 = vpop.f32.mrb[0].mxu0
    %v3386 = vadd.f32 %v3193, %v3385
    %v3387 = vpop.f32.mrb[0].mxu0
    %v3388 = vadd.f32 %v3195, %v3387
    %v3389 = vpop.f32.mrb[0].mxu0
    %v3390 = vadd.f32 %v3197, %v3389
    %v3391 = vpop.f32.mrb[0].mxu0
    %v3392 = vadd.f32 %v3199, %v3391
    %3393 = vmatprep.mubr.bf16.mxu0 %v849
    %3394 = vmatmul.mubr.bf16.gmra.mrb[0].mxu0 %v848
    %v3395 = vpop.f32.mrb[0].mxu0
    %v3396 = vadd.f32 %v3203, %v3395
    %v3397 = vpop.f32.mrb[0].mxu0
    %v3398 = vadd.f32 %v3205, %v3397
    %v3399 = vpop.f32.mrb[0].mxu0
    %v3400 = vadd.f32 %v3207, %v3399
    %v3401 = vpop.f32.mrb[0].mxu0
    %v3402 = vadd.f32 %v3209, %v3401
    %3403 = vmatprep.mubr.bf16.mxu0 %v856
    %3404 = vmatmul.mubr.bf16.gmra.mrb[0].mxu0 %v855
    %v3405 = vpop.f32.mrb[0].mxu0
    %v3406 = vadd.f32 %v3213, %v3405
    %v3407 = vpop.f32.mrb[0].mxu0
    %v3408 = vadd.f32 %v3215, %v3407
    %v3409 = vpop.f32.mrb[0].mxu0
    %v3410 = vadd.f32 %v3217, %v3409
    %v3411 = vpop.f32.mrb[0].mxu0
    %v3412 = vadd.f32 %v3219, %v3411
    %3413 = vmatprep.mubr.bf16.mxu0 %v863
    %3414 = vmatmul.mubr.bf16.gmra.mrb[0].mxu0 %v862
    %v3415 = vpop.f32.mrb[0].mxu0
    %v3416 = vadd.f32 %v3223, %v3415
    %v3417 = vpop.f32.mrb[0].mxu0
    %v3418 = vadd.f32 %v3225, %v3417
    %v3419 = vpop.f32.mrb[0].mxu0
    %v3420 = vadd.f32 %v3227, %v3419
    %v3421 = vpop.f32.mrb[0].mxu0
    %v3422 = vadd.f32 %v3229, %v3421
    %3423 = vmatprep.mubr.bf16.mxu0 %v870
    %3424 = vmatmul.mubr.bf16.gmra.mrb[0].mxu0 %v869
    %v3425 = vpop.f32.mrb[0].mxu0
    %v3426 = vadd.f32 %v3233, %v3425
    %v3427 = vpop.f32.mrb[0].mxu0
    %v3428 = vadd.f32 %v3235, %v3427
    %v3429 = vpop.f32.mrb[0].mxu0
    %v3430 = vadd.f32 %v3237, %v3429
    %v3431 = vpop.f32.mrb[0].mxu0
    %v3432 = vadd.f32 %v3239, %v3431
    %3433 = vmatprep.mubr.bf16.mxu0 %v877
    %3434 = vmatmul.mubr.bf16.gmra.mrb[0].mxu0 %v876
    %v3435 = vpop.f32.mrb[0].mxu0
    %v3436 = vadd.f32 %v3243, %v3435
    %v3437 = vpop.f32.mrb[0].mxu0
    %v3438 = vadd.f32 %v3245, %v3437
    %v3439 = vpop.f32.mrb[0].mxu0
    %v3440 = vadd.f32 %v3247, %v3439
    %v3441 = vpop.f32.mrb[0].mxu0
    %v3442 = vadd.f32 %v3249, %v3441
    %3443 = vmatprep.mubr.bf16.mxu0 %v884
    %3444 = vmatmul.mubr.bf16.gmra.mrb[0].mxu0 %v883
    %v3445 = vpop.f32.mrb[0].mxu0
    %v3446 = vadd.f32 %v3253, %v3445
    %v3447 = vpop.f32.mrb[0].mxu0
    %v3448 = vadd.f32 %v3255, %v3447
    %v3449 = vpop.f32.mrb[0].mxu0
    %v3450 = vadd.f32 %v3257, %v3449
    %v3451 = vpop.f32.mrb[0].mxu0
    %v3452 = vadd.f32 %v3259, %v3451
    %3453 = vmatprep.mubr.bf16.mxu0 %v891
    %3454 = vmatmul.mubr.bf16.gmra.mrb[0].mxu0 %v890
    %v3455 = vpop.f32.mrb[0].mxu0
    %v3456 = vadd.f32 %v3263, %v3455
    %v3457 = vpop.f32.mrb[0].mxu0
    %v3458 = vadd.f32 %v3265, %v3457
    %v3459 = vpop.f32.mrb[0].mxu0
    %v3460 = vadd.f32 %v3267, %v3459
    %v3461 = vpop.f32.mrb[0].mxu0
    %v3462 = vadd.f32 %v3269, %v3461
    %3463 = vmatprep.mubr.bf16.mxu0 %v898
    %3464 = vmatmul.mubr.bf16.gmra.mrb[0].mxu0 %v897
    %v3465 = vpop.f32.mrb[0].mxu0
    %v3466 = vadd.f32 %v3273, %v3465
    %v3467 = vpop.f32.mrb[0].mxu0
    %v3468 = vadd.f32 %v3275, %v3467
    %v3469 = vpop.f32.mrb[0].mxu0
    %v3470 = vadd.f32 %v3277, %v3469
    %v3471 = vpop.f32.mrb[0].mxu0
    %v3472 = vadd.f32 %v3279, %v3471
    %3473 = vmatprep.mubr.bf16.mxu0 %v905
    %3474 = vmatmul.mubr.bf16.gmra.mrb[0].mxu0 %v904
    %v3475 = vpop.f32.mrb[0].mxu0
    %v3476 = vadd.f32 %v3283, %v3475
    %v3477 = vpop.f32.mrb[0].mxu0
    %v3478 = vadd.f32 %v3285, %v3477
    %v3479 = vpop.f32.mrb[0].mxu0
    %v3480 = vadd.f32 %v3287, %v3479
    %v3481 = vpop.f32.mrb[0].mxu0
    %v3482 = vadd.f32 %v3289, %v3481
    %3483 = vmatprep.mubr.bf16.mxu0 %v912
    %3484 = vmatmul.mubr.bf16.gmra.mrb[0].mxu0 %v911
    %v3485 = vpop.f32.mrb[0].mxu0
    %v3486 = vadd.f32 %v3293, %v3485
    %v3487 = vpop.f32.mrb[0].mxu0
    %v3488 = vadd.f32 %v3295, %v3487
    %v3489 = vpop.f32.mrb[0].mxu0
    %v3490 = vadd.f32 %v3297, %v3489
    %v3491 = vpop.f32.mrb[0].mxu0
    %v3492 = vadd.f32 %v3299, %v3491
    %3493 = vmatprep.mubr.bf16.mxu0 %v919
    %3494 = vmatmul.mubr.bf16.gmra.mrb[0].mxu0 %v918
    %v3495 = vpop.f32.mrb[0].mxu0
    %v3496 = vadd.f32 %v3303, %v3495
    %v3497 = vpop.f32.mrb[0].mxu0
    %v3498 = vadd.f32 %v3305, %v3497
    %v3499 = vpop.f32.mrb[0].mxu0
    %v3500 = vadd.f32 %v3307, %v3499
    %v3501 = vpop.f32.mrb[0].mxu0
    %v3502 = vadd.f32 %v3309, %v3501
    %3503 = vdwg.mxu0
    %3504 = vmatprep.subr.bf16.mxu0 %v1900
    %3505 = vmatpush1.bf16.msra.mxu0 %v1899
    %3506 = vmatprep.subr.bf16.mxu0 %v1904
    %3507 = vmatpush1.bf16.msra.mxu0 %v1903
    %3508 = vmatprep.subr.bf16.mxu0 %v1908
    %3509 = vmatpush1.bf16.msra.mxu0 %v1907
    %3510 = vmatprep.subr.bf16.mxu0 %v1912
    %3511 = vmatpush1.bf16.msra.mxu0 %v1911
    %3512 = vmatprep.subr.bf16.mxu0 %v1916
    %3513 = vmatpush1.bf16.msra.mxu0 %v1915
    %3514 = vmatprep.subr.bf16.mxu0 %v1920
    %3515 = vmatpush1.bf16.msra.mxu0 %v1919
    %3516 = vmatprep.subr.bf16.mxu0 %v1924
    %3517 = vmatpush1.bf16.msra.mxu0 %v1923
    %3518 = vmatprep.subr.bf16.mxu0 %v1928
    %3519 = vmatpush1.bf16.msra.mxu0 %v1927
    %3520 = vmatprep.subr.bf16.mxu0 0
    %3521 = vmatpush1.bf16.msra.mxu0 0
    %3522 = vmatprep.subr.bf16.mxu0 0
    %3523 = vmatpush1.bf16.msra.mxu0 0
    %3524 = vmatprep.subr.bf16.mxu0 0
    %3525 = vmatpush1.bf16.msra.mxu0 0
    %3526 = vmatprep.subr.bf16.mxu0 0
    %3527 = vmatpush1.bf16.msra.mxu0 0
    %3528 = vmatprep.subr.bf16.mxu0 0
    %3529 = vmatpush1.bf16.msra.mxu0 0
    %3530 = vmatprep.subr.bf16.mxu0 0
    %3531 = vmatpush1.bf16.msra.mxu0 0
    %3532 = vmatprep.subr.bf16.mxu0 0
    %3533 = vmatpush1.bf16.msra.mxu0 0
    %3534 = vmatprep.subr.bf16.mxu0 0
    %3535 = vmatpush1.bf16.msra.mxu0 0
    %3536 = vmatprep.mubr.bf16.mxu0 0
    %3537 = vmatmul.mubr.bf16.gmra.mrb[0].mxu0 %v815
    %v3538 = vpop.f32.mrb[0].mxu0
    %v3539 = vadd.f32 %v3346, %v3538
    %v3540 = vpop.f32.mrb[0].mxu0
    %v3541 = vadd.f32 %v3348, %v3540
    %v3542 = vpop.f32.mrb[0].mxu0
    %v3543 = vadd.f32 %v3350, %v3542
    %v3544 = vpop.f32.mrb[0].mxu0
    %v3545 = vadd.f32 %v3352, %v3544
    %3546 = vmatprep.mubr.bf16.mxu0 0
    %3547 = vmatmul.mubr.bf16.gmra.mrb[0].mxu0 %v822
    %v3548 = vpop.f32.mrb[0].mxu0
    %v3549 = vadd.f32 %v3356, %v3548
    %v3550 = vpop.f32.mrb[0].mxu0
    %v3551 = vadd.f32 %v3358, %v3550
    %v3552 = vpop.f32.mrb[0].mxu0
    %v3553 = vadd.f32 %v3360, %v3552
    %v3554 = vpop.f32.mrb[0].mxu0
    %v3555 = vadd.f32 %v3362, %v3554
    %3556 = vmatprep.mubr.bf16.mxu0 0
    %3557 = vmatmul.mubr.bf16.gmra.mrb[0].mxu0 %v829
    %v3558 = vpop.f32.mrb[0].mxu0
    %v3559 = vadd.f32 %v3366, %v3558
    %v3560 = vpop.f32.mrb[0].mxu0
    %v3561 = vadd.f32 %v3368, %v3560
    %v3562 = vpop.f32.mrb[0].mxu0
    %v3563 = vadd.f32 %v3370, %v3562
    %v3564 = vpop.f32.mrb[0].mxu0
    %v3565 = vadd.f32 %v3372, %v3564
    %3566 = vmatprep.mubr.bf16.mxu0 0
    %3567 = vmatmul.mubr.bf16.gmra.mrb[0].mxu0 %v836
    %v3568 = vpop.f32.mrb[0].mxu0
    %v3569 = vadd.f32 %v3376, %v3568
    %v3570 = vpop.f32.mrb[0].mxu0
    %v3571 = vadd.f32 %v3378, %v3570
    %v3572 = vpop.f32.mrb[0].mxu0
    %v3573 = vadd.f32 %v3380, %v3572
    %v3574 = vpop.f32.mrb[0].mxu0
    %v3575 = vadd.f32 %v3382, %v3574
    %3576 = vmatprep.mubr.bf16.mxu0 0
    %3577 = vmatmul.mubr.bf16.gmra.mrb[0].mxu0 %v843
    %v3578 = vpop.f32.mrb[0].mxu0
    %v3579 = vadd.f32 %v3386, %v3578
    %v3580 = vpop.f32.mrb[0].mxu0
    %v3581 = vadd.f32 %v3388, %v3580
    %v3582 = vpop.f32.mrb[0].mxu0
    %v3583 = vadd.f32 %v3390, %v3582
    %v3584 = vpop.f32.mrb[0].mxu0
    %v3585 = vadd.f32 %v3392, %v3584
    %3586 = vmatprep.mubr.bf16.mxu0 0
    %3587 = vmatmul.mubr.bf16.gmra.mrb[0].mxu0 %v850
    %v3588 = vpop.f32.mrb[0].mxu0
    %v3589 = vadd.f32 %v3396, %v3588
    %v3590 = vpop.f32.mrb[0].mxu0
    %v3591 = vadd.f32 %v3398, %v3590
    %v3592 = vpop.f32.mrb[0].mxu0
    %v3593 = vadd.f32 %v3400, %v3592
    %v3594 = vpop.f32.mrb[0].mxu0
    %v3595 = vadd.f32 %v3402, %v3594
    %3596 = vmatprep.mubr.bf16.mxu0 0
    %3597 = vmatmul.mubr.bf16.gmra.mrb[0].mxu0 %v857
    %v3598 = vpop.f32.mrb[0].mxu0
    %v3599 = vadd.f32 %v3406, %v3598
    %v3600 = vpop.f32.mrb[0].mxu0
    %v3601 = vadd.f32 %v3408, %v3600
    %v3602 = vpop.f32.mrb[0].mxu0
    %v3603 = vadd.f32 %v3410, %v3602
    %v3604 = vpop.f32.mrb[0].mxu0
    %v3605 = vadd.f32 %v3412, %v3604
    %3606 = vmatprep.mubr.bf16.mxu0 0
    %3607 = vmatmul.mubr.bf16.gmra.mrb[0].mxu0 %v864
    %v3608 = vpop.f32.mrb[0].mxu0
    %v3609 = vadd.f32 %v3416, %v3608
    %v3610 = vpop.f32.mrb[0].mxu0
    %v3611 = vadd.f32 %v3418, %v3610
    %v3612 = vpop.f32.mrb[0].mxu0
    %v3613 = vadd.f32 %v3420, %v3612
    %v3614 = vpop.f32.mrb[0].mxu0
    %v3615 = vadd.f32 %v3422, %v3614
    %3616 = vmatprep.mubr.bf16.mxu0 0
    %3617 = vmatmul.mubr.bf16.gmra.mrb[0].mxu0 %v871
    %v3618 = vpop.f32.mrb[0].mxu0
    %v3619 = vadd.f32 %v3426, %v3618
    %v3620 = vpop.f32.mrb[0].mxu0
    %v3621 = vadd.f32 %v3428, %v3620
    %v3622 = vpop.f32.mrb[0].mxu0
    %v3623 = vadd.f32 %v3430, %v3622
    %v3624 = vpop.f32.mrb[0].mxu0
    %v3625 = vadd.f32 %v3432, %v3624
    %3626 = vmatprep.mubr.bf16.mxu0 0
    %3627 = vmatmul.mubr.bf16.gmra.mrb[0].mxu0 %v878
    %v3628 = vpop.f32.mrb[0].mxu0
    %v3629 = vadd.f32 %v3436, %v3628
    %v3630 = vpop.f32.mrb[0].mxu0
    %v3631 = vadd.f32 %v3438, %v3630
    %v3632 = vpop.f32.mrb[0].mxu0
    %v3633 = vadd.f32 %v3440, %v3632
    %v3634 = vpop.f32.mrb[0].mxu0
    %v3635 = vadd.f32 %v3442, %v3634
    %3636 = vmatprep.mubr.bf16.mxu0 0
    %3637 = vmatmul.mubr.bf16.gmra.mrb[0].mxu0 %v885
    %v3638 = vpop.f32.mrb[0].mxu0
    %v3639 = vadd.f32 %v3446, %v3638
    %v3640 = vpop.f32.mrb[0].mxu0
    %v3641 = vadd.f32 %v3448, %v3640
    %v3642 = vpop.f32.mrb[0].mxu0
    %v3643 = vadd.f32 %v3450, %v3642
    %v3644 = vpop.f32.mrb[0].mxu0
    %v3645 = vadd.f32 %v3452, %v3644
    %3646 = vmatprep.mubr.bf16.mxu0 0
    %3647 = vmatmul.mubr.bf16.gmra.mrb[0].mxu0 %v892
    %v3648 = vpop.f32.mrb[0].mxu0
    %v3649 = vadd.f32 %v3456, %v3648
    %v3650 = vpop.f32.mrb[0].mxu0
    %v3651 = vadd.f32 %v3458, %v3650
    %v3652 = vpop.f32.mrb[0].mxu0
    %v3653 = vadd.f32 %v3460, %v3652
    %v3654 = vpop.f32.mrb[0].mxu0
    %v3655 = vadd.f32 %v3462, %v3654
    %3656 = vmatprep.mubr.bf16.mxu0 0
    %3657 = vmatmul.mubr.bf16.gmra.mrb[0].mxu0 %v899
    %v3658 = vpop.f32.mrb[0].mxu0
    %v3659 = vadd.f32 %v3466, %v3658
    %v3660 = vpop.f32.mrb[0].mxu0
    %v3661 = vadd.f32 %v3468, %v3660
    %v3662 = vpop.f32.mrb[0].mxu0
    %v3663 = vadd.f32 %v3470, %v3662
    %v3664 = vpop.f32.mrb[0].mxu0
    %v3665 = vadd.f32 %v3472, %v3664
    %3666 = vmatprep.mubr.bf16.mxu0 0
    %3667 = vmatmul.mubr.bf16.gmra.mrb[0].mxu0 %v906
    %v3668 = vpop.f32.mrb[0].mxu0
    %v3669 = vadd.f32 %v3476, %v3668
    %v3670 = vpop.f32.mrb[0].mxu0
    %v3671 = vadd.f32 %v3478, %v3670
    %v3672 = vpop.f32.mrb[0].mxu0
    %v3673 = vadd.f32 %v3480, %v3672
    %v3674 = vpop.f32.mrb[0].mxu0
    %v3675 = vadd.f32 %v3482, %v3674
    %3676 = vmatprep.mubr.bf16.mxu0 0
    %3677 = vmatmul.mubr.bf16.gmra.mrb[0].mxu0 %v913
    %v3678 = vpop.f32.mrb[0].mxu0
    %v3679 = vadd.f32 %v3486, %v3678
    %v3680 = vpop.f32.mrb[0].mxu0
    %v3681 = vadd.f32 %v3488, %v3680
    %v3682 = vpop.f32.mrb[0].mxu0
    %v3683 = vadd.f32 %v3490, %v3682
    %v3684 = vpop.f32.mrb[0].mxu0
    %v3685 = vadd.f32 %v3492, %v3684
    %3686 = vmatprep.mubr.bf16.mxu0 0
    %3687 = vmatmul.mubr.bf16.gmra.mrb[0].mxu0 %v920
    %v3688 = vpop.f32.mrb[0].mxu0
    %v3689 = vadd.f32 %v3496, %v3688
    %v3690 = vpop.f32.mrb[0].mxu0
    %v3691 = vadd.f32 %v3498, %v3690
    %v3692 = vpop.f32.mrb[0].mxu0
    %v3693 = vadd.f32 %v3500, %v3692
    %v3694 = vpop.f32.mrb[0].mxu0
    %v3695 = vadd.f32 %v3502, %v3694
    %3696 = vdwg.mxu0
    %v3697 = vmax.f32 %v2767, 0.0
    %v3698 = vmax.f32 %v2769, 0.0
    %v3699 = vmax.f32 %v3539, 0.0
    %v3700 = vmax.f32 %v3541, 0.0
    %v3701 = vmax.f32 %v2771, 0.0
    %v3702 = vmax.f32 %v2773, 0.0
    %v3703 = vmax.f32 %v3543, 0.0
    %v3704 = vmax.f32 %v3545, 0.0
    %v3705 = vmax.f32 %v2777, 0.0
    %v3706 = vmax.f32 %v2779, 0.0
    %v3707 = vmax.f32 %v3549, 0.0
    %v3708 = vmax.f32 %v3551, 0.0
    %v3709 = vmax.f32 %v2781, 0.0
    %v3710 = vmax.f32 %v2783, 0.0
    %v3711 = vmax.f32 %v3553, 0.0
    %v3712 = vmax.f32 %v3555, 0.0
    %v3713 = vmax.f32 %v2787, 0.0
    %v3714 = vmax.f32 %v2789, 0.0
    %v3715 = vmax.f32 %v3559, 0.0
    %v3716 = vmax.f32 %v3561, 0.0
    %v3717 = vmax.f32 %v2791, 0.0
    %v3718 = vmax.f32 %v2793, 0.0
    %v3719 = vmax.f32 %v3563, 0.0
    %v3720 = vmax.f32 %v3565, 0.0
    %v3721 = vmax.f32 %v2797, 0.0
    %v3722 = vmax.f32 %v2799, 0.0
    %v3723 = vmax.f32 %v3569, 0.0
    %v3724 = vmax.f32 %v3571, 0.0
    %v3725 = vmax.f32 %v2801, 0.0
    %v3726 = vmax.f32 %v2803, 0.0
    %v3727 = vmax.f32 %v3573, 0.0
    %v3728 = vmax.f32 %v3575, 0.0
    %v3729 = vmax.f32 %v2807, 0.0
    %v3730 = vmax.f32 %v2809, 0.0
    %v3731 = vmax.f32 %v3579, 0.0
    %v3732 = vmax.f32 %v3581, 0.0
    %v3733 = vmax.f32 %v2811, 0.0
    %v3734 = vmax.f32 %v2813, 0.0
    %v3735 = vmax.f32 %v3583, 0.0
    %v3736 = vmax.f32 %v3585, 0.0
    %v3737 = vmax.f32 %v2817, 0.0
    %v3738 = vmax.f32 %v2819, 0.0
    %v3739 = vmax.f32 %v3589, 0.0
    %v3740 = vmax.f32 %v3591, 0.0
    %v3741 = vmax.f32 %v2821, 0.0
    %v3742 = vmax.f32 %v2823, 0.0
    %v3743 = vmax.f32 %v3593, 0.0
    %v3744 = vmax.f32 %v3595, 0.0
    %v3745 = vmax.f32 %v2827, 0.0
    %v3746 = vmax.f32 %v2829, 0.0
    %v3747 = vmax.f32 %v3599, 0.0
    %v3748 = vmax.f32 %v3601, 0.0
    %v3749 = vmax.f32 %v2831, 0.0
    %v3750 = vmax.f32 %v2833, 0.0
    %v3751 = vmax.f32 %v3603, 0.0
    %v3752 = vmax.f32 %v3605, 0.0
    %v3753 = vmax.f32 %v2837, 0.0
    %v3754 = vmax.f32 %v2839, 0.0
    %v3755 = vmax.f32 %v3609, 0.0
    %v3756 = vmax.f32 %v3611, 0.0
    %v3757 = vmax.f32 %v2841, 0.0
    %v3758 = vmax.f32 %v2843, 0.0
    %v3759 = vmax.f32 %v3613, 0.0
    %v3760 = vmax.f32 %v3615, 0.0
    %v3761 = vmax.f32 %v2847, 0.0
    %v3762 = vmax.f32 %v2849, 0.0
    %v3763 = vmax.f32 %v3619, 0.0
    %v3764 = vmax.f32 %v3621, 0.0
    %v3765 = vmax.f32 %v2851, 0.0
    %v3766 = vmax.f32 %v2853, 0.0
    %v3767 = vmax.f32 %v3623, 0.0
    %v3768 = vmax.f32 %v3625, 0.0
    %v3769 = vmax.f32 %v2857, 0.0
    %v3770 = vmax.f32 %v2859, 0.0
    %v3771 = vmax.f32 %v3629, 0.0
    %v3772 = vmax.f32 %v3631, 0.0
    %v3773 = vmax.f32 %v2861, 0.0
    %v3774 = vmax.f32 %v2863, 0.0
    %v3775 = vmax.f32 %v3633, 0.0
    %v3776 = vmax.f32 %v3635, 0.0
    %v3777 = vmax.f32 %v2867, 0.0
    %v3778 = vmax.f32 %v2869, 0.0
    %v3779 = vmax.f32 %v3639, 0.0
    %v3780 = vmax.f32 %v3641, 0.0
    %v3781 = vmax.f32 %v2871, 0.0
    %v3782 = vmax.f32 %v2873, 0.0
    %v3783 = vmax.f32 %v3643, 0.0
    %v3784 = vmax.f32 %v3645, 0.0
    %v3785 = vmax.f32 %v2877, 0.0
    %v3786 = vmax.f32 %v2879, 0.0
    %v3787 = vmax.f32 %v3649, 0.0
    %v3788 = vmax.f32 %v3651, 0.0
    %v3789 = vmax.f32 %v2881, 0.0
    %v3790 = vmax.f32 %v2883, 0.0
    %v3791 = vmax.f32 %v3653, 0.0
    %v3792 = vmax.f32 %v3655, 0.0
    %v3793 = vmax.f32 %v2887, 0.0
    %v3794 = vmax.f32 %v2889, 0.0
    %v3795 = vmax.f32 %v3659, 0.0
    %v3796 = vmax.f32 %v3661, 0.0
    %v3797 = vmax.f32 %v2891, 0.0
    %v3798 = vmax.f32 %v2893, 0.0
    %v3799 = vmax.f32 %v3663, 0.0
    %v3800 = vmax.f32 %v3665, 0.0
    %v3801 = vmax.f32 %v2897, 0.0
    %v3802 = vmax.f32 %v2899, 0.0
    %v3803 = vmax.f32 %v3669, 0.0
    %v3804 = vmax.f32 %v3671, 0.0
    %v3805 = vmax.f32 %v2901, 0.0
    %v3806 = vmax.f32 %v2903, 0.0
    %v3807 = vmax.f32 %v3673, 0.0
    %v3808 = vmax.f32 %v3675, 0.0
    %v3809 = vmax.f32 %v2907, 0.0
    %v3810 = vmax.f32 %v2909, 0.0
    %v3811 = vmax.f32 %v3679, 0.0
    %v3812 = vmax.f32 %v3681, 0.0
    %v3813 = vmax.f32 %v2911, 0.0
    %v3814 = vmax.f32 %v2913, 0.0
    %v3815 = vmax.f32 %v3683, 0.0
    %v3816 = vmax.f32 %v3685, 0.0
    %v3817 = vmax.f32 %v2917, 0.0
    %v3818 = vmax.f32 %v2919, 0.0
    %v3819 = vmax.f32 %v3689, 0.0
    %v3820 = vmax.f32 %v3691, 0.0
    %v3821 = vmax.f32 %v2921, 0.0
    %v3822 = vmax.f32 %v2923, 0.0
    %v3823 = vmax.f32 %v3693, 0.0
    %v3824 = vmax.f32 %v3695, 0.0
    %v3825 = vpack.c.bf16 %v3701, %v3697
    %v3826 = vpack.c.bf16 %v3702, %v3698
    %v3827 = vpack.c.bf16 %v3703, %v3699
    %v3828 = vpack.c.bf16 %v3704, %v3700
    %v3829 = vpack.c.bf16 %v3709, %v3705
    %v3830 = vpack.c.bf16 %v3710, %v3706
    %v3831 = vpack.c.bf16 %v3711, %v3707
    %v3832 = vpack.c.bf16 %v3712, %v3708
    %v3833 = vpack.c.bf16 %v3717, %v3713
    %v3834 = vpack.c.bf16 %v3718, %v3714
    %v3835 = vpack.c.bf16 %v3719, %v3715
    %v3836 = vpack.c.bf16 %v3720, %v3716
    %v3837 = vpack.c.bf16 %v3725, %v3721
    %v3838 = vpack.c.bf16 %v3726, %v3722
    %v3839 = vpack.c.bf16 %v3727, %v3723
    %v3840 = vpack.c.bf16 %v3728, %v3724
    %v3841 = vpack.c.bf16 %v3733, %v3729
    %v3842 = vpack.c.bf16 %v3734, %v3730
    %v3843 = vpack.c.bf16 %v3735, %v3731
    %v3844 = vpack.c.bf16 %v3736, %v3732
    %v3845 = vpack.c.bf16 %v3741, %v3737
    %v3846 = vpack.c.bf16 %v3742, %v3738
    %v3847 = vpack.c.bf16 %v3743, %v3739
    %v3848 = vpack.c.bf16 %v3744, %v3740
    %v3849 = vpack.c.bf16 %v3749, %v3745
    %v3850 = vpack.c.bf16 %v3750, %v3746
    %v3851 = vpack.c.bf16 %v3751, %v3747
    %v3852 = vpack.c.bf16 %v3752, %v3748
    %v3853 = vpack.c.bf16 %v3757, %v3753
    %v3854 = vpack.c.bf16 %v3758, %v3754
    %v3855 = vpack.c.bf16 %v3759, %v3755
    %v3856 = vpack.c.bf16 %v3760, %v3756
    %v3857 = vpack.c.bf16 %v3765, %v3761
    %v3858 = vpack.c.bf16 %v3766, %v3762
    %v3859 = vpack.c.bf16 %v3767, %v3763
    %v3860 = vpack.c.bf16 %v3768, %v3764
    %v3861 = vpack.c.bf16 %v3773, %v3769
    %v3862 = vpack.c.bf16 %v3774, %v3770
    %v3863 = vpack.c.bf16 %v3775, %v3771
    %v3864 = vpack.c.bf16 %v3776, %v3772
    %v3865 = vpack.c.bf16 %v3781, %v3777
    %v3866 = vpack.c.bf16 %v3782, %v3778
    %v3867 = vpack.c.bf16 %v3783, %v3779
    %v3868 = vpack.c.bf16 %v3784, %v3780
    %v3869 = vpack.c.bf16 %v3789, %v3785
    %v3870 = vpack.c.bf16 %v3790, %v3786
    %v3871 = vpack.c.bf16 %v3791, %v3787
    %v3872 = vpack.c.bf16 %v3792, %v3788
    %v3873 = vpack.c.bf16 %v3797, %v3793
    %v3874 = vpack.c.bf16 %v3798, %v3794
    %v3875 = vpack.c.bf16 %v3799, %v3795
    %v3876 = vpack.c.bf16 %v3800, %v3796
    %v3877 = vpack.c.bf16 %v3805, %v3801
    %v3878 = vpack.c.bf16 %v3806, %v3802
    %v3879 = vpack.c.bf16 %v3807, %v3803
    %v3880 = vpack.c.bf16 %v3808, %v3804
    %v3881 = vpack.c.bf16 %v3813, %v3809
    %v3882 = vpack.c.bf16 %v3814, %v3810
    %v3883 = vpack.c.bf16 %v3815, %v3811
    %v3884 = vpack.c.bf16 %v3816, %v3812
    %v3885 = vpack.c.bf16 %v3821, %v3817
    %v3886 = vpack.c.bf16 %v3822, %v3818
    %v3887 = vpack.c.bf16 %v3823, %v3819
    %v3888 = vpack.c.bf16 %v3824, %v3820
    %v3889 = vld [vmem:[#allocation7] sm:$0xff]
    %v3890 = vld [vmem:[#allocation7 + $0x8] sm:$0xff]
    %v3891 = vld [vmem:[#allocation7 + $0x10] sm:$0xff]
    %v3892 = vld [vmem:[#allocation7 + $0x18] sm:$0xff]
    %v3893 = vld [vmem:[#allocation7 + $0x20] sm:$0xff]
    %v3894 = vld [vmem:[#allocation7 + $0x28] sm:$0xff]
    %v3895 = vld [vmem:[#allocation7 + $0x30] sm:$0xff]
    %v3896 = vld [vmem:[#allocation7 + $0x38] sm:$0xff]
    %v3897 = vld [vmem:[#allocation7 + $0x40] sm:$0xff]
    %v3898 = vld [vmem:[#allocation7 + $0x48] sm:$0xff]
    %v3899 = vld [vmem:[#allocation7 + $0x50] sm:$0xff]
    %v3900 = vld [vmem:[#allocation7 + $0x58] sm:$0xff]
    %v3901 = vld [vmem:[#allocation7 + $0x60] sm:$0xff]
    %v3902 = vld [vmem:[#allocation7 + $0x68] sm:$0xff]
    %v3903 = vld [vmem:[#allocation7 + $0x70] sm:$0xff]
    %v3904 = vld [vmem:[#allocation7 + $0x78] sm:$0xff]
    %v3905 = vld [vmem:[#allocation7 + $0x80] sm:$0xff]
    %v3906 = vld [vmem:[#allocation7 + $0x88] sm:$0xff]
    %v3907 = vld [vmem:[#allocation7 + $0x90] sm:$0xff]
    %v3908 = vld [vmem:[#allocation7 + $0x98] sm:$0xff]
    %v3909 = vld [vmem:[#allocation7 + $0xa0] sm:$0xff]
    %v3910 = vld [vmem:[#allocation7 + $0xa8] sm:$0xff]
    %v3911 = vld [vmem:[#allocation7 + $0xb0] sm:$0xff]
    %v3912 = vld [vmem:[#allocation7 + $0xb8] sm:$0xff]
    %v3913 = vld [vmem:[#allocation7 + $0xc0] sm:$0xff]
    %v3914 = vld [vmem:[#allocation7 + $0xc8] sm:$0xff]
    %v3915 = vld [vmem:[#allocation7 + $0xd0] sm:$0xff]
    %v3916 = vld [vmem:[#allocation7 + $0xd8] sm:$0xff]
    %v3917 = vld [vmem:[#allocation7 + $0xe0] sm:$0xff]
    %v3918 = vld [vmem:[#allocation7 + $0xe8] sm:$0xff]
    %v3919 = vld [vmem:[#allocation7 + $0xf0] sm:$0xff]
    %v3920 = vld [vmem:[#allocation7 + $0xf8] sm:$0xff]
    %v3921 = vld [vmem:[#allocation7 + $0x100] sm:$0xff]
    %v3922 = vld [vmem:[#allocation7 + $0x108] sm:$0xff]
    %v3923 = vld [vmem:[#allocation7 + $0x110] sm:$0xff]
    %v3924 = vld [vmem:[#allocation7 + $0x118] sm:$0xff]
    %v3925 = vld [vmem:[#allocation7 + $0x120] sm:$0xff]
    %v3926 = vld [vmem:[#allocation7 + $0x128] sm:$0xff]
    %v3927 = vld [vmem:[#allocation7 + $0x130] sm:$0xff]
    %v3928 = vld [vmem:[#allocation7 + $0x138] sm:$0xff]
    %v3929 = vld [vmem:[#allocation7 + $0x140] sm:$0xff]
    %v3930 = vld [vmem:[#allocation7 + $0x148] sm:$0xff]
    %v3931 = vld [vmem:[#allocation7 + $0x150] sm:$0xff]
    %v3932 = vld [vmem:[#allocation7 + $0x158] sm:$0xff]
    %v3933 = vld [vmem:[#allocation7 + $0x160] sm:$0xff]
    %v3934 = vld [vmem:[#allocation7 + $0x168] sm:$0xff]
    %v3935 = vld [vmem:[#allocation7 + $0x170] sm:$0xff]
    %v3936 = vld [vmem:[#allocation7 + $0x178] sm:$0xff]
    %v3937 = vld [vmem:[#allocation7 + $0x180] sm:$0xff]
    %v3938 = vld [vmem:[#allocation7 + $0x188] sm:$0xff]
    %v3939 = vld [vmem:[#allocation7 + $0x190] sm:$0xff]
    %v3940 = vld [vmem:[#allocation7 + $0x198] sm:$0xff]
    %v3941 = vld [vmem:[#allocation7 + $0x1a0] sm:$0xff]
    %v3942 = vld [vmem:[#allocation7 + $0x1a8] sm:$0xff]
    %v3943 = vld [vmem:[#allocation7 + $0x1b0] sm:$0xff]
    %v3944 = vld [vmem:[#allocation7 + $0x1b8] sm:$0xff]
    %v3945 = vld [vmem:[#allocation7 + $0x1c0] sm:$0xff]
    %v3946 = vld [vmem:[#allocation7 + $0x1c8] sm:$0xff]
    %v3947 = vld [vmem:[#allocation7 + $0x1d0] sm:$0xff]
    %v3948 = vld [vmem:[#allocation7 + $0x1d8] sm:$0xff]
    %v3949 = vld [vmem:[#allocation7 + $0x1e0] sm:$0xff]
    %v3950 = vld [vmem:[#allocation7 + $0x1e8] sm:$0xff]
    %v3951 = vld [vmem:[#allocation7 + $0x1f0] sm:$0xff]
    %v3952 = vld [vmem:[#allocation7 + $0x1f8] sm:$0xff]
    %v3953 = vld [vmem:[#allocation7 + $0x200] sm:$0xff]
    %v3954 = vld [vmem:[#allocation7 + $0x208] sm:$0xff]
    %v3955 = vld [vmem:[#allocation7 + $0x210] sm:$0xff]
    %v3956 = vld [vmem:[#allocation7 + $0x218] sm:$0xff]
    %v3957 = vld [vmem:[#allocation7 + $0x220] sm:$0xff]
    %v3958 = vld [vmem:[#allocation7 + $0x228] sm:$0xff]
    %v3959 = vld [vmem:[#allocation7 + $0x230] sm:$0xff]
    %v3960 = vld [vmem:[#allocation7 + $0x238] sm:$0xff]
    %v3961 = vld [vmem:[#allocation7 + $0x240] sm:$0xff]
    %v3962 = vld [vmem:[#allocation7 + $0x248] sm:$0xff]
    %v3963 = vld [vmem:[#allocation7 + $0x250] sm:$0xff]
    %v3964 = vld [vmem:[#allocation7 + $0x258] sm:$0xff]
    %v3965 = vld [vmem:[#allocation7 + $0x260] sm:$0xff]
    %v3966 = vld [vmem:[#allocation7 + $0x268] sm:$0xff]
    %v3967 = vld [vmem:[#allocation7 + $0x270] sm:$0xff]
    %v3968 = vld [vmem:[#allocation7 + $0x278] sm:$0xff]
    %v3969 = vld [vmem:[#allocation7 + $0x280] sm:$0xff]
    %v3970 = vld [vmem:[#allocation7 + $0x288] sm:$0xff]
    %v3971 = vld [vmem:[#allocation7 + $0x290] sm:$0xff]
    %v3972 = vld [vmem:[#allocation7 + $0x298] sm:$0xff]
    %v3973 = vld [vmem:[#allocation7 + $0x2a0] sm:$0xff]
    %v3974 = vld [vmem:[#allocation7 + $0x2a8] sm:$0xff]
    %v3975 = vld [vmem:[#allocation7 + $0x2b0] sm:$0xff]
    %v3976 = vld [vmem:[#allocation7 + $0x2b8] sm:$0xff]
    %v3977 = vld [vmem:[#allocation7 + $0x2c0] sm:$0xff]
    %v3978 = vld [vmem:[#allocation7 + $0x2c8] sm:$0xff]
    %v3979 = vld [vmem:[#allocation7 + $0x2d0] sm:$0xff]
    %v3980 = vld [vmem:[#allocation7 + $0x2d8] sm:$0xff]
    %v3981 = vld [vmem:[#allocation7 + $0x2e0] sm:$0xff]
    %v3982 = vld [vmem:[#allocation7 + $0x2e8] sm:$0xff]
    %v3983 = vld [vmem:[#allocation7 + $0x2f0] sm:$0xff]
    %v3984 = vld [vmem:[#allocation7 + $0x2f8] sm:$0xff]
    %v3985 = vld [vmem:[#allocation7 + $0x300] sm:$0xff]
    %v3986 = vld [vmem:[#allocation7 + $0x308] sm:$0xff]
    %v3987 = vld [vmem:[#allocation7 + $0x310] sm:$0xff]
    %v3988 = vld [vmem:[#allocation7 + $0x318] sm:$0xff]
    %v3989 = vld [vmem:[#allocation7 + $0x320] sm:$0xff]
    %v3990 = vld [vmem:[#allocation7 + $0x328] sm:$0xff]
    %v3991 = vld [vmem:[#allocation7 + $0x330] sm:$0xff]
    %v3992 = vld [vmem:[#allocation7 + $0x338] sm:$0xff]
    %v3993 = vld [vmem:[#allocation7 + $0x340] sm:$0xff]
    %v3994 = vld [vmem:[#allocation7 + $0x348] sm:$0xff]
    %v3995 = vld [vmem:[#allocation7 + $0x350] sm:$0xff]
    %v3996 = vld [vmem:[#allocation7 + $0x358] sm:$0xff]
    %v3997 = vld [vmem:[#allocation7 + $0x360] sm:$0xff]
    %v3998 = vld [vmem:[#allocation7 + $0x368] sm:$0xff]
    %v3999 = vld [vmem:[#allocation7 + $0x370] sm:$0xff]
    %v4000 = vld [vmem:[#allocation7 + $0x378] sm:$0xff]
    %v4001 = vld [vmem:[#allocation7 + $0x380] sm:$0xff]
    %v4002 = vld [vmem:[#allocation7 + $0x388] sm:$0xff]
    %v4003 = vld [vmem:[#allocation7 + $0x390] sm:$0xff]
    %v4004 = vld [vmem:[#allocation7 + $0x398] sm:$0xff]
    %v4005 = vld [vmem:[#allocation7 + $0x3a0] sm:$0xff]
    %v4006 = vld [vmem:[#allocation7 + $0x3a8] sm:$0xff]
    %v4007 = vld [vmem:[#allocation7 + $0x3b0] sm:$0xff]
    %v4008 = vld [vmem:[#allocation7 + $0x3b8] sm:$0xff]
    %v4009 = vld [vmem:[#allocation7 + $0x3c0] sm:$0xff]
    %v4010 = vld [vmem:[#allocation7 + $0x3c8] sm:$0xff]
    %v4011 = vld [vmem:[#allocation7 + $0x3d0] sm:$0xff]
    %v4012 = vld [vmem:[#allocation7 + $0x3d8] sm:$0xff]
    %v4013 = vld [vmem:[#allocation7 + $0x3e0] sm:$0xff]
    %v4014 = vld [vmem:[#allocation7 + $0x3e8] sm:$0xff]
    %v4015 = vld [vmem:[#allocation7 + $0x3f0] sm:$0xff]
    %v4016 = vld [vmem:[#allocation7 + $0x3f8] sm:$0xff]
    %v4017 = vld [vmem:[%s4] sm:$0xf]
    %v4019 = vlaneseq
    %v4020 = vshrl.u32 %v4019, 7
    %v4021 = vsub.s32 0, %v4020
    %v4022 = vrot.slane %v4017, %v4021
    %v4023 = vlaneseq
    %v4024 = vshrl.u32 %v4023, 7
    %v4025 = vsub.s32 1, %v4024
    %v4026 = vrot.slane %v4017, %v4025
    %v4027 = vlaneseq
    %v4028 = vshrl.u32 %v4027, 7
    %v4029 = vsub.s32 2, %v4028
    %v4030 = vrot.slane %v4017, %v4029
    %v4031 = vlaneseq
    %v4032 = vshrl.u32 %v4031, 7
    %v4033 = vsub.s32 3, %v4032
    %v4034 = vrot.slane %v4017, %v4033
    %v4167 = vunpack.c.l.b16 %v3889
    %v4168 = vunpack.c.h.b16 %v3889
    %v4169 = vunpack.c.l.b16 %v3890
    %v4170 = vunpack.c.h.b16 %v3890
    %v4171 = vunpack.c.l.b16 %v3891
    %v4172 = vunpack.c.h.b16 %v3891
    %v4173 = vunpack.c.l.b16 %v3892
    %v4174 = vunpack.c.h.b16 %v3892
    %v4175 = vunpack.c.l.b16 %v3893
    %v4176 = vunpack.c.h.b16 %v3893
    %v4177 = vunpack.c.l.b16 %v3894
    %v4178 = vunpack.c.h.b16 %v3894
    %v4179 = vunpack.c.l.b16 %v3895
    %v4180 = vunpack.c.h.b16 %v3895
    %v4181 = vunpack.c.l.b16 %v3896
    %v4182 = vunpack.c.h.b16 %v3896
    %v4183 = vunpack.c.l.b16 %v3897
    %v4184 = vunpack.c.h.b16 %v3897
    %v4185 = vunpack.c.l.b16 %v3898
    %v4186 = vunpack.c.h.b16 %v3898
    %v4187 = vunpack.c.l.b16 %v3899
    %v4188 = vunpack.c.h.b16 %v3899
    %v4189 = vunpack.c.l.b16 %v3900
    %v4190 = vunpack.c.h.b16 %v3900
    %v4191 = vunpack.c.l.b16 %v3901
    %v4192 = vunpack.c.h.b16 %v3901
    %v4193 = vunpack.c.l.b16 %v3902
    %v4194 = vunpack.c.h.b16 %v3902
    %v4195 = vunpack.c.l.b16 %v3903
    %v4196 = vunpack.c.h.b16 %v3903
    %v4197 = vunpack.c.l.b16 %v3904
    %v4198 = vunpack.c.h.b16 %v3904
    %v4199 = vunpack.c.l.b16 %v3905
    %v4200 = vunpack.c.h.b16 %v3905
    %v4201 = vunpack.c.l.b16 %v3906
    %v4202 = vunpack.c.h.b16 %v3906
    %v4203 = vunpack.c.l.b16 %v3907
    %v4204 = vunpack.c.h.b16 %v3907
    %v4205 = vunpack.c.l.b16 %v3908
    %v4206 = vunpack.c.h.b16 %v3908
    %v4207 = vunpack.c.l.b16 %v3909
    %v4208 = vunpack.c.h.b16 %v3909
    %v4209 = vunpack.c.l.b16 %v3910
    %v4210 = vunpack.c.h.b16 %v3910
    %v4211 = vunpack.c.l.b16 %v3911
    %v4212 = vunpack.c.h.b16 %v3911
    %v4213 = vunpack.c.l.b16 %v3912
    %v4214 = vunpack.c.h.b16 %v3912
    %v4215 = vunpack.c.l.b16 %v3913
    %v4216 = vunpack.c.h.b16 %v3913
    %v4217 = vunpack.c.l.b16 %v3914
    %v4218 = vunpack.c.h.b16 %v3914
    %v4219 = vunpack.c.l.b16 %v3915
    %v4220 = vunpack.c.h.b16 %v3915
    %v4221 = vunpack.c.l.b16 %v3916
    %v4222 = vunpack.c.h.b16 %v3916
    %v4223 = vunpack.c.l.b16 %v3917
    %v4224 = vunpack.c.h.b16 %v3917
    %v4225 = vunpack.c.l.b16 %v3918
    %v4226 = vunpack.c.h.b16 %v3918
    %v4227 = vunpack.c.l.b16 %v3919
    %v4228 = vunpack.c.h.b16 %v3919
    %v4229 = vunpack.c.l.b16 %v3920
    %v4230 = vunpack.c.h.b16 %v3920
    %v4231 = vunpack.c.l.b16 %v3921
    %v4232 = vunpack.c.h.b16 %v3921
    %v4233 = vunpack.c.l.b16 %v3922
    %v4234 = vunpack.c.h.b16 %v3922
    %v4235 = vunpack.c.l.b16 %v3923
    %v4236 = vunpack.c.h.b16 %v3923
    %v4237 = vunpack.c.l.b16 %v3924
    %v4238 = vunpack.c.h.b16 %v3924
    %v4239 = vunpack.c.l.b16 %v3925
    %v4240 = vunpack.c.h.b16 %v3925
    %v4241 = vunpack.c.l.b16 %v3926
    %v4242 = vunpack.c.h.b16 %v3926
    %v4243 = vunpack.c.l.b16 %v3927
    %v4244 = vunpack.c.h.b16 %v3927
    %v4245 = vunpack.c.l.b16 %v3928
    %v4246 = vunpack.c.h.b16 %v3928
    %v4247 = vunpack.c.l.b16 %v3929
    %v4248 = vunpack.c.h.b16 %v3929
    %v4249 = vunpack.c.l.b16 %v3930
    %v4250 = vunpack.c.h.b16 %v3930
    %v4251 = vunpack.c.l.b16 %v3931
    %v4252 = vunpack.c.h.b16 %v3931
    %v4253 = vunpack.c.l.b16 %v3932
    %v4254 = vunpack.c.h.b16 %v3932
    %v4255 = vunpack.c.l.b16 %v3933
    %v4256 = vunpack.c.h.b16 %v3933
    %v4257 = vunpack.c.l.b16 %v3934
    %v4258 = vunpack.c.h.b16 %v3934
    %v4259 = vunpack.c.l.b16 %v3935
    %v4260 = vunpack.c.h.b16 %v3935
    %v4261 = vunpack.c.l.b16 %v3936
    %v4262 = vunpack.c.h.b16 %v3936
    %v4263 = vunpack.c.l.b16 %v3937
    %v4264 = vunpack.c.h.b16 %v3937
    %v4265 = vunpack.c.l.b16 %v3938
    %v4266 = vunpack.c.h.b16 %v3938
    %v4267 = vunpack.c.l.b16 %v3939
    %v4268 = vunpack.c.h.b16 %v3939
    %v4269 = vunpack.c.l.b16 %v3940
    %v4270 = vunpack.c.h.b16 %v3940
    %v4271 = vunpack.c.l.b16 %v3941
    %v4272 = vunpack.c.h.b16 %v3941
    %v4273 = vunpack.c.l.b16 %v3942
    %v4274 = vunpack.c.h.b16 %v3942
    %v4275 = vunpack.c.l.b16 %v3943
    %v4276 = vunpack.c.h.b16 %v3943
    %v4277 = vunpack.c.l.b16 %v3944
    %v4278 = vunpack.c.h.b16 %v3944
    %v4279 = vunpack.c.l.b16 %v3945
    %v4280 = vunpack.c.h.b16 %v3945
    %v4281 = vunpack.c.l.b16 %v3946
    %v4282 = vunpack.c.h.b16 %v3946
    %v4283 = vunpack.c.l.b16 %v3947
    %v4284 = vunpack.c.h.b16 %v3947
    %v4285 = vunpack.c.l.b16 %v3948
    %v4286 = vunpack.c.h.b16 %v3948
    %v4287 = vunpack.c.l.b16 %v3949
    %v4288 = vunpack.c.h.b16 %v3949
    %v4289 = vunpack.c.l.b16 %v3950
    %v4290 = vunpack.c.h.b16 %v3950
    %v4291 = vunpack.c.l.b16 %v3951
    %v4292 = vunpack.c.h.b16 %v3951
    %v4293 = vunpack.c.l.b16 %v3952
    %v4294 = vunpack.c.h.b16 %v3952
    %v4295 = vunpack.c.l.b16 %v3953
    %v4296 = vunpack.c.h.b16 %v3953
    %v4297 = vunpack.c.l.b16 %v3954
    %v4298 = vunpack.c.h.b16 %v3954
    %v4299 = vunpack.c.l.b16 %v3955
    %v4300 = vunpack.c.h.b16 %v3955
    %v4301 = vunpack.c.l.b16 %v3956
    %v4302 = vunpack.c.h.b16 %v3956
    %v4303 = vunpack.c.l.b16 %v3957
    %v4304 = vunpack.c.h.b16 %v3957
    %v4305 = vunpack.c.l.b16 %v3958
    %v4306 = vunpack.c.h.b16 %v3958
    %v4307 = vunpack.c.l.b16 %v3959
    %v4308 = vunpack.c.h.b16 %v3959
    %v4309 = vunpack.c.l.b16 %v3960
    %v4310 = vunpack.c.h.b16 %v3960
    %v4311 = vunpack.c.l.b16 %v3961
    %v4312 = vunpack.c.h.b16 %v3961
    %v4313 = vunpack.c.l.b16 %v3962
    %v4314 = vunpack.c.h.b16 %v3962
    %v4315 = vunpack.c.l.b16 %v3963
    %v4316 = vunpack.c.h.b16 %v3963
    %v4317 = vunpack.c.l.b16 %v3964
    %v4318 = vunpack.c.h.b16 %v3964
    %v4319 = vunpack.c.l.b16 %v3965
    %v4320 = vunpack.c.h.b16 %v3965
    %v4321 = vunpack.c.l.b16 %v3966
    %v4322 = vunpack.c.h.b16 %v3966
    %v4323 = vunpack.c.l.b16 %v3967
    %v4324 = vunpack.c.h.b16 %v3967
    %v4325 = vunpack.c.l.b16 %v3968
    %v4326 = vunpack.c.h.b16 %v3968
    %v4327 = vunpack.c.l.b16 %v3969
    %v4328 = vunpack.c.h.b16 %v3969
    %v4329 = vunpack.c.l.b16 %v3970
    %v4330 = vunpack.c.h.b16 %v3970
    %v4331 = vunpack.c.l.b16 %v3971
    %v4332 = vunpack.c.h.b16 %v3971
    %v4333 = vunpack.c.l.b16 %v3972
    %v4334 = vunpack.c.h.b16 %v3972
    %v4335 = vunpack.c.l.b16 %v3973
    %v4336 = vunpack.c.h.b16 %v3973
    %v4337 = vunpack.c.l.b16 %v3974
    %v4338 = vunpack.c.h.b16 %v3974
    %v4339 = vunpack.c.l.b16 %v3975
    %v4340 = vunpack.c.h.b16 %v3975
    %v4341 = vunpack.c.l.b16 %v3976
    %v4342 = vunpack.c.h.b16 %v3976
    %v4343 = vunpack.c.l.b16 %v3977
    %v4344 = vunpack.c.h.b16 %v3977
    %v4345 = vunpack.c.l.b16 %v3978
    %v4346 = vunpack.c.h.b16 %v3978
    %v4347 = vunpack.c.l.b16 %v3979
    %v4348 = vunpack.c.h.b16 %v3979
    %v4349 = vunpack.c.l.b16 %v3980
    %v4350 = vunpack.c.h.b16 %v3980
    %v4351 = vunpack.c.l.b16 %v3981
    %v4352 = vunpack.c.h.b16 %v3981
    %v4353 = vunpack.c.l.b16 %v3982
    %v4354 = vunpack.c.h.b16 %v3982
    %v4355 = vunpack.c.l.b16 %v3983
    %v4356 = vunpack.c.h.b16 %v3983
    %v4357 = vunpack.c.l.b16 %v3984
    %v4358 = vunpack.c.h.b16 %v3984
    %v4359 = vunpack.c.l.b16 %v3985
    %v4360 = vunpack.c.h.b16 %v3985
    %v4361 = vunpack.c.l.b16 %v3986
    %v4362 = vunpack.c.h.b16 %v3986
    %v4363 = vunpack.c.l.b16 %v3987
    %v4364 = vunpack.c.h.b16 %v3987
    %v4365 = vunpack.c.l.b16 %v3988
    %v4366 = vunpack.c.h.b16 %v3988
    %v4367 = vunpack.c.l.b16 %v3989
    %v4368 = vunpack.c.h.b16 %v3989
    %v4369 = vunpack.c.l.b16 %v3990
    %v4370 = vunpack.c.h.b16 %v3990
    %v4371 = vunpack.c.l.b16 %v3991
    %v4372 = vunpack.c.h.b16 %v3991
    %v4373 = vunpack.c.l.b16 %v3992
    %v4374 = vunpack.c.h.b16 %v3992
    %v4375 = vunpack.c.l.b16 %v3993
    %v4376 = vunpack.c.h.b16 %v3993
    %v4377 = vunpack.c.l.b16 %v3994
    %v4378 = vunpack.c.h.b16 %v3994
    %v4379 = vunpack.c.l.b16 %v3995
    %v4380 = vunpack.c.h.b16 %v3995
    %v4381 = vunpack.c.l.b16 %v3996
    %v4382 = vunpack.c.h.b16 %v3996
    %v4383 = vunpack.c.l.b16 %v3997
    %v4384 = vunpack.c.h.b16 %v3997
    %v4385 = vunpack.c.l.b16 %v3998
    %v4386 = vunpack.c.h.b16 %v3998
    %v4387 = vunpack.c.l.b16 %v3999
    %v4388 = vunpack.c.h.b16 %v3999
    %v4389 = vunpack.c.l.b16 %v4000
    %v4390 = vunpack.c.h.b16 %v4000
    %v4391 = vunpack.c.l.b16 %v4001
    %v4392 = vunpack.c.h.b16 %v4001
    %v4393 = vunpack.c.l.b16 %v4002
    %v4394 = vunpack.c.h.b16 %v4002
    %v4395 = vunpack.c.l.b16 %v4003
    %v4396 = vunpack.c.h.b16 %v4003
    %v4397 = vunpack.c.l.b16 %v4004
    %v4398 = vunpack.c.h.b16 %v4004
    %v4399 = vunpack.c.l.b16 %v4005
    %v4400 = vunpack.c.h.b16 %v4005
    %v4401 = vunpack.c.l.b16 %v4006
    %v4402 = vunpack.c.h.b16 %v4006
    %v4403 = vunpack.c.l.b16 %v4007
    %v4404 = vunpack.c.h.b16 %v4007
    %v4405 = vunpack.c.l.b16 %v4008
    %v4406 = vunpack.c.h.b16 %v4008
    %v4407 = vunpack.c.l.b16 %v4009
    %v4408 = vunpack.c.h.b16 %v4009
    %v4409 = vunpack.c.l.b16 %v4010
    %v4410 = vunpack.c.h.b16 %v4010
    %v4411 = vunpack.c.l.b16 %v4011
    %v4412 = vunpack.c.h.b16 %v4011
    %v4413 = vunpack.c.l.b16 %v4012
    %v4414 = vunpack.c.h.b16 %v4012
    %v4415 = vunpack.c.l.b16 %v4013
    %v4416 = vunpack.c.h.b16 %v4013
    %v4417 = vunpack.c.l.b16 %v4014
    %v4418 = vunpack.c.h.b16 %v4014
    %v4419 = vunpack.c.l.b16 %v4015
    %v4420 = vunpack.c.h.b16 %v4015
    %v4421 = vunpack.c.l.b16 %v4016
    %v4422 = vunpack.c.h.b16 %v4016
    %v4423 = vpack.c.b16 %v4171, %v4167
    %v4424 = vpack.c.b16 %v4172, %v4168
    %v4425 = vpack.c.b16 %v4173, %v4169
    %v4426 = vpack.c.b16 %v4174, %v4170
    %v4427 = vpack.c.b16 %v4179, %v4175
    %v4428 = vpack.c.b16 %v4180, %v4176
    %v4429 = vpack.c.b16 %v4181, %v4177
    %v4430 = vpack.c.b16 %v4182, %v4178
    %v4431 = vpack.c.b16 %v4187, %v4183
    %v4432 = vpack.c.b16 %v4188, %v4184
    %v4433 = vpack.c.b16 %v4189, %v4185
    %v4434 = vpack.c.b16 %v4190, %v4186
    %v4435 = vpack.c.b16 %v4195, %v4191
    %v4436 = vpack.c.b16 %v4196, %v4192
    %v4437 = vpack.c.b16 %v4197, %v4193
    %v4438 = vpack.c.b16 %v4198, %v4194
    %v4439 = vpack.c.b16 %v4203, %v4199
    %v4440 = vpack.c.b16 %v4204, %v4200
    %v4441 = vpack.c.b16 %v4205, %v4201
    %v4442 = vpack.c.b16 %v4206, %v4202
    %v4443 = vpack.c.b16 %v4211, %v4207
    %v4444 = vpack.c.b16 %v4212, %v4208
    %v4445 = vpack.c.b16 %v4213, %v4209
    %v4446 = vpack.c.b16 %v4214, %v4210
    %v4447 = vpack.c.b16 %v4219, %v4215
    %v4448 = vpack.c.b16 %v4220, %v4216
    %v4449 = vpack.c.b16 %v4221, %v4217
    %v4450 = vpack.c.b16 %v4222, %v4218
    %v4451 = vpack.c.b16 %v4227, %v4223
    %v4452 = vpack.c.b16 %v4228, %v4224
    %v4453 = vpack.c.b16 %v4229, %v4225
    %v4454 = vpack.c.b16 %v4230, %v4226
    %v4455 = vpack.c.b16 %v4235, %v4231
    %v4456 = vpack.c.b16 %v4236, %v4232
    %v4457 = vpack.c.b16 %v4237, %v4233
    %v4458 = vpack.c.b16 %v4238, %v4234
    %v4459 = vpack.c.b16 %v4243, %v4239
    %v4460 = vpack.c.b16 %v4244, %v4240
    %v4461 = vpack.c.b16 %v4245, %v4241
    %v4462 = vpack.c.b16 %v4246, %v4242
    %v4463 = vpack.c.b16 %v4251, %v4247
    %v4464 = vpack.c.b16 %v4252, %v4248
    %v4465 = vpack.c.b16 %v4253, %v4249
    %v4466 = vpack.c.b16 %v4254, %v4250
    %v4467 = vpack.c.b16 %v4259, %v4255
    %v4468 = vpack.c.b16 %v4260, %v4256
    %v4469 = vpack.c.b16 %v4261, %v4257
    %v4470 = vpack.c.b16 %v4262, %v4258
    %v4471 = vpack.c.b16 %v4267, %v4263
    %v4472 = vpack.c.b16 %v4268, %v4264
    %v4473 = vpack.c.b16 %v4269, %v4265
    %v4474 = vpack.c.b16 %v4270, %v4266
    %v4475 = vpack.c.b16 %v4275, %v4271
    %v4476 = vpack.c.b16 %v4276, %v4272
    %v4477 = vpack.c.b16 %v4277, %v4273
    %v4478 = vpack.c.b16 %v4278, %v4274
    %v4479 = vpack.c.b16 %v4283, %v4279
    %v4480 = vpack.c.b16 %v4284, %v4280
    %v4481 = vpack.c.b16 %v4285, %v4281
    %v4482 = vpack.c.b16 %v4286, %v4282
    %v4483 = vpack.c.b16 %v4291, %v4287
    %v4484 = vpack.c.b16 %v4292, %v4288
    %v4485 = vpack.c.b16 %v4293, %v4289
    %v4486 = vpack.c.b16 %v4294, %v4290
    %v4487 = vpack.c.b16 %v4299, %v4295
    %v4488 = vpack.c.b16 %v4300, %v4296
    %v4489 = vpack.c.b16 %v4301, %v4297
    %v4490 = vpack.c.b16 %v4302, %v4298
    %v4491 = vpack.c.b16 %v4307, %v4303
    %v4492 = vpack.c.b16 %v4308, %v4304
    %v4493 = vpack.c.b16 %v4309, %v4305
    %v4494 = vpack.c.b16 %v4310, %v4306
    %v4495 = vpack.c.b16 %v4315, %v4311
    %v4496 = vpack.c.b16 %v4316, %v4312
    %v4497 = vpack.c.b16 %v4317, %v4313
    %v4498 = vpack.c.b16 %v4318, %v4314
    %v4499 = vpack.c.b16 %v4323, %v4319
    %v4500 = vpack.c.b16 %v4324, %v4320
    %v4501 = vpack.c.b16 %v4325, %v4321
    %v4502 = vpack.c.b16 %v4326, %v4322
    %v4503 = vpack.c.b16 %v4331, %v4327
    %v4504 = vpack.c.b16 %v4332, %v4328
    %v4505 = vpack.c.b16 %v4333, %v4329
    %v4506 = vpack.c.b16 %v4334, %v4330
    %v4507 = vpack.c.b16 %v4339, %v4335
    %v4508 = vpack.c.b16 %v4340, %v4336
    %v4509 = vpack.c.b16 %v4341, %v4337
    %v4510 = vpack.c.b16 %v4342, %v4338
    %v4511 = vpack.c.b16 %v4347, %v4343
    %v4512 = vpack.c.b16 %v4348, %v4344
    %v4513 = vpack.c.b16 %v4349, %v4345
    %v4514 = vpack.c.b16 %v4350, %v4346
    %v4515 = vpack.c.b16 %v4355, %v4351
    %v4516 = vpack.c.b16 %v4356, %v4352
    %v4517 = vpack.c.b16 %v4357, %v4353
    %v4518 = vpack.c.b16 %v4358, %v4354
    %v4519 = vpack.c.b16 %v4363, %v4359
    %v4520 = vpack.c.b16 %v4364, %v4360
    %v4521 = vpack.c.b16 %v4365, %v4361
    %v4522 = vpack.c.b16 %v4366, %v4362
    %v4523 = vpack.c.b16 %v4371, %v4367
    %v4524 = vpack.c.b16 %v4372, %v4368
    %v4525 = vpack.c.b16 %v4373, %v4369
    %v4526 = vpack.c.b16 %v4374, %v4370
    %v4527 = vpack.c.b16 %v4379, %v4375
    %v4528 = vpack.c.b16 %v4380, %v4376
    %v4529 = vpack.c.b16 %v4381, %v4377
    %v4530 = vpack.c.b16 %v4382, %v4378
    %v4531 = vpack.c.b16 %v4387, %v4383
    %v4532 = vpack.c.b16 %v4388, %v4384
    %v4533 = vpack.c.b16 %v4389, %v4385
    %v4534 = vpack.c.b16 %v4390, %v4386
    %v4535 = vpack.c.b16 %v4395, %v4391
    %v4536 = vpack.c.b16 %v4396, %v4392
    %v4537 = vpack.c.b16 %v4397, %v4393
    %v4538 = vpack.c.b16 %v4398, %v4394
    %v4539 = vpack.c.b16 %v4403, %v4399
    %v4540 = vpack.c.b16 %v4404, %v4400
    %v4541 = vpack.c.b16 %v4405, %v4401
    %v4542 = vpack.c.b16 %v4406, %v4402
    %v4543 = vpack.c.b16 %v4411, %v4407
    %v4544 = vpack.c.b16 %v4412, %v4408
    %v4545 = vpack.c.b16 %v4413, %v4409
    %v4546 = vpack.c.b16 %v4414, %v4410
    %v4547 = vpack.c.b16 %v4419, %v4415
    %v4548 = vpack.c.b16 %v4420, %v4416
    %v4549 = vpack.c.b16 %v4421, %v4417
    %v4550 = vpack.c.b16 %v4422, %v4418
    %4679 = vmatprep.subr.bf16.mxu0 %v4424
    %4680 = vmatpush1.bf16.msra.mxu0 %v4423
    %4681 = vmatprep.subr.bf16.mxu0 %v4428
    %4682 = vmatpush1.bf16.msra.mxu0 %v4427
    %4683 = vmatprep.subr.bf16.mxu0 %v4432
    %4684 = vmatpush1.bf16.msra.mxu0 %v4431
    %4685 = vmatprep.subr.bf16.mxu0 %v4436
    %4686 = vmatpush1.bf16.msra.mxu0 %v4435
    %4687 = vmatprep.subr.bf16.mxu0 %v4440
    %4688 = vmatpush1.bf16.msra.mxu0 %v4439
    %4689 = vmatprep.subr.bf16.mxu0 %v4444
    %4690 = vmatpush1.bf16.msra.mxu0 %v4443
    %4691 = vmatprep.subr.bf16.mxu0 %v4448
    %4692 = vmatpush1.bf16.msra.mxu0 %v4447
    %4693 = vmatprep.subr.bf16.mxu0 %v4452
    %4694 = vmatpush1.bf16.msra.mxu0 %v4451
    %4695 = vmatprep.subr.bf16.mxu0 %v4456
    %4696 = vmatpush1.bf16.msra.mxu0 %v4455
    %4697 = vmatprep.subr.bf16.mxu0 %v4460
    %4698 = vmatpush1.bf16.msra.mxu0 %v4459
    %4699 = vmatprep.subr.bf16.mxu0 %v4464
    %4700 = vmatpush1.bf16.msra.mxu0 %v4463
    %4701 = vmatprep.subr.bf16.mxu0 %v4468
    %4702 = vmatpush1.bf16.msra.mxu0 %v4467
    %4703 = vmatprep.subr.bf16.mxu0 %v4472
    %4704 = vmatpush1.bf16.msra.mxu0 %v4471
    %4705 = vmatprep.subr.bf16.mxu0 %v4476
    %4706 = vmatpush1.bf16.msra.mxu0 %v4475
    %4707 = vmatprep.subr.bf16.mxu0 %v4480
    %4708 = vmatpush1.bf16.msra.mxu0 %v4479
    %4709 = vmatprep.subr.bf16.mxu0 %v4484
    %4710 = vmatpush1.bf16.msra.mxu0 %v4483
    %4711 = vmatprep.mubr.bf16.mxu0 %v3826
    %4712 = vmatmul.mubr.bf16.gmra.mrb[0].mxu0 %v3825
    %v4713 = vpop.f32.mrb[0].mxu0
    %v4714 = vadd.f32 %v4022, %v4713
    %v4715 = vpop.f32.mrb[0].mxu0
    %v4716 = vadd.f32 %v4026, %v4715
    %v4717 = vpop.f32.mrb[0].mxu0
    %v4718 = vadd.f32 %v4022, %v4717
    %v4719 = vpop.f32.mrb[0].mxu0
    %v4720 = vadd.f32 %v4026, %v4719
    %4721 = vmatprep.mubr.bf16.mxu0 %v3830
    %4722 = vmatmul.mubr.bf16.gmra.mrb[0].mxu0 %v3829
    %v4723 = vpop.f32.mrb[0].mxu0
    %v4724 = vadd.f32 %v4022, %v4723
    %v4725 = vpop.f32.mrb[0].mxu0
    %v4726 = vadd.f32 %v4026, %v4725
    %v4727 = vpop.f32.mrb[0].mxu0
    %v4728 = vadd.f32 %v4022, %v4727
    %v4729 = vpop.f32.mrb[0].mxu0
    %v4730 = vadd.f32 %v4026, %v4729
    %4731 = vmatprep.mubr.bf16.mxu0 %v3834
    %4732 = vmatmul.mubr.bf16.gmra.mrb[0].mxu0 %v3833
    %v4733 = vpop.f32.mrb[0].mxu0
    %v4734 = vadd.f32 %v4022, %v4733
    %v4735 = vpop.f32.mrb[0].mxu0
    %v4736 = vadd.f32 %v4026, %v4735
    %v4737 = vpop.f32.mrb[0].mxu0
    %v4738 = vadd.f32 %v4022, %v4737
    %v4739 = vpop.f32.mrb[0].mxu0
    %v4740 = vadd.f32 %v4026, %v4739
    %4741 = vmatprep.mubr.bf16.mxu0 %v3838
    %4742 = vmatmul.mubr.bf16.gmra.mrb[0].mxu0 %v3837
    %v4743 = vpop.f32.mrb[0].mxu0
    %v4744 = vadd.f32 %v4022, %v4743
    %v4745 = vpop.f32.mrb[0].mxu0
    %v4746 = vadd.f32 %v4026, %v4745
    %v4747 = vpop.f32.mrb[0].mxu0
    %v4748 = vadd.f32 %v4022, %v4747
    %v4749 = vpop.f32.mrb[0].mxu0
    %v4750 = vadd.f32 %v4026, %v4749
    %4751 = vmatprep.mubr.bf16.mxu0 %v3842
    %4752 = vmatmul.mubr.bf16.gmra.mrb[0].mxu0 %v3841
    %v4753 = vpop.f32.mrb[0].mxu0
    %v4754 = vadd.f32 %v4022, %v4753
    %v4755 = vpop.f32.mrb[0].mxu0
    %v4756 = vadd.f32 %v4026, %v4755
    %v4757 = vpop.f32.mrb[0].mxu0
    %v4758 = vadd.f32 %v4022, %v4757
    %v4759 = vpop.f32.mrb[0].mxu0
    %v4760 = vadd.f32 %v4026, %v4759
    %4761 = vmatprep.mubr.bf16.mxu0 %v3846
    %4762 = vmatmul.mubr.bf16.gmra.mrb[0].mxu0 %v3845
    %v4763 = vpop.f32.mrb[0].mxu0
    %v4764 = vadd.f32 %v4022, %v4763
    %v4765 = vpop.f32.mrb[0].mxu0
    %v4766 = vadd.f32 %v4026, %v4765
    %v4767 = vpop.f32.mrb[0].mxu0
    %v4768 = vadd.f32 %v4022, %v4767
    %v4769 = vpop.f32.mrb[0].mxu0
    %v4770 = vadd.f32 %v4026, %v4769
    %4771 = vmatprep.mubr.bf16.mxu0 %v3850
    %4772 = vmatmul.mubr.bf16.gmra.mrb[0].mxu0 %v3849
    %v4773 = vpop.f32.mrb[0].mxu0
    %v4774 = vadd.f32 %v4022, %v4773
    %v4775 = vpop.f32.mrb[0].mxu0
    %v4776 = vadd.f32 %v4026, %v4775
    %v4777 = vpop.f32.mrb[0].mxu0
    %v4778 = vadd.f32 %v4022, %v4777
    %v4779 = vpop.f32.mrb[0].mxu0
    %v4780 = vadd.f32 %v4026, %v4779
    %4781 = vmatprep.mubr.bf16.mxu0 %v3854
    %4782 = vmatmul.mubr.bf16.gmra.mrb[0].mxu0 %v3853
    %v4783 = vpop.f32.mrb[0].mxu0
    %v4784 = vadd.f32 %v4022, %v4783
    %v4785 = vpop.f32.mrb[0].mxu0
    %v4786 = vadd.f32 %v4026, %v4785
    %v4787 = vpop.f32.mrb[0].mxu0
    %v4788 = vadd.f32 %v4022, %v4787
    %v4789 = vpop.f32.mrb[0].mxu0
    %v4790 = vadd.f32 %v4026, %v4789
    %4791 = vmatprep.mubr.bf16.mxu0 %v3858
    %4792 = vmatmul.mubr.bf16.gmra.mrb[0].mxu0 %v3857
    %v4793 = vpop.f32.mrb[0].mxu0
    %v4794 = vadd.f32 %v4022, %v4793
    %v4795 = vpop.f32.mrb[0].mxu0
    %v4796 = vadd.f32 %v4026, %v4795
    %v4797 = vpop.f32.mrb[0].mxu0
    %v4798 = vadd.f32 %v4022, %v4797
    %v4799 = vpop.f32.mrb[0].mxu0
    %v4800 = vadd.f32 %v4026, %v4799
    %4801 = vmatprep.mubr.bf16.mxu0 %v3862
    %4802 = vmatmul.mubr.bf16.gmra.mrb[0].mxu0 %v3861
    %v4803 = vpop.f32.mrb[0].mxu0
    %v4804 = vadd.f32 %v4022, %v4803
    %v4805 = vpop.f32.mrb[0].mxu0
    %v4806 = vadd.f32 %v4026, %v4805
    %v4807 = vpop.f32.mrb[0].mxu0
    %v4808 = vadd.f32 %v4022, %v4807
    %v4809 = vpop.f32.mrb[0].mxu0
    %v4810 = vadd.f32 %v4026, %v4809
    %4811 = vmatprep.mubr.bf16.mxu0 %v3866
    %4812 = vmatmul.mubr.bf16.gmra.mrb[0].mxu0 %v3865
    %v4813 = vpop.f32.mrb[0].mxu0
    %v4814 = vadd.f32 %v4022, %v4813
    %v4815 = vpop.f32.mrb[0].mxu0
    %v4816 = vadd.f32 %v4026, %v4815
    %v4817 = vpop.f32.mrb[0].mxu0
    %v4818 = vadd.f32 %v4022, %v4817
    %v4819 = vpop.f32.mrb[0].mxu0
    %v4820 = vadd.f32 %v4026, %v4819
    %4821 = vmatprep.mubr.bf16.mxu0 %v3870
    %4822 = vmatmul.mubr.bf16.gmra.mrb[0].mxu0 %v3869
    %v4823 = vpop.f32.mrb[0].mxu0
    %v4824 = vadd.f32 %v4022, %v4823
    %v4825 = vpop.f32.mrb[0].mxu0
    %v4826 = vadd.f32 %v4026, %v4825
    %v4827 = vpop.f32.mrb[0].mxu0
    %v4828 = vadd.f32 %v4022, %v4827
    %v4829 = vpop.f32.mrb[0].mxu0
    %v4830 = vadd.f32 %v4026, %v4829
    %4831 = vmatprep.mubr.bf16.mxu0 %v3874
    %4832 = vmatmul.mubr.bf16.gmra.mrb[0].mxu0 %v3873
    %v4833 = vpop.f32.mrb[0].mxu0
    %v4834 = vadd.f32 %v4022, %v4833
    %v4835 = vpop.f32.mrb[0].mxu0
    %v4836 = vadd.f32 %v4026, %v4835
    %v4837 = vpop.f32.mrb[0].mxu0
    %v4838 = vadd.f32 %v4022, %v4837
    %v4839 = vpop.f32.mrb[0].mxu0
    %v4840 = vadd.f32 %v4026, %v4839
    %4841 = vmatprep.mubr.bf16.mxu0 %v3878
    %4842 = vmatmul.mubr.bf16.gmra.mrb[0].mxu0 %v3877
    %v4843 = vpop.f32.mrb[0].mxu0
    %v4844 = vadd.f32 %v4022, %v4843
    %v4845 = vpop.f32.mrb[0].mxu0
    %v4846 = vadd.f32 %v4026, %v4845
    %v4847 = vpop.f32.mrb[0].mxu0
    %v4848 = vadd.f32 %v4022, %v4847
    %v4849 = vpop.f32.mrb[0].mxu0
    %v4850 = vadd.f32 %v4026, %v4849
    %4851 = vmatprep.mubr.bf16.mxu0 %v3882
    %4852 = vmatmul.mubr.bf16.gmra.mrb[0].mxu0 %v3881
    %v4853 = vpop.f32.mrb[0].mxu0
    %v4854 = vadd.f32 %v4022, %v4853
    %v4855 = vpop.f32.mrb[0].mxu0
    %v4856 = vadd.f32 %v4026, %v4855
    %v4857 = vpop.f32.mrb[0].mxu0
    %v4858 = vadd.f32 %v4022, %v4857
    %v4859 = vpop.f32.mrb[0].mxu0
    %v4860 = vadd.f32 %v4026, %v4859
    %4861 = vmatprep.mubr.bf16.mxu0 %v3886
    %4862 = vmatmul.mubr.bf16.gmra.mrb[0].mxu0 %v3885
    %v4863 = vpop.f32.mrb[0].mxu0
    %v4864 = vadd.f32 %v4022, %v4863
    %v4865 = vpop.f32.mrb[0].mxu0
    %v4866 = vadd.f32 %v4026, %v4865
    %v4867 = vpop.f32.mrb[0].mxu0
    %v4868 = vadd.f32 %v4022, %v4867
    %v4869 = vpop.f32.mrb[0].mxu0
    %v4870 = vadd.f32 %v4026, %v4869
    %4871 = vdwg.mxu0
    %4872 = vmatprep.subr.bf16.mxu0 %v4488
    %4873 = vmatpush1.bf16.msra.mxu0 %v4487
    %4874 = vmatprep.subr.bf16.mxu0 %v4492
    %4875 = vmatpush1.bf16.msra.mxu0 %v4491
    %4876 = vmatprep.subr.bf16.mxu0 %v4496
    %4877 = vmatpush1.bf16.msra.mxu0 %v4495
    %4878 = vmatprep.subr.bf16.mxu0 %v4500
    %4879 = vmatpush1.bf16.msra.mxu0 %v4499
    %4880 = vmatprep.subr.bf16.mxu0 %v4504
    %4881 = vmatpush1.bf16.msra.mxu0 %v4503
    %4882 = vmatprep.subr.bf16.mxu0 %v4508
    %4883 = vmatpush1.bf16.msra.mxu0 %v4507
    %4884 = vmatprep.subr.bf16.mxu0 %v4512
    %4885 = vmatpush1.bf16.msra.mxu0 %v4511
    %4886 = vmatprep.subr.bf16.mxu0 %v4516
    %4887 = vmatpush1.bf16.msra.mxu0 %v4515
    %4888 = vmatprep.subr.bf16.mxu0 %v4520
    %4889 = vmatpush1.bf16.msra.mxu0 %v4519
    %4890 = vmatprep.subr.bf16.mxu0 %v4524
    %4891 = vmatpush1.bf16.msra.mxu0 %v4523
    %4892 = vmatprep.subr.bf16.mxu0 %v4528
    %4893 = vmatpush1.bf16.msra.mxu0 %v4527
    %4894 = vmatprep.subr.bf16.mxu0 %v4532
    %4895 = vmatpush1.bf16.msra.mxu0 %v4531
    %4896 = vmatprep.subr.bf16.mxu0 %v4536
    %4897 = vmatpush1.bf16.msra.mxu0 %v4535
    %4898 = vmatprep.subr.bf16.mxu0 %v4540
    %4899 = vmatpush1.bf16.msra.mxu0 %v4539
    %4900 = vmatprep.subr.bf16.mxu0 %v4544
    %4901 = vmatpush1.bf16.msra.mxu0 %v4543
    %4902 = vmatprep.subr.bf16.mxu0 %v4548
    %4903 = vmatpush1.bf16.msra.mxu0 %v4547
    %4904 = vmatprep.mubr.bf16.mxu0 %v3828
    %4905 = vmatmul.mubr.bf16.gmra.mrb[0].mxu0 %v3827
    %v4906 = vpop.f32.mrb[0].mxu0
    %v4907 = vadd.f32 %v4714, %v4906
    %v4908 = vpop.f32.mrb[0].mxu0
    %v4909 = vadd.f32 %v4716, %v4908
    %v4910 = vpop.f32.mrb[0].mxu0
    %v4911 = vadd.f32 %v4718, %v4910
    %v4912 = vpop.f32.mrb[0].mxu0
    %v4913 = vadd.f32 %v4720, %v4912
    %4914 = vmatprep.mubr.bf16.mxu0 %v3832
    %4915 = vmatmul.mubr.bf16.gmra.mrb[0].mxu0 %v3831
    %v4916 = vpop.f32.mrb[0].mxu0
    %v4917 = vadd.f32 %v4724, %v4916
    %v4918 = vpop.f32.mrb[0].mxu0
    %v4919 = vadd.f32 %v4726, %v4918
    %v4920 = vpop.f32.mrb[0].mxu0
    %v4921 = vadd.f32 %v4728, %v4920
    %v4922 = vpop.f32.mrb[0].mxu0
    %v4923 = vadd.f32 %v4730, %v4922
    %4924 = vmatprep.mubr.bf16.mxu0 %v3836
    %4925 = vmatmul.mubr.bf16.gmra.mrb[0].mxu0 %v3835
    %v4926 = vpop.f32.mrb[0].mxu0
    %v4927 = vadd.f32 %v4734, %v4926
    %v4928 = vpop.f32.mrb[0].mxu0
    %v4929 = vadd.f32 %v4736, %v4928
    %v4930 = vpop.f32.mrb[0].mxu0
    %v4931 = vadd.f32 %v4738, %v4930
    %v4932 = vpop.f32.mrb[0].mxu0
    %v4933 = vadd.f32 %v4740, %v4932
    %4934 = vmatprep.mubr.bf16.mxu0 %v3840
    %4935 = vmatmul.mubr.bf16.gmra.mrb[0].mxu0 %v3839
    %v4936 = vpop.f32.mrb[0].mxu0
    %v4937 = vadd.f32 %v4744, %v4936
    %v4938 = vpop.f32.mrb[0].mxu0
    %v4939 = vadd.f32 %v4746, %v4938
    %v4940 = vpop.f32.mrb[0].mxu0
    %v4941 = vadd.f32 %v4748, %v4940
    %v4942 = vpop.f32.mrb[0].mxu0
    %v4943 = vadd.f32 %v4750, %v4942
    %4944 = vmatprep.mubr.bf16.mxu0 %v3844
    %4945 = vmatmul.mubr.bf16.gmra.mrb[0].mxu0 %v3843
    %v4946 = vpop.f32.mrb[0].mxu0
    %v4947 = vadd.f32 %v4754, %v4946
    %v4948 = vpop.f32.mrb[0].mxu0
    %v4949 = vadd.f32 %v4756, %v4948
    %v4950 = vpop.f32.mrb[0].mxu0
    %v4951 = vadd.f32 %v4758, %v4950
    %v4952 = vpop.f32.mrb[0].mxu0
    %v4953 = vadd.f32 %v4760, %v4952
    %4954 = vmatprep.mubr.bf16.mxu0 %v3848
    %4955 = vmatmul.mubr.bf16.gmra.mrb[0].mxu0 %v3847
    %v4956 = vpop.f32.mrb[0].mxu0
    %v4957 = vadd.f32 %v4764, %v4956
    %v4958 = vpop.f32.mrb[0].mxu0
    %v4959 = vadd.f32 %v4766, %v4958
    %v4960 = vpop.f32.mrb[0].mxu0
    %v4961 = vadd.f32 %v4768, %v4960
    %v4962 = vpop.f32.mrb[0].mxu0
    %v4963 = vadd.f32 %v4770, %v4962
    %4964 = vmatprep.mubr.bf16.mxu0 %v3852
    %4965 = vmatmul.mubr.bf16.gmra.mrb[0].mxu0 %v3851
    %v4966 = vpop.f32.mrb[0].mxu0
    %v4967 = vadd.f32 %v4774, %v4966
    %v4968 = vpop.f32.mrb[0].mxu0
    %v4969 = vadd.f32 %v4776, %v4968
    %v4970 = vpop.f32.mrb[0].mxu0
    %v4971 = vadd.f32 %v4778, %v4970
    %v4972 = vpop.f32.mrb[0].mxu0
    %v4973 = vadd.f32 %v4780, %v4972
    %4974 = vmatprep.mubr.bf16.mxu0 %v3856
    %4975 = vmatmul.mubr.bf16.gmra.mrb[0].mxu0 %v3855
    %v4976 = vpop.f32.mrb[0].mxu0
    %v4977 = vadd.f32 %v4784, %v4976
    %v4978 = vpop.f32.mrb[0].mxu0
    %v4979 = vadd.f32 %v4786, %v4978
    %v4980 = vpop.f32.mrb[0].mxu0
    %v4981 = vadd.f32 %v4788, %v4980
    %v4982 = vpop.f32.mrb[0].mxu0
    %v4983 = vadd.f32 %v4790, %v4982
    %4984 = vmatprep.mubr.bf16.mxu0 %v3860
    %4985 = vmatmul.mubr.bf16.gmra.mrb[0].mxu0 %v3859
    %v4986 = vpop.f32.mrb[0].mxu0
    %v4987 = vadd.f32 %v4794, %v4986
    %v4988 = vpop.f32.mrb[0].mxu0
    %v4989 = vadd.f32 %v4796, %v4988
    %v4990 = vpop.f32.mrb[0].mxu0
    %v4991 = vadd.f32 %v4798, %v4990
    %v4992 = vpop.f32.mrb[0].mxu0
    %v4993 = vadd.f32 %v4800, %v4992
    %4994 = vmatprep.mubr.bf16.mxu0 %v3864
    %4995 = vmatmul.mubr.bf16.gmra.mrb[0].mxu0 %v3863
    %v4996 = vpop.f32.mrb[0].mxu0
    %v4997 = vadd.f32 %v4804, %v4996
    %v4998 = vpop.f32.mrb[0].mxu0
    %v4999 = vadd.f32 %v4806, %v4998
    %v5000 = vpop.f32.mrb[0].mxu0
    %v5001 = vadd.f32 %v4808, %v5000
    %v5002 = vpop.f32.mrb[0].mxu0
    %v5003 = vadd.f32 %v4810, %v5002
    %5004 = vmatprep.mubr.bf16.mxu0 %v3868
    %5005 = vmatmul.mubr.bf16.gmra.mrb[0].mxu0 %v3867
    %v5006 = vpop.f32.mrb[0].mxu0
    %v5007 = vadd.f32 %v4814, %v5006
    %v5008 = vpop.f32.mrb[0].mxu0
    %v5009 = vadd.f32 %v4816, %v5008
    %v5010 = vpop.f32.mrb[0].mxu0
    %v5011 = vadd.f32 %v4818, %v5010
    %v5012 = vpop.f32.mrb[0].mxu0
    %v5013 = vadd.f32 %v4820, %v5012
    %5014 = vmatprep.mubr.bf16.mxu0 %v3872
    %5015 = vmatmul.mubr.bf16.gmra.mrb[0].mxu0 %v3871
    %v5016 = vpop.f32.mrb[0].mxu0
    %v5017 = vadd.f32 %v4824, %v5016
    %v5018 = vpop.f32.mrb[0].mxu0
    %v5019 = vadd.f32 %v4826, %v5018
    %v5020 = vpop.f32.mrb[0].mxu0
    %v5021 = vadd.f32 %v4828, %v5020
    %v5022 = vpop.f32.mrb[0].mxu0
    %v5023 = vadd.f32 %v4830, %v5022
    %5024 = vmatprep.mubr.bf16.mxu0 %v3876
    %5025 = vmatmul.mubr.bf16.gmra.mrb[0].mxu0 %v3875
    %v5026 = vpop.f32.mrb[0].mxu0
    %v5027 = vadd.f32 %v4834, %v5026
    %v5028 = vpop.f32.mrb[0].mxu0
    %v5029 = vadd.f32 %v4836, %v5028
    %v5030 = vpop.f32.mrb[0].mxu0
    %v5031 = vadd.f32 %v4838, %v5030
    %v5032 = vpop.f32.mrb[0].mxu0
    %v5033 = vadd.f32 %v4840, %v5032
    %5034 = vmatprep.mubr.bf16.mxu0 %v3880
    %5035 = vmatmul.mubr.bf16.gmra.mrb[0].mxu0 %v3879
    %v5036 = vpop.f32.mrb[0].mxu0
    %v5037 = vadd.f32 %v4844, %v5036
    %v5038 = vpop.f32.mrb[0].mxu0
    %v5039 = vadd.f32 %v4846, %v5038
    %v5040 = vpop.f32.mrb[0].mxu0
    %v5041 = vadd.f32 %v4848, %v5040
    %v5042 = vpop.f32.mrb[0].mxu0
    %v5043 = vadd.f32 %v4850, %v5042
    %5044 = vmatprep.mubr.bf16.mxu0 %v3884
    %5045 = vmatmul.mubr.bf16.gmra.mrb[0].mxu0 %v3883
    %v5046 = vpop.f32.mrb[0].mxu0
    %v5047 = vadd.f32 %v4854, %v5046
    %v5048 = vpop.f32.mrb[0].mxu0
    %v5049 = vadd.f32 %v4856, %v5048
    %v5050 = vpop.f32.mrb[0].mxu0
    %v5051 = vadd.f32 %v4858, %v5050
    %v5052 = vpop.f32.mrb[0].mxu0
    %v5053 = vadd.f32 %v4860, %v5052
    %5054 = vmatprep.mubr.bf16.mxu0 %v3888
    %5055 = vmatmul.mubr.bf16.gmra.mrb[0].mxu0 %v3887
    %v5056 = vpop.f32.mrb[0].mxu0
    %v5057 = vadd.f32 %v4864, %v5056
    %v5058 = vpop.f32.mrb[0].mxu0
    %v5059 = vadd.f32 %v4866, %v5058
    %v5060 = vpop.f32.mrb[0].mxu0
    %v5061 = vadd.f32 %v4868, %v5060
    %v5062 = vpop.f32.mrb[0].mxu0
    %v5063 = vadd.f32 %v4870, %v5062
    %5064 = vdwg.mxu0
    %5065 = vmatprep.subr.bf16.mxu0 %v4426
    %5066 = vmatpush1.bf16.msra.mxu0 %v4425
    %5067 = vmatprep.subr.bf16.mxu0 %v4430
    %5068 = vmatpush1.bf16.msra.mxu0 %v4429
    %5069 = vmatprep.subr.bf16.mxu0 %v4434
    %5070 = vmatpush1.bf16.msra.mxu0 %v4433
    %5071 = vmatprep.subr.bf16.mxu0 %v4438
    %5072 = vmatpush1.bf16.msra.mxu0 %v4437
    %5073 = vmatprep.subr.bf16.mxu0 %v4442
    %5074 = vmatpush1.bf16.msra.mxu0 %v4441
    %5075 = vmatprep.subr.bf16.mxu0 %v4446
    %5076 = vmatpush1.bf16.msra.mxu0 %v4445
    %5077 = vmatprep.subr.bf16.mxu0 %v4450
    %5078 = vmatpush1.bf16.msra.mxu0 %v4449
    %5079 = vmatprep.subr.bf16.mxu0 %v4454
    %5080 = vmatpush1.bf16.msra.mxu0 %v4453
    %5081 = vmatprep.subr.bf16.mxu0 %v4458
    %5082 = vmatpush1.bf16.msra.mxu0 %v4457
    %5083 = vmatprep.subr.bf16.mxu0 %v4462
    %5084 = vmatpush1.bf16.msra.mxu0 %v4461
    %5085 = vmatprep.subr.bf16.mxu0 %v4466
    %5086 = vmatpush1.bf16.msra.mxu0 %v4465
    %5087 = vmatprep.subr.bf16.mxu0 %v4470
    %5088 = vmatpush1.bf16.msra.mxu0 %v4469
    %5089 = vmatprep.subr.bf16.mxu0 %v4474
    %5090 = vmatpush1.bf16.msra.mxu0 %v4473
    %5091 = vmatprep.subr.bf16.mxu0 %v4478
    %5092 = vmatpush1.bf16.msra.mxu0 %v4477
    %5093 = vmatprep.subr.bf16.mxu0 %v4482
    %5094 = vmatpush1.bf16.msra.mxu0 %v4481
    %5095 = vmatprep.subr.bf16.mxu0 %v4486
    %5096 = vmatpush1.bf16.msra.mxu0 %v4485
    %5097 = vmatprep.mubr.bf16.mxu0 %v3826
    %5098 = vmatmul.mubr.bf16.gmra.mrb[0].mxu0 %v3825
    %v5099 = vpop.f32.mrb[0].mxu0
    %v5100 = vadd.f32 %v4030, %v5099
    %v5101 = vpop.f32.mrb[0].mxu0
    %v5102 = vadd.f32 %v4034, %v5101
    %v5103 = vpop.f32.mrb[0].mxu0
    %v5104 = vadd.f32 %v4030, %v5103
    %v5105 = vpop.f32.mrb[0].mxu0
    %v5106 = vadd.f32 %v4034, %v5105
    %5107 = vmatprep.mubr.bf16.mxu0 %v3830
    %5108 = vmatmul.mubr.bf16.gmra.mrb[0].mxu0 %v3829
    %v5109 = vpop.f32.mrb[0].mxu0
    %v5110 = vadd.f32 %v4030, %v5109
    %v5111 = vpop.f32.mrb[0].mxu0
    %v5112 = vadd.f32 %v4034, %v5111
    %v5113 = vpop.f32.mrb[0].mxu0
    %v5114 = vadd.f32 %v4030, %v5113
    %v5115 = vpop.f32.mrb[0].mxu0
    %v5116 = vadd.f32 %v4034, %v5115
    %5117 = vmatprep.mubr.bf16.mxu0 %v3834
    %5118 = vmatmul.mubr.bf16.gmra.mrb[0].mxu0 %v3833
    %v5119 = vpop.f32.mrb[0].mxu0
    %v5120 = vadd.f32 %v4030, %v5119
    %v5121 = vpop.f32.mrb[0].mxu0
    %v5122 = vadd.f32 %v4034, %v5121
    %v5123 = vpop.f32.mrb[0].mxu0
    %v5124 = vadd.f32 %v4030, %v5123
    %v5125 = vpop.f32.mrb[0].mxu0
    %v5126 = vadd.f32 %v4034, %v5125
    %5127 = vmatprep.mubr.bf16.mxu0 %v3838
    %5128 = vmatmul.mubr.bf16.gmra.mrb[0].mxu0 %v3837
    %v5129 = vpop.f32.mrb[0].mxu0
    %v5130 = vadd.f32 %v4030, %v5129
    %v5131 = vpop.f32.mrb[0].mxu0
    %v5132 = vadd.f32 %v4034, %v5131
    %v5133 = vpop.f32.mrb[0].mxu0
    %v5134 = vadd.f32 %v4030, %v5133
    %v5135 = vpop.f32.mrb[0].mxu0
    %v5136 = vadd.f32 %v4034, %v5135
    %5137 = vmatprep.mubr.bf16.mxu0 %v3842
    %5138 = vmatmul.mubr.bf16.gmra.mrb[0].mxu0 %v3841
    %v5139 = vpop.f32.mrb[0].mxu0
    %v5140 = vadd.f32 %v4030, %v5139
    %v5141 = vpop.f32.mrb[0].mxu0
    %v5142 = vadd.f32 %v4034, %v5141
    %v5143 = vpop.f32.mrb[0].mxu0
    %v5144 = vadd.f32 %v4030, %v5143
    %v5145 = vpop.f32.mrb[0].mxu0
    %v5146 = vadd.f32 %v4034, %v5145
    %5147 = vmatprep.mubr.bf16.mxu0 %v3846
    %5148 = vmatmul.mubr.bf16.gmra.mrb[0].mxu0 %v3845
    %v5149 = vpop.f32.mrb[0].mxu0
    %v5150 = vadd.f32 %v4030, %v5149
    %v5151 = vpop.f32.mrb[0].mxu0
    %v5152 = vadd.f32 %v4034, %v5151
    %v5153 = vpop.f32.mrb[0].mxu0
    %v5154 = vadd.f32 %v4030, %v5153
    %v5155 = vpop.f32.mrb[0].mxu0
    %v5156 = vadd.f32 %v4034, %v5155
    %5157 = vmatprep.mubr.bf16.mxu0 %v3850
    %5158 = vmatmul.mubr.bf16.gmra.mrb[0].mxu0 %v3849
    %v5159 = vpop.f32.mrb[0].mxu0
    %v5160 = vadd.f32 %v4030, %v5159
    %v5161 = vpop.f32.mrb[0].mxu0
    %v5162 = vadd.f32 %v4034, %v5161
    %v5163 = vpop.f32.mrb[0].mxu0
    %v5164 = vadd.f32 %v4030, %v5163
    %v5165 = vpop.f32.mrb[0].mxu0
    %v5166 = vadd.f32 %v4034, %v5165
    %5167 = vmatprep.mubr.bf16.mxu0 %v3854
    %5168 = vmatmul.mubr.bf16.gmra.mrb[0].mxu0 %v3853
    %v5169 = vpop.f32.mrb[0].mxu0
    %v5170 = vadd.f32 %v4030, %v5169
    %v5171 = vpop.f32.mrb[0].mxu0
    %v5172 = vadd.f32 %v4034, %v5171
    %v5173 = vpop.f32.mrb[0].mxu0
    %v5174 = vadd.f32 %v4030, %v5173
    %v5175 = vpop.f32.mrb[0].mxu0
    %v5176 = vadd.f32 %v4034, %v5175
    %5177 = vmatprep.mubr.bf16.mxu0 %v3858
    %5178 = vmatmul.mubr.bf16.gmra.mrb[0].mxu0 %v3857
    %v5179 = vpop.f32.mrb[0].mxu0
    %v5180 = vadd.f32 %v4030, %v5179
    %v5181 = vpop.f32.mrb[0].mxu0
    %v5182 = vadd.f32 %v4034, %v5181
    %v5183 = vpop.f32.mrb[0].mxu0
    %v5184 = vadd.f32 %v4030, %v5183
    %v5185 = vpop.f32.mrb[0].mxu0
    %v5186 = vadd.f32 %v4034, %v5185
    %5187 = vmatprep.mubr.bf16.mxu0 %v3862
    %5188 = vmatmul.mubr.bf16.gmra.mrb[0].mxu0 %v3861
    %v5189 = vpop.f32.mrb[0].mxu0
    %v5190 = vadd.f32 %v4030, %v5189
    %v5191 = vpop.f32.mrb[0].mxu0
    %v5192 = vadd.f32 %v4034, %v5191
    %v5193 = vpop.f32.mrb[0].mxu0
    %v5194 = vadd.f32 %v4030, %v5193
    %v5195 = vpop.f32.mrb[0].mxu0
    %v5196 = vadd.f32 %v4034, %v5195
    %5197 = vmatprep.mubr.bf16.mxu0 %v3866
    %5198 = vmatmul.mubr.bf16.gmra.mrb[0].mxu0 %v3865
    %v5199 = vpop.f32.mrb[0].mxu0
    %v5200 = vadd.f32 %v4030, %v5199
    %v5201 = vpop.f32.mrb[0].mxu0
    %v5202 = vadd.f32 %v4034, %v5201
    %v5203 = vpop.f32.mrb[0].mxu0
    %v5204 = vadd.f32 %v4030, %v5203
    %v5205 = vpop.f32.mrb[0].mxu0
    %v5206 = vadd.f32 %v4034, %v5205
    %5207 = vmatprep.mubr.bf16.mxu0 %v3870
    %5208 = vmatmul.mubr.bf16.gmra.mrb[0].mxu0 %v3869
    %v5209 = vpop.f32.mrb[0].mxu0
    %v5210 = vadd.f32 %v4030, %v5209
    %v5211 = vpop.f32.mrb[0].mxu0
    %v5212 = vadd.f32 %v4034, %v5211
    %v5213 = vpop.f32.mrb[0].mxu0
    %v5214 = vadd.f32 %v4030, %v5213
    %v5215 = vpop.f32.mrb[0].mxu0
    %v5216 = vadd.f32 %v4034, %v5215
    %5217 = vmatprep.mubr.bf16.mxu0 %v3874
    %5218 = vmatmul.mubr.bf16.gmra.mrb[0].mxu0 %v3873
    %v5219 = vpop.f32.mrb[0].mxu0
    %v5220 = vadd.f32 %v4030, %v5219
    %v5221 = vpop.f32.mrb[0].mxu0
    %v5222 = vadd.f32 %v4034, %v5221
    %v5223 = vpop.f32.mrb[0].mxu0
    %v5224 = vadd.f32 %v4030, %v5223
    %v5225 = vpop.f32.mrb[0].mxu0
    %v5226 = vadd.f32 %v4034, %v5225
    %5227 = vmatprep.mubr.bf16.mxu0 %v3878
    %5228 = vmatmul.mubr.bf16.gmra.mrb[0].mxu0 %v3877
    %v5229 = vpop.f32.mrb[0].mxu0
    %v5230 = vadd.f32 %v4030, %v5229
    %v5231 = vpop.f32.mrb[0].mxu0
    %v5232 = vadd.f32 %v4034, %v5231
    %v5233 = vpop.f32.mrb[0].mxu0
    %v5234 = vadd.f32 %v4030, %v5233
    %v5235 = vpop.f32.mrb[0].mxu0
    %v5236 = vadd.f32 %v4034, %v5235
    %5237 = vmatprep.mubr.bf16.mxu0 %v3882
    %5238 = vmatmul.mubr.bf16.gmra.mrb[0].mxu0 %v3881
    %v5239 = vpop.f32.mrb[0].mxu0
    %v5240 = vadd.f32 %v4030, %v5239
    %v5241 = vpop.f32.mrb[0].mxu0
    %v5242 = vadd.f32 %v4034, %v5241
    %v5243 = vpop.f32.mrb[0].mxu0
    %v5244 = vadd.f32 %v4030, %v5243
    %v5245 = vpop.f32.mrb[0].mxu0
    %v5246 = vadd.f32 %v4034, %v5245
    %5247 = vmatprep.mubr.bf16.mxu0 %v3886
    %5248 = vmatmul.mubr.bf16.gmra.mrb[0].mxu0 %v3885
    %v5249 = vpop.f32.mrb[0].mxu0
    %v5250 = vadd.f32 %v4030, %v5249
    %v5251 = vpop.f32.mrb[0].mxu0
    %v5252 = vadd.f32 %v4034, %v5251
    %v5253 = vpop.f32.mrb[0].mxu0
    %v5254 = vadd.f32 %v4030, %v5253
    %v5255 = vpop.f32.mrb[0].mxu0
    %v5256 = vadd.f32 %v4034, %v5255
    %5257 = vdwg.mxu0
    %5258 = vmatprep.subr.bf16.mxu0 %v4490
    %5259 = vmatpush1.bf16.msra.mxu0 %v4489
    %5260 = vmatprep.subr.bf16.mxu0 %v4494
    %5261 = vmatpush1.bf16.msra.mxu0 %v4493
    %5262 = vmatprep.subr.bf16.mxu0 %v4498
    %5263 = vmatpush1.bf16.msra.mxu0 %v4497
    %5264 = vmatprep.subr.bf16.mxu0 %v4502
    %5265 = vmatpush1.bf16.msra.mxu0 %v4501
    %5266 = vmatprep.subr.bf16.mxu0 %v4506
    %5267 = vmatpush1.bf16.msra.mxu0 %v4505
    %5268 = vmatprep.subr.bf16.mxu0 %v4510
    %5269 = vmatpush1.bf16.msra.mxu0 %v4509
    %5270 = vmatprep.subr.bf16.mxu0 %v4514
    %5271 = vmatpush1.bf16.msra.mxu0 %v4513
    %5272 = vmatprep.subr.bf16.mxu0 %v4518
    %5273 = vmatpush1.bf16.msra.mxu0 %v4517
    %5274 = vmatprep.subr.bf16.mxu0 %v4522
    %5275 = vmatpush1.bf16.msra.mxu0 %v4521
    %5276 = vmatprep.subr.bf16.mxu0 %v4526
    %5277 = vmatpush1.bf16.msra.mxu0 %v4525
    %5278 = vmatprep.subr.bf16.mxu0 %v4530
    %5279 = vmatpush1.bf16.msra.mxu0 %v4529
    %5280 = vmatprep.subr.bf16.mxu0 %v4534
    %5281 = vmatpush1.bf16.msra.mxu0 %v4533
    %5282 = vmatprep.subr.bf16.mxu0 %v4538
    %5283 = vmatpush1.bf16.msra.mxu0 %v4537
    %5284 = vmatprep.subr.bf16.mxu0 %v4542
    %5285 = vmatpush1.bf16.msra.mxu0 %v4541
    %5286 = vmatprep.subr.bf16.mxu0 %v4546
    %5287 = vmatpush1.bf16.msra.mxu0 %v4545
    %5288 = vmatprep.subr.bf16.mxu0 %v4550
    %5289 = vmatpush1.bf16.msra.mxu0 %v4549
    %5290 = vmatprep.mubr.bf16.mxu0 %v3828
    %5291 = vmatmul.mubr.bf16.gmra.mrb[0].mxu0 %v3827
    %v5292 = vpop.f32.mrb[0].mxu0
    %v5293 = vadd.f32 %v5100, %v5292
    %v5294 = vpop.f32.mrb[0].mxu0
    %v5295 = vadd.f32 %v5102, %v5294
    %v5296 = vpop.f32.mrb[0].mxu0
    %v5297 = vadd.f32 %v5104, %v5296
    %v5298 = vpop.f32.mrb[0].mxu0
    %v5299 = vadd.f32 %v5106, %v5298
    %5300 = vmatprep.mubr.bf16.mxu0 %v3832
    %5301 = vmatmul.mubr.bf16.gmra.mrb[0].mxu0 %v3831
    %v5302 = vpop.f32.mrb[0].mxu0
    %v5303 = vadd.f32 %v5110, %v5302
    %v5304 = vpop.f32.mrb[0].mxu0
    %v5305 = vadd.f32 %v5112, %v5304
    %v5306 = vpop.f32.mrb[0].mxu0
    %v5307 = vadd.f32 %v5114, %v5306
    %v5308 = vpop.f32.mrb[0].mxu0
    %v5309 = vadd.f32 %v5116, %v5308
    %5310 = vmatprep.mubr.bf16.mxu0 %v3836
    %5311 = vmatmul.mubr.bf16.gmra.mrb[0].mxu0 %v3835
    %v5312 = vpop.f32.mrb[0].mxu0
    %v5313 = vadd.f32 %v5120, %v5312
    %v5314 = vpop.f32.mrb[0].mxu0
    %v5315 = vadd.f32 %v5122, %v5314
    %v5316 = vpop.f32.mrb[0].mxu0
    %v5317 = vadd.f32 %v5124, %v5316
    %v5318 = vpop.f32.mrb[0].mxu0
    %v5319 = vadd.f32 %v5126, %v5318
    %5320 = vmatprep.mubr.bf16.mxu0 %v3840
    %5321 = vmatmul.mubr.bf16.gmra.mrb[0].mxu0 %v3839
    %v5322 = vpop.f32.mrb[0].mxu0
    %v5323 = vadd.f32 %v5130, %v5322
    %v5324 = vpop.f32.mrb[0].mxu0
    %v5325 = vadd.f32 %v5132, %v5324
    %v5326 = vpop.f32.mrb[0].mxu0
    %v5327 = vadd.f32 %v5134, %v5326
    %v5328 = vpop.f32.mrb[0].mxu0
    %v5329 = vadd.f32 %v5136, %v5328
    %5330 = vmatprep.mubr.bf16.mxu0 %v3844
    %5331 = vmatmul.mubr.bf16.gmra.mrb[0].mxu0 %v3843
    %v5332 = vpop.f32.mrb[0].mxu0
    %v5333 = vadd.f32 %v5140, %v5332
    %v5334 = vpop.f32.mrb[0].mxu0
    %v5335 = vadd.f32 %v5142, %v5334
    %v5336 = vpop.f32.mrb[0].mxu0
    %v5337 = vadd.f32 %v5144, %v5336
    %v5338 = vpop.f32.mrb[0].mxu0
    %v5339 = vadd.f32 %v5146, %v5338
    %5340 = vmatprep.mubr.bf16.mxu0 %v3848
    %5341 = vmatmul.mubr.bf16.gmra.mrb[0].mxu0 %v3847
    %v5342 = vpop.f32.mrb[0].mxu0
    %v5343 = vadd.f32 %v5150, %v5342
    %v5344 = vpop.f32.mrb[0].mxu0
    %v5345 = vadd.f32 %v5152, %v5344
    %v5346 = vpop.f32.mrb[0].mxu0
    %v5347 = vadd.f32 %v5154, %v5346
    %v5348 = vpop.f32.mrb[0].mxu0
    %v5349 = vadd.f32 %v5156, %v5348
    %5350 = vmatprep.mubr.bf16.mxu0 %v3852
    %5351 = vmatmul.mubr.bf16.gmra.mrb[0].mxu0 %v3851
    %v5352 = vpop.f32.mrb[0].mxu0
    %v5353 = vadd.f32 %v5160, %v5352
    %v5354 = vpop.f32.mrb[0].mxu0
    %v5355 = vadd.f32 %v5162, %v5354
    %v5356 = vpop.f32.mrb[0].mxu0
    %v5357 = vadd.f32 %v5164, %v5356
    %v5358 = vpop.f32.mrb[0].mxu0
    %v5359 = vadd.f32 %v5166, %v5358
    %5360 = vmatprep.mubr.bf16.mxu0 %v3856
    %5361 = vmatmul.mubr.bf16.gmra.mrb[0].mxu0 %v3855
    %v5362 = vpop.f32.mrb[0].mxu0
    %v5363 = vadd.f32 %v5170, %v5362
    %v5364 = vpop.f32.mrb[0].mxu0
    %v5365 = vadd.f32 %v5172, %v5364
    %v5366 = vpop.f32.mrb[0].mxu0
    %v5367 = vadd.f32 %v5174, %v5366
    %v5368 = vpop.f32.mrb[0].mxu0
    %v5369 = vadd.f32 %v5176, %v5368
    %5370 = vmatprep.mubr.bf16.mxu0 %v3860
    %5371 = vmatmul.mubr.bf16.gmra.mrb[0].mxu0 %v3859
    %v5372 = vpop.f32.mrb[0].mxu0
    %v5373 = vadd.f32 %v5180, %v5372
    %v5374 = vpop.f32.mrb[0].mxu0
    %v5375 = vadd.f32 %v5182, %v5374
    %v5376 = vpop.f32.mrb[0].mxu0
    %v5377 = vadd.f32 %v5184, %v5376
    %v5378 = vpop.f32.mrb[0].mxu0
    %v5379 = vadd.f32 %v5186, %v5378
    %5380 = vmatprep.mubr.bf16.mxu0 %v3864
    %5381 = vmatmul.mubr.bf16.gmra.mrb[0].mxu0 %v3863
    %v5382 = vpop.f32.mrb[0].mxu0
    %v5383 = vadd.f32 %v5190, %v5382
    %v5384 = vpop.f32.mrb[0].mxu0
    %v5385 = vadd.f32 %v5192, %v5384
    %v5386 = vpop.f32.mrb[0].mxu0
    %v5387 = vadd.f32 %v5194, %v5386
    %v5388 = vpop.f32.mrb[0].mxu0
    %v5389 = vadd.f32 %v5196, %v5388
    %5390 = vmatprep.mubr.bf16.mxu0 %v3868
    %5391 = vmatmul.mubr.bf16.gmra.mrb[0].mxu0 %v3867
    %v5392 = vpop.f32.mrb[0].mxu0
    %v5393 = vadd.f32 %v5200, %v5392
    %v5394 = vpop.f32.mrb[0].mxu0
    %v5395 = vadd.f32 %v5202, %v5394
    %v5396 = vpop.f32.mrb[0].mxu0
    %v5397 = vadd.f32 %v5204, %v5396
    %v5398 = vpop.f32.mrb[0].mxu0
    %v5399 = vadd.f32 %v5206, %v5398
    %5400 = vmatprep.mubr.bf16.mxu0 %v3872
    %5401 = vmatmul.mubr.bf16.gmra.mrb[0].mxu0 %v3871
    %v5402 = vpop.f32.mrb[0].mxu0
    %v5403 = vadd.f32 %v5210, %v5402
    %v5404 = vpop.f32.mrb[0].mxu0
    %v5405 = vadd.f32 %v5212, %v5404
    %v5406 = vpop.f32.mrb[0].mxu0
    %v5407 = vadd.f32 %v5214, %v5406
    %v5408 = vpop.f32.mrb[0].mxu0
    %v5409 = vadd.f32 %v5216, %v5408
    %5410 = vmatprep.mubr.bf16.mxu0 %v3876
    %5411 = vmatmul.mubr.bf16.gmra.mrb[0].mxu0 %v3875
    %v5412 = vpop.f32.mrb[0].mxu0
    %v5413 = vadd.f32 %v5220, %v5412
    %v5414 = vpop.f32.mrb[0].mxu0
    %v5415 = vadd.f32 %v5222, %v5414
    %v5416 = vpop.f32.mrb[0].mxu0
    %v5417 = vadd.f32 %v5224, %v5416
    %v5418 = vpop.f32.mrb[0].mxu0
    %v5419 = vadd.f32 %v5226, %v5418
    %5420 = vmatprep.mubr.bf16.mxu0 %v3880
    %5421 = vmatmul.mubr.bf16.gmra.mrb[0].mxu0 %v3879
    %v5422 = vpop.f32.mrb[0].mxu0
    %v5423 = vadd.f32 %v5230, %v5422
    %v5424 = vpop.f32.mrb[0].mxu0
    %v5425 = vadd.f32 %v5232, %v5424
    %v5426 = vpop.f32.mrb[0].mxu0
    %v5427 = vadd.f32 %v5234, %v5426
    %v5428 = vpop.f32.mrb[0].mxu0
    %v5429 = vadd.f32 %v5236, %v5428
    %5430 = vmatprep.mubr.bf16.mxu0 %v3884
    %5431 = vmatmul.mubr.bf16.gmra.mrb[0].mxu0 %v3883
    %v5432 = vpop.f32.mrb[0].mxu0
    %v5433 = vadd.f32 %v5240, %v5432
    %v5434 = vpop.f32.mrb[0].mxu0
    %v5435 = vadd.f32 %v5242, %v5434
    %v5436 = vpop.f32.mrb[0].mxu0
    %v5437 = vadd.f32 %v5244, %v5436
    %v5438 = vpop.f32.mrb[0].mxu0
    %v5439 = vadd.f32 %v5246, %v5438
    %5440 = vmatprep.mubr.bf16.mxu0 %v3888
    %5441 = vmatmul.mubr.bf16.gmra.mrb[0].mxu0 %v3887
    %v5442 = vpop.f32.mrb[0].mxu0
    %v5443 = vadd.f32 %v5250, %v5442
    %v5444 = vpop.f32.mrb[0].mxu0
    %v5445 = vadd.f32 %v5252, %v5444
    %v5446 = vpop.f32.mrb[0].mxu0
    %v5447 = vadd.f32 %v5254, %v5446
    %v5448 = vpop.f32.mrb[0].mxu0
    %v5449 = vadd.f32 %v5256, %v5448
    %5450 = vdwg.mxu0
    %v5451 = vmax.f32 %v4907, 0.0
    %v5452 = vmax.f32 %v4909, 0.0
    %v5453 = vmax.f32 %v5293, 0.0
    %v5454 = vmax.f32 %v5295, 0.0
    %v5455 = vmax.f32 %v4911, 0.0
    %v5456 = vmax.f32 %v4913, 0.0
    %v5457 = vmax.f32 %v5297, 0.0
    %v5458 = vmax.f32 %v5299, 0.0
    %v5459 = vmax.f32 %v4917, 0.0
    %v5460 = vmax.f32 %v4919, 0.0
    %v5461 = vmax.f32 %v5303, 0.0
    %v5462 = vmax.f32 %v5305, 0.0
    %v5463 = vmax.f32 %v4921, 0.0
    %v5464 = vmax.f32 %v4923, 0.0
    %v5465 = vmax.f32 %v5307, 0.0
    %v5466 = vmax.f32 %v5309, 0.0
    %v5467 = vmax.f32 %v4927, 0.0
    %v5468 = vmax.f32 %v4929, 0.0
    %v5469 = vmax.f32 %v5313, 0.0
    %v5470 = vmax.f32 %v5315, 0.0
    %v5471 = vmax.f32 %v4931, 0.0
    %v5472 = vmax.f32 %v4933, 0.0
    %v5473 = vmax.f32 %v5317, 0.0
    %v5474 = vmax.f32 %v5319, 0.0
    %v5475 = vmax.f32 %v4937, 0.0
    %v5476 = vmax.f32 %v4939, 0.0
    %v5477 = vmax.f32 %v5323, 0.0
    %v5478 = vmax.f32 %v5325, 0.0
    %v5479 = vmax.f32 %v4941, 0.0
    %v5480 = vmax.f32 %v4943, 0.0
    %v5481 = vmax.f32 %v5327, 0.0
    %v5482 = vmax.f32 %v5329, 0.0
    %v5483 = vmax.f32 %v4947, 0.0
    %v5484 = vmax.f32 %v4949, 0.0
    %v5485 = vmax.f32 %v5333, 0.0
    %v5486 = vmax.f32 %v5335, 0.0
    %v5487 = vmax.f32 %v4951, 0.0
    %v5488 = vmax.f32 %v4953, 0.0
    %v5489 = vmax.f32 %v5337, 0.0
    %v5490 = vmax.f32 %v5339, 0.0
    %v5491 = vmax.f32 %v4957, 0.0
    %v5492 = vmax.f32 %v4959, 0.0
    %v5493 = vmax.f32 %v5343, 0.0
    %v5494 = vmax.f32 %v5345, 0.0
    %v5495 = vmax.f32 %v4961, 0.0
    %v5496 = vmax.f32 %v4963, 0.0
    %v5497 = vmax.f32 %v5347, 0.0
    %v5498 = vmax.f32 %v5349, 0.0
    %v5499 = vmax.f32 %v4967, 0.0
    %v5500 = vmax.f32 %v4969, 0.0
    %v5501 = vmax.f32 %v5353, 0.0
    %v5502 = vmax.f32 %v5355, 0.0
    %v5503 = vmax.f32 %v4971, 0.0
    %v5504 = vmax.f32 %v4973, 0.0
    %v5505 = vmax.f32 %v5357, 0.0
    %v5506 = vmax.f32 %v5359, 0.0
    %v5507 = vmax.f32 %v4977, 0.0
    %v5508 = vmax.f32 %v4979, 0.0
    %v5509 = vmax.f32 %v5363, 0.0
    %v5510 = vmax.f32 %v5365, 0.0
    %v5511 = vmax.f32 %v4981, 0.0
    %v5512 = vmax.f32 %v4983, 0.0
    %v5513 = vmax.f32 %v5367, 0.0
    %v5514 = vmax.f32 %v5369, 0.0
    %v5515 = vmax.f32 %v4987, 0.0
    %v5516 = vmax.f32 %v4989, 0.0
    %v5517 = vmax.f32 %v5373, 0.0
    %v5518 = vmax.f32 %v5375, 0.0
    %v5519 = vmax.f32 %v4991, 0.0
    %v5520 = vmax.f32 %v4993, 0.0
    %v5521 = vmax.f32 %v5377, 0.0
    %v5522 = vmax.f32 %v5379, 0.0
    %v5523 = vmax.f32 %v4997, 0.0
    %v5524 = vmax.f32 %v4999, 0.0
    %v5525 = vmax.f32 %v5383, 0.0
    %v5526 = vmax.f32 %v5385, 0.0
    %v5527 = vmax.f32 %v5001, 0.0
    %v5528 = vmax.f32 %v5003, 0.0
    %v5529 = vmax.f32 %v5387, 0.0
    %v5530 = vmax.f32 %v5389, 0.0
    %v5531 = vmax.f32 %v5007, 0.0
    %v5532 = vmax.f32 %v5009, 0.0
    %v5533 = vmax.f32 %v5393, 0.0
    %v5534 = vmax.f32 %v5395, 0.0
    %v5535 = vmax.f32 %v5011, 0.0
    %v5536 = vmax.f32 %v5013, 0.0
    %v5537 = vmax.f32 %v5397, 0.0
    %v5538 = vmax.f32 %v5399, 0.0
    %v5539 = vmax.f32 %v5017, 0.0
    %v5540 = vmax.f32 %v5019, 0.0
    %v5541 = vmax.f32 %v5403, 0.0
    %v5542 = vmax.f32 %v5405, 0.0
    %v5543 = vmax.f32 %v5021, 0.0
    %v5544 = vmax.f32 %v5023, 0.0
    %v5545 = vmax.f32 %v5407, 0.0
    %v5546 = vmax.f32 %v5409, 0.0
    %v5547 = vmax.f32 %v5027, 0.0
    %v5548 = vmax.f32 %v5029, 0.0
    %v5549 = vmax.f32 %v5413, 0.0
    %v5550 = vmax.f32 %v5415, 0.0
    %v5551 = vmax.f32 %v5031, 0.0
    %v5552 = vmax.f32 %v5033, 0.0
    %v5553 = vmax.f32 %v5417, 0.0
    %v5554 = vmax.f32 %v5419, 0.0
    %v5555 = vmax.f32 %v5037, 0.0
    %v5556 = vmax.f32 %v5039, 0.0
    %v5557 = vmax.f32 %v5423, 0.0
    %v5558 = vmax.f32 %v5425, 0.0
    %v5559 = vmax.f32 %v5041, 0.0
    %v5560 = vmax.f32 %v5043, 0.0
    %v5561 = vmax.f32 %v5427, 0.0
    %v5562 = vmax.f32 %v5429, 0.0
    %v5563 = vmax.f32 %v5047, 0.0
    %v5564 = vmax.f32 %v5049, 0.0
    %v5565 = vmax.f32 %v5433, 0.0
    %v5566 = vmax.f32 %v5435, 0.0
    %v5567 = vmax.f32 %v5051, 0.0
    %v5568 = vmax.f32 %v5053, 0.0
    %v5569 = vmax.f32 %v5437, 0.0
    %v5570 = vmax.f32 %v5439, 0.0
    %v5571 = vmax.f32 %v5057, 0.0
    %v5572 = vmax.f32 %v5059, 0.0
    %v5573 = vmax.f32 %v5443, 0.0
    %v5574 = vmax.f32 %v5445, 0.0
    %v5575 = vmax.f32 %v5061, 0.0
    %v5576 = vmax.f32 %v5063, 0.0
    %v5577 = vmax.f32 %v5447, 0.0
    %v5578 = vmax.f32 %v5449, 0.0
    %v5579 = vpack.c.bf16 %v5455, %v5451
    %v5580 = vpack.c.bf16 %v5456, %v5452
    %v5581 = vpack.c.bf16 %v5457, %v5453
    %v5582 = vpack.c.bf16 %v5458, %v5454
    %v5583 = vpack.c.bf16 %v5463, %v5459
    %v5584 = vpack.c.bf16 %v5464, %v5460
    %v5585 = vpack.c.bf16 %v5465, %v5461
    %v5586 = vpack.c.bf16 %v5466, %v5462
    %v5587 = vpack.c.bf16 %v5471, %v5467
    %v5588 = vpack.c.bf16 %v5472, %v5468
    %v5589 = vpack.c.bf16 %v5473, %v5469
    %v5590 = vpack.c.bf16 %v5474, %v5470
    %v5591 = vpack.c.bf16 %v5479, %v5475
    %v5592 = vpack.c.bf16 %v5480, %v5476
    %v5593 = vpack.c.bf16 %v5481, %v5477
    %v5594 = vpack.c.bf16 %v5482, %v5478
    %v5595 = vpack.c.bf16 %v5487, %v5483
    %v5596 = vpack.c.bf16 %v5488, %v5484
    %v5597 = vpack.c.bf16 %v5489, %v5485
    %v5598 = vpack.c.bf16 %v5490, %v5486
    %v5599 = vpack.c.bf16 %v5495, %v5491
    %v5600 = vpack.c.bf16 %v5496, %v5492
    %v5601 = vpack.c.bf16 %v5497, %v5493
    %v5602 = vpack.c.bf16 %v5498, %v5494
    %v5603 = vpack.c.bf16 %v5503, %v5499
    %v5604 = vpack.c.bf16 %v5504, %v5500
    %v5605 = vpack.c.bf16 %v5505, %v5501
    %v5606 = vpack.c.bf16 %v5506, %v5502
    %v5607 = vpack.c.bf16 %v5511, %v5507
    %v5608 = vpack.c.bf16 %v5512, %v5508
    %v5609 = vpack.c.bf16 %v5513, %v5509
    %v5610 = vpack.c.bf16 %v5514, %v5510
    %v5611 = vpack.c.bf16 %v5519, %v5515
    %v5612 = vpack.c.bf16 %v5520, %v5516
    %v5613 = vpack.c.bf16 %v5521, %v5517
    %v5614 = vpack.c.bf16 %v5522, %v5518
    %v5615 = vpack.c.bf16 %v5527, %v5523
    %v5616 = vpack.c.bf16 %v5528, %v5524
    %v5617 = vpack.c.bf16 %v5529, %v5525
    %v5618 = vpack.c.bf16 %v5530, %v5526
    %v5619 = vpack.c.bf16 %v5535, %v5531
    %v5620 = vpack.c.bf16 %v5536, %v5532
    %v5621 = vpack.c.bf16 %v5537, %v5533
    %v5622 = vpack.c.bf16 %v5538, %v5534
    %v5623 = vpack.c.bf16 %v5543, %v5539
    %v5624 = vpack.c.bf16 %v5544, %v5540
    %v5625 = vpack.c.bf16 %v5545, %v5541
    %v5626 = vpack.c.bf16 %v5546, %v5542
    %v5627 = vpack.c.bf16 %v5551, %v5547
    %v5628 = vpack.c.bf16 %v5552, %v5548
    %v5629 = vpack.c.bf16 %v5553, %v5549
    %v5630 = vpack.c.bf16 %v5554, %v5550
    %v5631 = vpack.c.bf16 %v5559, %v5555
    %v5632 = vpack.c.bf16 %v5560, %v5556
    %v5633 = vpack.c.bf16 %v5561, %v5557
    %v5634 = vpack.c.bf16 %v5562, %v5558
    %v5635 = vpack.c.bf16 %v5567, %v5563
    %v5636 = vpack.c.bf16 %v5568, %v5564
    %v5637 = vpack.c.bf16 %v5569, %v5565
    %v5638 = vpack.c.bf16 %v5570, %v5566
    %v5639 = vpack.c.bf16 %v5575, %v5571
    %v5640 = vpack.c.bf16 %v5576, %v5572
    %v5641 = vpack.c.bf16 %v5577, %v5573
    %v5642 = vpack.c.bf16 %v5578, %v5574
    %v5643 = vld [vmem:[#allocation8] sm:$0xf]
    %v5644 = vld [vmem:[#allocation8 + $0x4] sm:$0xf]
    %v5645 = vld [vmem:[#allocation8 + $0x8] sm:$0xf]
    %v5646 = vld [vmem:[#allocation8 + $0xc] sm:$0xf]
    %v5647 = vld [vmem:[#allocation8 + $0x10] sm:$0xf]
    %v5648 = vld [vmem:[#allocation8 + $0x14] sm:$0xf]
    %v5649 = vld [vmem:[#allocation8 + $0x18] sm:$0xf]
    %v5650 = vld [vmem:[#allocation8 + $0x1c] sm:$0xf]
    %v5651 = vld [vmem:[#allocation8 + $0x20] sm:$0xf]
    %v5652 = vld [vmem:[#allocation8 + $0x24] sm:$0xf]
    %v5653 = vld [vmem:[#allocation8 + $0x28] sm:$0xf]
    %v5654 = vld [vmem:[#allocation8 + $0x2c] sm:$0xf]
    %v5655 = vld [vmem:[#allocation8 + $0x30] sm:$0xf]
    %v5656 = vld [vmem:[#allocation8 + $0x34] sm:$0xf]
    %v5657 = vld [vmem:[#allocation8 + $0x38] sm:$0xf]
    %v5658 = vld [vmem:[#allocation8 + $0x3c] sm:$0xf]
    %v5659 = vld [vmem:[#allocation8 + $0x40] sm:$0xf]
    %v5660 = vld [vmem:[#allocation8 + $0x44] sm:$0xf]
    %v5661 = vld [vmem:[#allocation8 + $0x48] sm:$0xf]
    %v5662 = vld [vmem:[#allocation8 + $0x4c] sm:$0xf]
    %v5663 = vld [vmem:[#allocation8 + $0x50] sm:$0xf]
    %v5664 = vld [vmem:[#allocation8 + $0x54] sm:$0xf]
    %v5665 = vld [vmem:[#allocation8 + $0x58] sm:$0xf]
    %v5666 = vld [vmem:[#allocation8 + $0x5c] sm:$0xf]
    %v5667 = vld [vmem:[#allocation8 + $0x60] sm:$0xf]
    %v5668 = vld [vmem:[#allocation8 + $0x64] sm:$0xf]
    %v5669 = vld [vmem:[#allocation8 + $0x68] sm:$0xf]
    %v5670 = vld [vmem:[#allocation8 + $0x6c] sm:$0xf]
    %v5671 = vld [vmem:[#allocation8 + $0x70] sm:$0xf]
    %v5672 = vld [vmem:[#allocation8 + $0x74] sm:$0xf]
    %v5673 = vld [vmem:[#allocation8 + $0x78] sm:$0xf]
    %v5674 = vld [vmem:[#allocation8 + $0x7c] sm:$0xf]
    %v5675 = vld [vmem:[#allocation8 + $0x80] sm:$0xf]
    %v5676 = vld [vmem:[#allocation8 + $0x84] sm:$0xf]
    %v5677 = vld [vmem:[#allocation8 + $0x88] sm:$0xf]
    %v5678 = vld [vmem:[#allocation8 + $0x8c] sm:$0xf]
    %v5679 = vld [vmem:[#allocation8 + $0x90] sm:$0xf]
    %v5680 = vld [vmem:[#allocation8 + $0x94] sm:$0xf]
    %v5681 = vld [vmem:[#allocation8 + $0x98] sm:$0xf]
    %v5682 = vld [vmem:[#allocation8 + $0x9c] sm:$0xf]
    %v5683 = vld [vmem:[#allocation8 + $0xa0] sm:$0xf]
    %v5684 = vld [vmem:[#allocation8 + $0xa4] sm:$0xf]
    %v5685 = vld [vmem:[#allocation8 + $0xa8] sm:$0xf]
    %v5686 = vld [vmem:[#allocation8 + $0xac] sm:$0xf]
    %v5687 = vld [vmem:[#allocation8 + $0xb0] sm:$0xf]
    %v5688 = vld [vmem:[#allocation8 + $0xb4] sm:$0xf]
    %v5689 = vld [vmem:[#allocation8 + $0xb8] sm:$0xf]
    %v5690 = vld [vmem:[#allocation8 + $0xbc] sm:$0xf]
    %v5691 = vld [vmem:[#allocation8 + $0xc0] sm:$0xf]
    %v5692 = vld [vmem:[#allocation8 + $0xc4] sm:$0xf]
    %v5693 = vld [vmem:[#allocation8 + $0xc8] sm:$0xf]
    %v5694 = vld [vmem:[#allocation8 + $0xcc] sm:$0xf]
    %v5695 = vld [vmem:[#allocation8 + $0xd0] sm:$0xf]
    %v5696 = vld [vmem:[#allocation8 + $0xd4] sm:$0xf]
    %v5697 = vld [vmem:[#allocation8 + $0xd8] sm:$0xf]
    %v5698 = vld [vmem:[#allocation8 + $0xdc] sm:$0xf]
    %v5699 = vld [vmem:[#allocation8 + $0xe0] sm:$0xf]
    %v5700 = vld [vmem:[#allocation8 + $0xe4] sm:$0xf]
    %v5701 = vld [vmem:[#allocation8 + $0xe8] sm:$0xf]
    %v5702 = vld [vmem:[#allocation8 + $0xec] sm:$0xf]
    %v5703 = vld [vmem:[#allocation8 + $0xf0] sm:$0xf]
    %v5704 = vld [vmem:[#allocation8 + $0xf4] sm:$0xf]
    %v5705 = vld [vmem:[#allocation8 + $0xf8] sm:$0xf]
    %v5706 = vld [vmem:[#allocation8 + $0xfc] sm:$0xf]
    %v5707 = vld [vmem:[%s6] sm:$0x1]
    %v5709 = vlaneseq
    %v5710 = vshrl.u32 %v5709, 7
    %v5711 = vsub.s32 0, %v5710
    %v5712 = vrot.slane %v5707, %v5711
    %v5778 = vunpack.c.l.b16 %v5643
    %v5779 = vunpack.c.l.b16 %v5644
    %v5780 = vunpack.c.l.b16 %v5645
    %v5781 = vunpack.c.l.b16 %v5646
    %v5782 = vunpack.c.l.b16 %v5647
    %v5783 = vunpack.c.l.b16 %v5648
    %v5784 = vunpack.c.l.b16 %v5649
    %v5785 = vunpack.c.l.b16 %v5650
    %v5786 = vunpack.c.l.b16 %v5651
    %v5787 = vunpack.c.l.b16 %v5652
    %v5788 = vunpack.c.l.b16 %v5653
    %v5789 = vunpack.c.l.b16 %v5654
    %v5790 = vunpack.c.l.b16 %v5655
    %v5791 = vunpack.c.l.b16 %v5656
    %v5792 = vunpack.c.l.b16 %v5657
    %v5793 = vunpack.c.l.b16 %v5658
    %v5794 = vunpack.c.l.b16 %v5659
    %v5795 = vunpack.c.l.b16 %v5660
    %v5796 = vunpack.c.l.b16 %v5661
    %v5797 = vunpack.c.l.b16 %v5662
    %v5798 = vunpack.c.l.b16 %v5663
    %v5799 = vunpack.c.l.b16 %v5664
    %v5800 = vunpack.c.l.b16 %v5665
    %v5801 = vunpack.c.l.b16 %v5666
    %v5802 = vunpack.c.l.b16 %v5667
    %v5803 = vunpack.c.l.b16 %v5668
    %v5804 = vunpack.c.l.b16 %v5669
    %v5805 = vunpack.c.l.b16 %v5670
    %v5806 = vunpack.c.l.b16 %v5671
    %v5807 = vunpack.c.l.b16 %v5672
    %v5808 = vunpack.c.l.b16 %v5673
    %v5809 = vunpack.c.l.b16 %v5674
    %v5810 = vunpack.c.l.b16 %v5675
    %v5811 = vunpack.c.l.b16 %v5676
    %v5812 = vunpack.c.l.b16 %v5677
    %v5813 = vunpack.c.l.b16 %v5678
    %v5814 = vunpack.c.l.b16 %v5679
    %v5815 = vunpack.c.l.b16 %v5680
    %v5816 = vunpack.c.l.b16 %v5681
    %v5817 = vunpack.c.l.b16 %v5682
    %v5818 = vunpack.c.l.b16 %v5683
    %v5819 = vunpack.c.l.b16 %v5684
    %v5820 = vunpack.c.l.b16 %v5685
    %v5821 = vunpack.c.l.b16 %v5686
    %v5822 = vunpack.c.l.b16 %v5687
    %v5823 = vunpack.c.l.b16 %v5688
    %v5824 = vunpack.c.l.b16 %v5689
    %v5825 = vunpack.c.l.b16 %v5690
    %v5826 = vunpack.c.l.b16 %v5691
    %v5827 = vunpack.c.l.b16 %v5692
    %v5828 = vunpack.c.l.b16 %v5693
    %v5829 = vunpack.c.l.b16 %v5694
    %v5830 = vunpack.c.l.b16 %v5695
    %v5831 = vunpack.c.l.b16 %v5696
    %v5832 = vunpack.c.l.b16 %v5697
    %v5833 = vunpack.c.l.b16 %v5698
    %v5834 = vunpack.c.l.b16 %v5699
    %v5835 = vunpack.c.l.b16 %v5700
    %v5836 = vunpack.c.l.b16 %v5701
    %v5837 = vunpack.c.l.b16 %v5702
    %v5838 = vunpack.c.l.b16 %v5703
    %v5839 = vunpack.c.l.b16 %v5704
    %v5840 = vunpack.c.l.b16 %v5705
    %v5841 = vunpack.c.l.b16 %v5706
    %v5842 = vpack.c.b16 %v5779, %v5778
    %v5843 = vpack.c.b16 %v5781, %v5780
    %v5844 = vpack.c.b16 %v5783, %v5782
    %v5845 = vpack.c.b16 %v5785, %v5784
    %v5846 = vpack.c.b16 %v5787, %v5786
    %v5847 = vpack.c.b16 %v5789, %v5788
    %v5848 = vpack.c.b16 %v5791, %v5790
    %v5849 = vpack.c.b16 %v5793, %v5792
    %v5850 = vpack.c.b16 %v5795, %v5794
    %v5851 = vpack.c.b16 %v5797, %v5796
    %v5852 = vpack.c.b16 %v5799, %v5798
    %v5853 = vpack.c.b16 %v5801, %v5800
    %v5854 = vpack.c.b16 %v5803, %v5802
    %v5855 = vpack.c.b16 %v5805, %v5804
    %v5856 = vpack.c.b16 %v5807, %v5806
    %v5857 = vpack.c.b16 %v5809, %v5808
    %v5858 = vpack.c.b16 %v5811, %v5810
    %v5859 = vpack.c.b16 %v5813, %v5812
    %v5860 = vpack.c.b16 %v5815, %v5814
    %v5861 = vpack.c.b16 %v5817, %v5816
    %v5862 = vpack.c.b16 %v5819, %v5818
    %v5863 = vpack.c.b16 %v5821, %v5820
    %v5864 = vpack.c.b16 %v5823, %v5822
    %v5865 = vpack.c.b16 %v5825, %v5824
    %v5866 = vpack.c.b16 %v5827, %v5826
    %v5867 = vpack.c.b16 %v5829, %v5828
    %v5868 = vpack.c.b16 %v5831, %v5830
    %v5869 = vpack.c.b16 %v5833, %v5832
    %v5870 = vpack.c.b16 %v5835, %v5834
    %v5871 = vpack.c.b16 %v5837, %v5836
    %v5872 = vpack.c.b16 %v5839, %v5838
    %v5873 = vpack.c.b16 %v5841, %v5840
    %5906 = vmatprep.subr.bf16.mxu0 0
    %5907 = vmatpush1.bf16.msra.mxu0 %v5842
    %5908 = vmatprep.subr.bf16.mxu0 0
    %5909 = vmatpush1.bf16.msra.mxu0 %v5843
    %5910 = vmatprep.subr.bf16.mxu0 0
    %5911 = vmatpush1.bf16.msra.mxu0 %v5844
    %5912 = vmatprep.subr.bf16.mxu0 0
    %5913 = vmatpush1.bf16.msra.mxu0 %v5845
    %5914 = vmatprep.subr.bf16.mxu0 0
    %5915 = vmatpush1.bf16.msra.mxu0 %v5846
    %5916 = vmatprep.subr.bf16.mxu0 0
    %5917 = vmatpush1.bf16.msra.mxu0 %v5847
    %5918 = vmatprep.subr.bf16.mxu0 0
    %5919 = vmatpush1.bf16.msra.mxu0 %v5848
    %5920 = vmatprep.subr.bf16.mxu0 0
    %5921 = vmatpush1.bf16.msra.mxu0 %v5849
    %5922 = vmatprep.subr.bf16.mxu0 0
    %5923 = vmatpush1.bf16.msra.mxu0 %v5850
    %5924 = vmatprep.subr.bf16.mxu0 0
    %5925 = vmatpush1.bf16.msra.mxu0 %v5851
    %5926 = vmatprep.subr.bf16.mxu0 0
    %5927 = vmatpush1.bf16.msra.mxu0 %v5852
    %5928 = vmatprep.subr.bf16.mxu0 0
    %5929 = vmatpush1.bf16.msra.mxu0 %v5853
    %5930 = vmatprep.subr.bf16.mxu0 0
    %5931 = vmatpush1.bf16.msra.mxu0 %v5854
    %5932 = vmatprep.subr.bf16.mxu0 0
    %5933 = vmatpush1.bf16.msra.mxu0 %v5855
    %5934 = vmatprep.subr.bf16.mxu0 0
    %5935 = vmatpush1.bf16.msra.mxu0 %v5856
    %5936 = vmatprep.subr.bf16.mxu0 0
    %5937 = vmatpush1.bf16.msra.mxu0 %v5857
    %5938 = vmatprep.mubr.bf16.mxu0 %v5580
    %5939 = vmatmul.mubr.bf16.gmra.mrb[0].mxu0 %v5579
    %v5940 = vpop.f32.mrb[0].mxu0
    %v5941 = vadd.f32 %v5712, %v5940
    %v5942 = vpop.f32.mrb[0].mxu0
    %v5943 = vpop.f32.mrb[0].mxu0
    %v5944 = vadd.f32 %v5712, %v5943
    %v5945 = vpop.f32.mrb[0].mxu0
    %5946 = vmatprep.mubr.bf16.mxu0 %v5584
    %5947 = vmatmul.mubr.bf16.gmra.mrb[0].mxu0 %v5583
    %v5948 = vpop.f32.mrb[0].mxu0
    %v5949 = vadd.f32 %v5712, %v5948
    %v5950 = vpop.f32.mrb[0].mxu0
    %v5951 = vpop.f32.mrb[0].mxu0
    %v5952 = vadd.f32 %v5712, %v5951
    %v5953 = vpop.f32.mrb[0].mxu0
    %5954 = vmatprep.mubr.bf16.mxu0 %v5588
    %5955 = vmatmul.mubr.bf16.gmra.mrb[0].mxu0 %v5587
    %v5956 = vpop.f32.mrb[0].mxu0
    %v5957 = vadd.f32 %v5712, %v5956
    %v5958 = vpop.f32.mrb[0].mxu0
    %v5959 = vpop.f32.mrb[0].mxu0
    %v5960 = vadd.f32 %v5712, %v5959
    %v5961 = vpop.f32.mrb[0].mxu0
    %5962 = vmatprep.mubr.bf16.mxu0 %v5592
    %5963 = vmatmul.mubr.bf16.gmra.mrb[0].mxu0 %v5591
    %v5964 = vpop.f32.mrb[0].mxu0
    %v5965 = vadd.f32 %v5712, %v5964
    %v5966 = vpop.f32.mrb[0].mxu0
    %v5967 = vpop.f32.mrb[0].mxu0
    %v5968 = vadd.f32 %v5712, %v5967
    %v5969 = vpop.f32.mrb[0].mxu0
    %5970 = vmatprep.mubr.bf16.mxu0 %v5596
    %5971 = vmatmul.mubr.bf16.gmra.mrb[0].mxu0 %v5595
    %v5972 = vpop.f32.mrb[0].mxu0
    %v5973 = vadd.f32 %v5712, %v5972
    %v5974 = vpop.f32.mrb[0].mxu0
    %v5975 = vpop.f32.mrb[0].mxu0
    %v5976 = vadd.f32 %v5712, %v5975
    %v5977 = vpop.f32.mrb[0].mxu0
    %5978 = vmatprep.mubr.bf16.mxu0 %v5600
    %5979 = vmatmul.mubr.bf16.gmra.mrb[0].mxu0 %v5599
    %v5980 = vpop.f32.mrb[0].mxu0
    %v5981 = vadd.f32 %v5712, %v5980
    %v5982 = vpop.f32.mrb[0].mxu0
    %v5983 = vpop.f32.mrb[0].mxu0
    %v5984 = vadd.f32 %v5712, %v5983
    %v5985 = vpop.f32.mrb[0].mxu0
    %5986 = vmatprep.mubr.bf16.mxu0 %v5604
    %5987 = vmatmul.mubr.bf16.gmra.mrb[0].mxu0 %v5603
    %v5988 = vpop.f32.mrb[0].mxu0
    %v5989 = vadd.f32 %v5712, %v5988
    %v5990 = vpop.f32.mrb[0].mxu0
    %v5991 = vpop.f32.mrb[0].mxu0
    %v5992 = vadd.f32 %v5712, %v5991
    %v5993 = vpop.f32.mrb[0].mxu0
    %5994 = vmatprep.mubr.bf16.mxu0 %v5608
    %5995 = vmatmul.mubr.bf16.gmra.mrb[0].mxu0 %v5607
    %v5996 = vpop.f32.mrb[0].mxu0
    %v5997 = vadd.f32 %v5712, %v5996
    %v5998 = vpop.f32.mrb[0].mxu0
    %v5999 = vpop.f32.mrb[0].mxu0
    %v6000 = vadd.f32 %v5712, %v5999
    %v6001 = vpop.f32.mrb[0].mxu0
    %6002 = vmatprep.mubr.bf16.mxu0 %v5612
    %6003 = vmatmul.mubr.bf16.gmra.mrb[0].mxu0 %v5611
    %v6004 = vpop.f32.mrb[0].mxu0
    %v6005 = vadd.f32 %v5712, %v6004
    %v6006 = vpop.f32.mrb[0].mxu0
    %v6007 = vpop.f32.mrb[0].mxu0
    %v6008 = vadd.f32 %v5712, %v6007
    %v6009 = vpop.f32.mrb[0].mxu0
    %6010 = vmatprep.mubr.bf16.mxu0 %v5616
    %6011 = vmatmul.mubr.bf16.gmra.mrb[0].mxu0 %v5615
    %v6012 = vpop.f32.mrb[0].mxu0
    %v6013 = vadd.f32 %v5712, %v6012
    %v6014 = vpop.f32.mrb[0].mxu0
    %v6015 = vpop.f32.mrb[0].mxu0
    %v6016 = vadd.f32 %v5712, %v6015
    %v6017 = vpop.f32.mrb[0].mxu0
    %6018 = vmatprep.mubr.bf16.mxu0 %v5620
    %6019 = vmatmul.mubr.bf16.gmra.mrb[0].mxu0 %v5619
    %v6020 = vpop.f32.mrb[0].mxu0
    %v6021 = vadd.f32 %v5712, %v6020
    %v6022 = vpop.f32.mrb[0].mxu0
    %v6023 = vpop.f32.mrb[0].mxu0
    %v6024 = vadd.f32 %v5712, %v6023
    %v6025 = vpop.f32.mrb[0].mxu0
    %6026 = vmatprep.mubr.bf16.mxu0 %v5624
    %6027 = vmatmul.mubr.bf16.gmra.mrb[0].mxu0 %v5623
    %v6028 = vpop.f32.mrb[0].mxu0
    %v6029 = vadd.f32 %v5712, %v6028
    %v6030 = vpop.f32.mrb[0].mxu0
    %v6031 = vpop.f32.mrb[0].mxu0
    %v6032 = vadd.f32 %v5712, %v6031
    %v6033 = vpop.f32.mrb[0].mxu0
    %6034 = vmatprep.mubr.bf16.mxu0 %v5628
    %6035 = vmatmul.mubr.bf16.gmra.mrb[0].mxu0 %v5627
    %v6036 = vpop.f32.mrb[0].mxu0
    %v6037 = vadd.f32 %v5712, %v6036
    %v6038 = vpop.f32.mrb[0].mxu0
    %v6039 = vpop.f32.mrb[0].mxu0
    %v6040 = vadd.f32 %v5712, %v6039
    %v6041 = vpop.f32.mrb[0].mxu0
    %6042 = vmatprep.mubr.bf16.mxu0 %v5632
    %6043 = vmatmul.mubr.bf16.gmra.mrb[0].mxu0 %v5631
    %v6044 = vpop.f32.mrb[0].mxu0
    %v6045 = vadd.f32 %v5712, %v6044
    %v6046 = vpop.f32.mrb[0].mxu0
    %v6047 = vpop.f32.mrb[0].mxu0
    %v6048 = vadd.f32 %v5712, %v6047
    %v6049 = vpop.f32.mrb[0].mxu0
    %6050 = vmatprep.mubr.bf16.mxu0 %v5636
    %6051 = vmatmul.mubr.bf16.gmra.mrb[0].mxu0 %v5635
    %v6052 = vpop.f32.mrb[0].mxu0
    %v6053 = vadd.f32 %v5712, %v6052
    %v6054 = vpop.f32.mrb[0].mxu0
    %v6055 = vpop.f32.mrb[0].mxu0
    %v6056 = vadd.f32 %v5712, %v6055
    %v6057 = vpop.f32.mrb[0].mxu0
    %6058 = vmatprep.mubr.bf16.mxu0 %v5640
    %6059 = vmatmul.mubr.bf16.gmra.mrb[0].mxu0 %v5639
    %v6060 = vpop.f32.mrb[0].mxu0
    %v6061 = vadd.f32 %v5712, %v6060
    %v6062 = vpop.f32.mrb[0].mxu0
    %v6063 = vpop.f32.mrb[0].mxu0
    %v6064 = vadd.f32 %v5712, %v6063
    %v6065 = vpop.f32.mrb[0].mxu0
    %6066 = vdwg.mxu0
    %6067 = vmatprep.subr.bf16.mxu0 0
    %6068 = vmatpush1.bf16.msra.mxu0 %v5858
    %6069 = vmatprep.subr.bf16.mxu0 0
    %6070 = vmatpush1.bf16.msra.mxu0 %v5859
    %6071 = vmatprep.subr.bf16.mxu0 0
    %6072 = vmatpush1.bf16.msra.mxu0 %v5860
    %6073 = vmatprep.subr.bf16.mxu0 0
    %6074 = vmatpush1.bf16.msra.mxu0 %v5861
    %6075 = vmatprep.subr.bf16.mxu0 0
    %6076 = vmatpush1.bf16.msra.mxu0 %v5862
    %6077 = vmatprep.subr.bf16.mxu0 0
    %6078 = vmatpush1.bf16.msra.mxu0 %v5863
    %6079 = vmatprep.subr.bf16.mxu0 0
    %6080 = vmatpush1.bf16.msra.mxu0 %v5864
    %6081 = vmatprep.subr.bf16.mxu0 0
    %6082 = vmatpush1.bf16.msra.mxu0 %v5865
    %6083 = vmatprep.subr.bf16.mxu0 0
    %6084 = vmatpush1.bf16.msra.mxu0 %v5866
    %6085 = vmatprep.subr.bf16.mxu0 0
    %6086 = vmatpush1.bf16.msra.mxu0 %v5867
    %6087 = vmatprep.subr.bf16.mxu0 0
    %6088 = vmatpush1.bf16.msra.mxu0 %v5868
    %6089 = vmatprep.subr.bf16.mxu0 0
    %6090 = vmatpush1.bf16.msra.mxu0 %v5869
    %6091 = vmatprep.subr.bf16.mxu0 0
    %6092 = vmatpush1.bf16.msra.mxu0 %v5870
    %6093 = vmatprep.subr.bf16.mxu0 0
    %6094 = vmatpush1.bf16.msra.mxu0 %v5871
    %6095 = vmatprep.subr.bf16.mxu0 0
    %6096 = vmatpush1.bf16.msra.mxu0 %v5872
    %6097 = vmatprep.subr.bf16.mxu0 0
    %6098 = vmatpush1.bf16.msra.mxu0 %v5873
    %6099 = vmatprep.mubr.bf16.mxu0 %v5582
    %6100 = vmatmul.mubr.bf16.gmra.mrb[0].mxu0 %v5581
    %v6101 = vpop.f32.mrb[0].mxu0
    %v6102 = vadd.f32 %v5941, %v6101
    %v6103 = vpop.f32.mrb[0].mxu0
    %v6104 = vpop.f32.mrb[0].mxu0
    %v6105 = vadd.f32 %v5944, %v6104
    %v6106 = vpop.f32.mrb[0].mxu0
    %6107 = vmatprep.mubr.bf16.mxu0 %v5586
    %6108 = vmatmul.mubr.bf16.gmra.mrb[0].mxu0 %v5585
    %v6109 = vpop.f32.mrb[0].mxu0
    %v6110 = vadd.f32 %v5949, %v6109
    %v6111 = vpop.f32.mrb[0].mxu0
    %v6112 = vpop.f32.mrb[0].mxu0
    %v6113 = vadd.f32 %v5952, %v6112
    %v6114 = vpop.f32.mrb[0].mxu0
    %6115 = vmatprep.mubr.bf16.mxu0 %v5590
    %6116 = vmatmul.mubr.bf16.gmra.mrb[0].mxu0 %v5589
    %v6117 = vpop.f32.mrb[0].mxu0
    %v6118 = vadd.f32 %v5957, %v6117
    %v6119 = vpop.f32.mrb[0].mxu0
    %v6120 = vpop.f32.mrb[0].mxu0
    %v6121 = vadd.f32 %v5960, %v6120
    %v6122 = vpop.f32.mrb[0].mxu0
    %6123 = vmatprep.mubr.bf16.mxu0 %v5594
    %6124 = vmatmul.mubr.bf16.gmra.mrb[0].mxu0 %v5593
    %v6125 = vpop.f32.mrb[0].mxu0
    %v6126 = vadd.f32 %v5965, %v6125
    %v6127 = vpop.f32.mrb[0].mxu0
    %v6128 = vpop.f32.mrb[0].mxu0
    %v6129 = vadd.f32 %v5968, %v6128
    %v6130 = vpop.f32.mrb[0].mxu0
    %6131 = vmatprep.mubr.bf16.mxu0 %v5598
    %6132 = vmatmul.mubr.bf16.gmra.mrb[0].mxu0 %v5597
    %v6133 = vpop.f32.mrb[0].mxu0
    %v6134 = vadd.f32 %v5973, %v6133
    %v6135 = vpop.f32.mrb[0].mxu0
    %v6136 = vpop.f32.mrb[0].mxu0
    %v6137 = vadd.f32 %v5976, %v6136
    %v6138 = vpop.f32.mrb[0].mxu0
    %6139 = vmatprep.mubr.bf16.mxu0 %v5602
    %6140 = vmatmul.mubr.bf16.gmra.mrb[0].mxu0 %v5601
    %v6141 = vpop.f32.mrb[0].mxu0
    %v6142 = vadd.f32 %v5981, %v6141
    %v6143 = vpop.f32.mrb[0].mxu0
    %v6144 = vpop.f32.mrb[0].mxu0
    %v6145 = vadd.f32 %v5984, %v6144
    %v6146 = vpop.f32.mrb[0].mxu0
    %6147 = vmatprep.mubr.bf16.mxu0 %v5606
    %6148 = vmatmul.mubr.bf16.gmra.mrb[0].mxu0 %v5605
    %v6149 = vpop.f32.mrb[0].mxu0
    %v6150 = vadd.f32 %v5989, %v6149
    %v6151 = vpop.f32.mrb[0].mxu0
    %v6152 = vpop.f32.mrb[0].mxu0
    %v6153 = vadd.f32 %v5992, %v6152
    %v6154 = vpop.f32.mrb[0].mxu0
    %6155 = vmatprep.mubr.bf16.mxu0 %v5610
    %6156 = vmatmul.mubr.bf16.gmra.mrb[0].mxu0 %v5609
    %v6157 = vpop.f32.mrb[0].mxu0
    %v6158 = vadd.f32 %v5997, %v6157
    %v6159 = vpop.f32.mrb[0].mxu0
    %v6160 = vpop.f32.mrb[0].mxu0
    %v6161 = vadd.f32 %v6000, %v6160
    %v6162 = vpop.f32.mrb[0].mxu0
    %6163 = vmatprep.mubr.bf16.mxu0 %v5614
    %6164 = vmatmul.mubr.bf16.gmra.mrb[0].mxu0 %v5613
    %v6165 = vpop.f32.mrb[0].mxu0
    %v6166 = vadd.f32 %v6005, %v6165
    %v6167 = vpop.f32.mrb[0].mxu0
    %v6168 = vpop.f32.mrb[0].mxu0
    %v6169 = vadd.f32 %v6008, %v6168
    %v6170 = vpop.f32.mrb[0].mxu0
    %6171 = vmatprep.mubr.bf16.mxu0 %v5618
    %6172 = vmatmul.mubr.bf16.gmra.mrb[0].mxu0 %v5617
    %v6173 = vpop.f32.mrb[0].mxu0
    %v6174 = vadd.f32 %v6013, %v6173
    %v6175 = vpop.f32.mrb[0].mxu0
    %v6176 = vpop.f32.mrb[0].mxu0
    %v6177 = vadd.f32 %v6016, %v6176
    %v6178 = vpop.f32.mrb[0].mxu0
    %6179 = vmatprep.mubr.bf16.mxu0 %v5622
    %6180 = vmatmul.mubr.bf16.gmra.mrb[0].mxu0 %v5621
    %v6181 = vpop.f32.mrb[0].mxu0
    %v6182 = vadd.f32 %v6021, %v6181
    %v6183 = vpop.f32.mrb[0].mxu0
    %v6184 = vpop.f32.mrb[0].mxu0
    %v6185 = vadd.f32 %v6024, %v6184
    %v6186 = vpop.f32.mrb[0].mxu0
    %6187 = vmatprep.mubr.bf16.mxu0 %v5626
    %6188 = vmatmul.mubr.bf16.gmra.mrb[0].mxu0 %v5625
    %v6189 = vpop.f32.mrb[0].mxu0
    %v6190 = vadd.f32 %v6029, %v6189
    %v6191 = vpop.f32.mrb[0].mxu0
    %v6192 = vpop.f32.mrb[0].mxu0
    %v6193 = vadd.f32 %v6032, %v6192
    %v6194 = vpop.f32.mrb[0].mxu0
    %6195 = vmatprep.mubr.bf16.mxu0 %v5630
    %6196 = vmatmul.mubr.bf16.gmra.mrb[0].mxu0 %v5629
    %v6197 = vpop.f32.mrb[0].mxu0
    %v6198 = vadd.f32 %v6037, %v6197
    %v6199 = vpop.f32.mrb[0].mxu0
    %v6200 = vpop.f32.mrb[0].mxu0
    %v6201 = vadd.f32 %v6040, %v6200
    %v6202 = vpop.f32.mrb[0].mxu0
    %6203 = vmatprep.mubr.bf16.mxu0 %v5634
    %6204 = vmatmul.mubr.bf16.gmra.mrb[0].mxu0 %v5633
    %v6205 = vpop.f32.mrb[0].mxu0
    %v6206 = vadd.f32 %v6045, %v6205
    %v6207 = vpop.f32.mrb[0].mxu0
    %v6208 = vpop.f32.mrb[0].mxu0
    %v6209 = vadd.f32 %v6048, %v6208
    %v6210 = vpop.f32.mrb[0].mxu0
    %6211 = vmatprep.mubr.bf16.mxu0 %v5638
    %6212 = vmatmul.mubr.bf16.gmra.mrb[0].mxu0 %v5637
    %v6213 = vpop.f32.mrb[0].mxu0
    %v6214 = vadd.f32 %v6053, %v6213
    %v6215 = vpop.f32.mrb[0].mxu0
    %v6216 = vpop.f32.mrb[0].mxu0
    %v6217 = vadd.f32 %v6056, %v6216
    %v6218 = vpop.f32.mrb[0].mxu0
    %6219 = vmatprep.mubr.bf16.mxu0 %v5642
    %6220 = vmatmul.mubr.bf16.gmra.mrb[0].mxu0 %v5641
    %v6221 = vpop.f32.mrb[0].mxu0
    %v6222 = vadd.f32 %v6061, %v6221
    %v6223 = vpop.f32.mrb[0].mxu0
    %v6224 = vpop.f32.mrb[0].mxu0
    %v6225 = vadd.f32 %v6064, %v6224
    %v6226 = vpop.f32.mrb[0].mxu0
    %6227 = vdwg.mxu0
    %6228 = vst [vmem:[#allocation10] sm:$0xff] %v6102
    %6229 = vst [vmem:[#allocation10 + $0x8] sm:$0xff] %v6105
    %6230 = vst [vmem:[#allocation10 + $0x10] sm:$0xff] %v6110
    %6231 = vst [vmem:[#allocation10 + $0x18] sm:$0xff] %v6113
    %6232 = vst [vmem:[#allocation10 + $0x20] sm:$0xff] %v6118
    %6233 = vst [vmem:[#allocation10 + $0x28] sm:$0xff] %v6121
    %6234 = vst [vmem:[#allocation10 + $0x30] sm:$0xff] %v6126
    %6235 = vst [vmem:[#allocation10 + $0x38] sm:$0xff] %v6129
    %6236 = vst [vmem:[#allocation10 + $0x40] sm:$0xff] %v6134
    %6237 = vst [vmem:[#allocation10 + $0x48] sm:$0xff] %v6137
    %6238 = vst [vmem:[#allocation10 + $0x50] sm:$0xff] %v6142
    %6239 = vst [vmem:[#allocation10 + $0x58] sm:$0xff] %v6145
    %6240 = vst [vmem:[#allocation10 + $0x60] sm:$0xff] %v6150
    %6241 = vst [vmem:[#allocation10 + $0x68] sm:$0xff] %v6153
    %6242 = vst [vmem:[#allocation10 + $0x70] sm:$0xff] %v6158
    %6243 = vst [vmem:[#allocation10 + $0x78] sm:$0xff] %v6161
    %6244 = vst [vmem:[#allocation10 + $0x80] sm:$0xff] %v6166
    %6245 = vst [vmem:[#allocation10 + $0x88] sm:$0xff] %v6169
    %6246 = vst [vmem:[#allocation10 + $0x90] sm:$0xff] %v6174
    %6247 = vst [vmem:[#allocation10 + $0x98] sm:$0xff] %v6177
    %6248 = vst [vmem:[#allocation10 + $0xa0] sm:$0xff] %v6182
    %6249 = vst [vmem:[#allocation10 + $0xa8] sm:$0xff] %v6185
    %6250 = vst [vmem:[#allocation10 + $0xb0] sm:$0xff] %v6190
    %6251 = vst [vmem:[#allocation10 + $0xb8] sm:$0xff] %v6193
    %6252 = vst [vmem:[#allocation10 + $0xc0] sm:$0xff] %v6198
    %6253 = vst [vmem:[#allocation10 + $0xc8] sm:$0xff] %v6201
    %6254 = vst [vmem:[#allocation10 + $0xd0] sm:$0xff] %v6206
    %6255 = vst [vmem:[#allocation10 + $0xd8] sm:$0xff] %v6209
    %6256 = vst [vmem:[#allocation10 + $0xe0] sm:$0xff] %v6214
    %6257 = vst [vmem:[#allocation10 + $0xe8] sm:$0xff] %v6217
    %6258 = vst [vmem:[#allocation10 + $0xf0] sm:$0xff] %v6222
    %6259 = vst [vmem:[#allocation10 + $0xf8] sm:$0xff] %v6225
    // Predicated region
    $region46: #{tpu_custom_call.1} parent=1 // pred_check
      _
    $region47: #{tpu_custom_call.1} parent=1 // pred_check_branch
      %6261 = sbr.rel (0) target = $region49
    $region48: #{tpu_custom_call.1} parent=1 // pred_region
      %s6263 = ssub.s32 4096, 4096
      %6264 = vsyncadd [#allocation4], %s6263
      %s6265 = sshll.u32 [#allocation10], 4
      %s6266 = int_to_ptr.vmem [resolvable:$true] %s6265
      %6271 = dma.vmem_to_hbm [thread:$0]  %s6266, 4096, %s7, [#allocation4], 128, 128, 8
    $region49: #{tpu_custom_call.1} parent=1 // pred_fallthru
      _
    // Predicated region
    $region50: #{tpu_custom_call.1} parent=1 // pred_check
      _
    $region51: #{tpu_custom_call.1} parent=1 // pred_check_branch
      %6273 = sbr.rel (0) target = $region53
    $region52: #{tpu_custom_call.1} parent=1 // pred_region
      %6274 = dma.done [#allocation4], 4096
    $region53: #{tpu_custom_call.1} parent=1 // pred_fallthru
      _
    %6275 = vsyncpa [#allocation3], 1
    %6276 = vsyncpa [#allocation6], 1
    %6277 = vsyncpa [#allocation9], 1
    %6278 = vsyncpa [#allocation4], 1

</llo_original>
